<compile_context>
chip_gen: v7x
topology: tpu7x:2x2x1
jax: 0.10.0
libtpu: 0.0.40
codegen_flags: <defaults>
</compile_context>

<pallas_src>
import math
import jax
import jax.numpy as jnp
from jax.experimental import pallas as pl
from jax.experimental.pallas import tpu as pltpu

# ----------------------------- model dims ------------------------------------
B = 2          # batch
S = 8          # decoder sequence length
S_ENC = 8      # encoder sequence length
D = 32         # dim_embedding
DK = 8         # d_k (per-head dim)
H = 4          # n_heads
HD = H * DK    # 32
DFF = 64       # d_ff
LN_EPS = 1e-5

R = B * S            # rows per step (batch folded into sublanes)
R_ENC = B * S_ENC
assert R == R_ENC, "packed slab layout assumes S == S_ENC"

# pl.reciprocal(approx=True) is a deliberate (EUP-slot) precision deviation from
# an exact softmax divide; flip to False if tighter accuracy is required.
APPROX_SOFTMAX_RECIP = True

LANE = 128

# ---- packed weight slab (D rows), every segment 128-lane aligned ------------
W_S_QKV = 0 * LANE     # (D, 3*HD) fused self Q|K|V (1/sqrt(dk) folded into Q)
W_S_O   = 1 * LANE     # (HD, D)
W_C_Q   = 2 * LANE     # (D, HD)   (scale folded)
W_C_KV  = 3 * LANE     # (D, 2*HD) fused cross K|V
W_C_O   = 4 * LANE     # (HD, D)
W_F_1   = 5 * LANE     # (D, DFF)
W_F_2T  = 6 * LANE     # (D, DFF)  = f_w2.T (consumed contract-on-last-axis)
W_COLS  = 7 * LANE

# ---- packed bias / LayerNorm slab (R rows, pre-broadcast, 128-aligned) ------
B_S_QKV = 0 * LANE
B_S_O   = 1 * LANE
B_C_Q   = 2 * LANE
B_C_KV  = 3 * LANE
B_C_O   = 4 * LANE
B_F_1   = 5 * LANE
B_F_2   = 6 * LANE
B_LN_G  = 7 * LANE
B_LN_B  = 8 * LANE
B_COLS  = 9 * LANE

# ---- packed activation slab (R rows, 128-aligned groups) --------------------
A_X      = 0 * LANE    # (R, D)      decoder input rows
A_ENC    = 1 * LANE    # (R, D)      encoder context rows
A_PAD    = 2 * LANE    # (R, S_ENC)  additive pad-mask bias
A_CAUSAL = 3 * LANE    # (R, S)      additive causal-mask bias (tiled over batch)
A_COLS   = 4 * LANE


# ----------------------------- in-kernel helpers ------------------------------
def _dot(a, b):
    return jnp.dot(a, b, preferred_element_type=jnp.float32)


def _dot_nt(a, b):
    # a @ b.T without materializing the transpose (contract last axes).
    return jax.lax.dot_general(a, b, (((1,), (1,)), ((), ())),
                               preferred_element_type=jnp.float32)


def decoder_kernel(act_ref, w_ref, b_ref, out_ref):
    act = act_ref[...]                 # (R, A_COLS)
    W = w_ref[...]                     # (D, W_COLS)
    Bv = b_ref[...]                    # (R, B_COLS)

    x     = act[:, A_X:A_X + D]                     # (R, D)
    enc   = act[:, A_ENC:A_ENC + D]                 # (R, D)
    pbias = act[:, A_PAD:A_PAD + S_ENC]             # (R, S_ENC) additive
    cbias = act[0:S, A_CAUSAL:A_CAUSAL + S]         # (S, S)     additive

    ln_g = Bv[:, B_LN_G:B_LN_G + D]
    ln_b = Bv[:, B_LN_B:B_LN_B + D]

    def layernorm(t):
        mu = jnp.mean(t, axis=-1, keepdims=True)
        tc = t - mu
        var = jnp.mean(tc * tc, axis=-1, keepdims=True)
        return tc * jax.lax.rsqrt(var + LN_EPS) * ln_g + ln_b

    def softmax(s):
        # Keep max-subtraction: cheap at (8, 8) and safe for fully-masked rows.
        s = s - jnp.max(s, axis=-1, keepdims=True)
        p = jnp.exp(s)
        d = jnp.sum(p, axis=-1, keepdims=True)
        if APPROX_SOFTMAX_RECIP:
            return p * pl.reciprocal(d, approx=True)
        return p / d

    def attention(pq, q0, pkv, k0, v0, bias_fn, s_kv, wo, bo):
        # pq holds Q at column offset q0; pkv holds K/V at offsets k0/v0.
        # Each head's output is pushed through the matching 8-row block of wo
        # and accumulated (== concat-heads @ wo without the lane concat).
        outs = []
        for b in range(B):
            mb = bias_fn(b)                               # (S, s_kv), hoisted
            acc = None
            for h in range(H):
                qh = pq[b * S:(b + 1) * S, q0 + h * DK:q0 + (h + 1) * DK]
                kh = pkv[b * s_kv:(b + 1) * s_kv, k0 + h * DK:k0 + (h + 1) * DK]
                vh = pkv[b * s_kv:(b + 1) * s_kv, v0 + h * DK:v0 + (h + 1) * DK]
                p = softmax(_dot_nt(qh, kh) + mb)         # scale folded into Wq
                ph = _dot(_dot(p, vh), wo[h * DK:(h + 1) * DK, :])   # (S, D)
                acc = ph if acc is None else acc + ph
            outs.append(acc)
        out = outs[0] if B == 1 else jnp.concatenate(outs, axis=0)  # sublane cat
        return out + bo

    # ---- masked self attention + residual + LN ----
    qkv = (_dot(x, W[:, W_S_QKV:W_S_QKV + 3 * HD])
           + Bv[:, B_S_QKV:B_S_QKV + 3 * HD])
    a = attention(qkv, 0, qkv, HD, 2 * HD, lambda b: cbias, S,
                  W[:, W_S_O:W_S_O + D], Bv[:, B_S_O:B_S_O + D])
    x = layernorm(a + x)

    # ---- cross attention + residual + LN ----
    qc = _dot(x, W[:, W_C_Q:W_C_Q + HD]) + Bv[:, B_C_Q:B_C_Q + HD]
    kv = (_dot(enc, W[:, W_C_KV:W_C_KV + 2 * HD])
          + Bv[:, B_C_KV:B_C_KV + 2 * HD])
    a = attention(qc, 0, kv, 0, HD,
                  lambda b: pbias[b * S:(b + 1) * S, :], S_ENC,
                  W[:, W_C_O:W_C_O + D], Bv[:, B_C_O:B_C_O + D])
    x = layernorm(a + x)

    # ---- feed-forward + residual + LN ----
    h1 = jnp.maximum(
        _dot(x, W[:, W_F_1:W_F_1 + DFF]) + Bv[:, B_F_1:B_F_1 + DFF], 0.0)
    ff = _dot_nt(h1, W[:, W_F_2T:W_F_2T + DFF]) + Bv[:, B_F_2:B_F_2 + D]
    x = layernorm(ff + x)

    out_ref[...] = x


# ----------------------------- wrapper ----------------------------------------
def pack_params(p):
    scale = 1.0 / math.sqrt(DK)

    def place(slab, col, mat):
        return slab.at[:, col:col + mat.shape[-1]].set(mat)

    w = jnp.zeros((D, W_COLS), jnp.float32)
    w = place(w, W_S_QKV, jnp.concatenate(
        [p["s_wq"] * scale, p["s_wk"], p["s_wv"]], axis=1))
    w = place(w, W_S_O, p["s_wo"])
    w = place(w, W_C_Q, p["c_wq"] * scale)
    w = place(w, W_C_KV, jnp.concatenate([p["c_wk"], p["c_wv"]], axis=1))
    w = place(w, W_C_O, p["c_wo"])
    w = place(w, W_F_1, p["f_w1"])
    w = place(w, W_F_2T, p["f_w2"].T)

    def bcast(v):
        return jnp.broadcast_to(v.reshape(1, -1), (R, v.shape[-1]))

    b = jnp.zeros((R, B_COLS), jnp.float32)
    b = place(b, B_S_QKV, bcast(jnp.concatenate(
        [p["s_bq"] * scale, p["s_bk"], p["s_bv"]], axis=1)))
    b = place(b, B_S_O, bcast(p["s_bo"]))
    b = place(b, B_C_Q, bcast(p["c_bq"] * scale))
    b = place(b, B_C_KV, bcast(jnp.concatenate([p["c_bk"], p["c_bv"]], axis=1)))
    b = place(b, B_C_O, bcast(p["c_bo"]))
    b = place(b, B_F_1, bcast(p["f_b1"]))
    b = place(b, B_F_2, bcast(p["f_b2"]))
    b = place(b, B_LN_G, bcast(p["ln_g"]))
    b = place(b, B_LN_B, bcast(p["ln_b"]))
    return w.astype(jnp.float32), b.astype(jnp.float32)


def pack_activations(inputs, encoder_context, causal_mask, pad_mask):
    a = jnp.zeros((R, A_COLS), jnp.float32)
    a = a.at[:, A_X:A_X + D].set(inputs.reshape(R, D).astype(jnp.float32))
    a = a.at[:, A_ENC:A_ENC + D].set(
        encoder_context.reshape(R_ENC, D).astype(jnp.float32))
    a = a.at[:, A_PAD:A_PAD + S_ENC].set(
        ((pad_mask.astype(jnp.float32) - 1.0) * 1e9).reshape(R, S_ENC))
    a = a.at[:, A_CAUSAL:A_CAUSAL + S].set(
        jnp.tile((causal_mask.astype(jnp.float32) - 1.0) * 1e9, (B, 1)))
    return a


def _cost_estimate():
    per_b = 2 * (
        S * D * 3 * HD            # self qkv projection
        + H * S * S * DK * 2      # self scores + AV
        + S * HD * D              # self out projection
        + S * D * HD              # cross q projection
        + S_ENC * D * 2 * HD      # cross kv projection
        + H * S * S_ENC * DK * 2  # cross scores + AV
        + S * HD * D              # cross out projection
        + S * D * DFF * 2         # ffn
    )
    flops = B * per_b
    transcendentals = B * (H * S * (S + S_ENC) + 4 * S)
    bytes_accessed = 4 * (R * A_COLS + D * W_COLS + R * B_COLS + R * D)
    return pl.CostEstimate(flops=flops, transcendentals=transcendentals,
                           bytes_accessed=bytes_accessed)


def decoder_block(inputs, encoder_context, causal_mask, pad_mask, params):
    """inputs: (B,S,D)  encoder_context: (B,S_ENC,D)
       causal_mask: (S,S)  pad_mask: (B,S,S_ENC)   all float32 {0,1}."""
    act = pack_activations(inputs, encoder_context, causal_mask, pad_mask)
    w_slab, b_slab = pack_params(params)

    # Single grid step; whole problem (~220 KiB) is VMEM-resident on all gens.
    # TODO(synk): benchmark a v7x CORE_PARALLEL split of the batch across the
    # two TensorCores against this single-step path.
    out2 = pl.pallas_call(
        decoder_kernel,
        out_shape=jax.ShapeDtypeStruct((R, D), jnp.float32),
        grid_spec=pltpu.PrefetchScalarGridSpec(
            num_scalar_prefetch=0,
            grid=(1,),
            in_specs=[
                pl.BlockSpec((R, A_COLS), lambda g: (0, 0)),   # activation slab
                pl.BlockSpec((D, W_COLS), lambda g: (0, 0)),   # weight slab
                pl.BlockSpec((R, B_COLS), lambda g: (0, 0)),   # bias/LN slab
            ],
            out_specs=pl.BlockSpec((R, D), lambda g: (0, 0)),
        ),
        compiler_params=pltpu.CompilerParams(
            dimension_semantics=("arbitrary",)),
        cost_estimate=_cost_estimate(),
    )(act, w_slab, b_slab)

    return out2.reshape(B, S, D)


# ----------------------------- reference (pure JAX) ---------------------------
def _mha_ref(x_q, x_kv, mask, wq, bq, wk, bk, wv, bv, wo, bo):
    q = x_q @ wq + bq
    k = x_kv @ wk + bk
    v = x_kv @ wv + bv
    scale = 1.0 / math.sqrt(DK)
    heads = []
    for h in range(H):
        qh = q[:, h * DK:(h + 1) * DK]
        kh = k[:, h * DK:(h + 1) * DK]
        vh = v[:, h * DK:(h + 1) * DK]
        s = (qh @ kh.T) * scale
        s = jnp.where(mask > 0, s, -1e9)
        p = jax.nn.softmax(s, axis=-1)
        heads.append(p @ vh)
    return jnp.concatenate(heads, axis=-1) @ wo + bo


def _ln_ref(x, g, b):
    mu = x.mean(-1, keepdims=True)
    xc = x - mu
    var = (xc * xc).mean(-1, keepdims=True)
    return xc * jax.lax.rsqrt(var + LN_EPS) * g + b


def decoder_block_ref(inputs, enc, cmask, pmask, p):
    outs = []
    for b in range(B):
        x, e, pm = inputs[b], enc[b], pmask[b]
        a = _mha_ref(x, x, cmask, p["s_wq"], p["s_bq"], p["s_wk"], p["s_bk"],
                     p["s_wv"], p["s_bv"], p["s_wo"], p["s_bo"])
        x = _ln_ref(a + x, p["ln_g"], p["ln_b"])
        a = _mha_ref(x, e, pm, p["c_wq"], p["c_bq"], p["c_wk"], p["c_bk"],
                     p["c_wv"], p["c_bv"], p["c_wo"], p["c_bo"])
        x = _ln_ref(a + x, p["ln_g"], p["ln_b"])
        h = jnp.maximum(x @ p["f_w1"] + p["f_b1"], 0.0)
        x = _ln_ref(h @ p["f_w2"] + p["f_b2"] + x, p["ln_g"], p["ln_b"])
        outs.append(x)
    return jnp.stack(outs)


# ----------------------------- main --------------------------------------------
if __name__ == "__main__":
    key = jax.random.PRNGKey(0)
    keys = jax.random.split(key, 32)
    ki = iter(keys)

    def w(shape, scale=0.05):
        return (scale * jax.random.normal(next(ki), shape)).astype(jnp.float32)

    params = {
        # self-attention (nn.Linear weights stored already transposed: (in, out))
        "s_wq": w((D, HD)), "s_bq": w((1, HD)),
        "s_wk": w((D, HD)), "s_bk": w((1, HD)),
        "s_wv": w((D, HD)), "s_bv": w((1, HD)),
        "s_wo": w((HD, D)), "s_bo": w((1, D)),
        # cross-attention
        "c_wq": w((D, HD)), "c_bq": w((1, HD)),
        "c_wk": w((D, HD)), "c_bk": w((1, HD)),
        "c_wv": w((D, HD)), "c_bv": w((1, HD)),
        "c_wo": w((HD, D)), "c_bo": w((1, D)),
        # feed-forward
        "f_w1": w((D, DFF)), "f_b1": w((1, DFF)),
        "f_w2": w((DFF, D)), "f_b2": w((1, D)),
        # shared LayerNorm (self.bn): torch init (gamma=1, beta=0)
        "ln_g": jnp.ones((1, D), jnp.float32),
        "ln_b": jnp.zeros((1, D), jnp.float32),
    }

    inputs = jax.random.normal(next(ki), (B, S, D), dtype=jnp.float32)
    enc_ctx = jax.random.normal(next(ki), (B, S_ENC, D), dtype=jnp.float32)
    causal_mask = jnp.tril(jnp.ones((S, S), jnp.float32))
    # pad mask: last two encoder positions of batch 1 are padding
    pad = jnp.ones((B, S_ENC), jnp.float32).at[1, -2:].set(0.0)
    pad_mask = jnp.broadcast_to(pad[:, None, :], (B, S, S_ENC))

    out = jax.jit(decoder_block)(inputs, enc_ctx, causal_mask, pad_mask, params)
    out = jax.block_until_ready(out)

    ref = decoder_block_ref(inputs, enc_ctx, causal_mask, pad_mask, params)
    assert out.shape == (B, S, D)
    assert jnp.allclose(out, ref, atol=1e-2, rtol=1e-2), "mismatch vs reference"

    print("KERNEL_OK")
</pallas_src>

<mosaic_0001>
module attributes {stable_mosaic.version = 11 : i64} {
  func.func @decoder_kernel(%arg0: i32, %arg1: memref<16x512xf32, #tpu.memory_space<vmem>>, %arg2: memref<32x896xf32, #tpu.memory_space<vmem>>, %arg3: memref<16x1152xf32, #tpu.memory_space<vmem>>, %arg4: memref<16x32xf32, #tpu.memory_space<vmem>>) attributes {dimension_semantics = [#tpu.dimension_semantics<arbitrary>], iteration_bounds = array<i64: 1>, scalar_prefetch = 0 : i64, scratch_operands = 0 : i64, tpu.core_type = #tpu.core_type<tc>, window_params = [{pipeline_mode = #tpu.pipeline_mode<synchronous>, transform_indices = @transform_0, window_bounds = array<i64: 16, 512>}, {pipeline_mode = #tpu.pipeline_mode<synchronous>, transform_indices = @transform_1, window_bounds = array<i64: 32, 896>}, {pipeline_mode = #tpu.pipeline_mode<synchronous>, transform_indices = @transform_2, window_bounds = array<i64: 16, 1152>}, {pipeline_mode = #tpu.pipeline_mode<synchronous>, transform_indices = @transform_3, window_bounds = array<i64: 16, 32>}]} {
    %c0 = arith.constant 0 : index
    %c0_0 = arith.constant 0 : index
    %0 = vector.load %arg1[%c0, %c0_0] : memref<16x512xf32, #tpu.memory_space<vmem>>, vector<16x512xf32>
    %c0_1 = arith.constant 0 : index
    %c0_2 = arith.constant 0 : index
    %1 = vector.load %arg2[%c0_1, %c0_2] : memref<32x896xf32, #tpu.memory_space<vmem>>, vector<32x896xf32>
    %c0_3 = arith.constant 0 : index
    %c0_4 = arith.constant 0 : index
    %2 = vector.load %arg3[%c0_3, %c0_4] : memref<16x1152xf32, #tpu.memory_space<vmem>>, vector<16x1152xf32>
    %3 = vector.extract_strided_slice %0 {offsets = [0, 0], sizes = [16, 32], strides = [1, 1]} : vector<16x512xf32> to vector<16x32xf32>
    %4 = vector.extract_strided_slice %0 {offsets = [0, 128], sizes = [16, 32], strides = [1, 1]} : vector<16x512xf32> to vector<16x32xf32>
    %5 = vector.extract_strided_slice %0 {offsets = [0, 256], sizes = [16, 8], strides = [1, 1]} : vector<16x512xf32> to vector<16x8xf32>
    %6 = vector.extract_strided_slice %0 {offsets = [0, 384], sizes = [8, 8], strides = [1, 1]} : vector<16x512xf32> to vector<8x8xf32>
    %7 = vector.extract_strided_slice %2 {offsets = [0, 896], sizes = [16, 32], strides = [1, 1]} : vector<16x1152xf32> to vector<16x32xf32>
    %8 = vector.extract_strided_slice %2 {offsets = [0, 1024], sizes = [16, 32], strides = [1, 1]} : vector<16x1152xf32> to vector<16x32xf32>
    %9 = vector.extract_strided_slice %1 {offsets = [0, 0], sizes = [32, 96], strides = [1, 1]} : vector<32x896xf32> to vector<32x96xf32>
    %cst = arith.constant dense<0.000000e+00> : vector<16x96xf32>
    %10 = tpu.matmul %3, %9, %cst {dimension_numbers = #tpu.dot_dimension_numbers<[1], [0], [0], [1], [0, 0, 1, 1], [], []>} : vector<16x32xf32>, vector<32x96xf32>, vector<16x96xf32> -> vector<16x96xf32>
    %11 = vector.extract_strided_slice %2 {offsets = [0, 0], sizes = [16, 96], strides = [1, 1]} : vector<16x1152xf32> to vector<16x96xf32>
    %12 = arith.addf %10, %11 : vector<16x96xf32>
    %13 = vector.extract_strided_slice %1 {offsets = [0, 128], sizes = [32, 32], strides = [1, 1]} : vector<32x896xf32> to vector<32x32xf32>
    %14 = vector.extract_strided_slice %2 {offsets = [0, 128], sizes = [16, 32], strides = [1, 1]} : vector<16x1152xf32> to vector<16x32xf32>
    %15 = vector.extract_strided_slice %12 {offsets = [0, 0], sizes = [8, 8], strides = [1, 1]} : vector<16x96xf32> to vector<8x8xf32>
    %16 = vector.extract_strided_slice %12 {offsets = [0, 32], sizes = [8, 8], strides = [1, 1]} : vector<16x96xf32> to vector<8x8xf32>
    %17 = vector.extract_strided_slice %12 {offsets = [0, 64], sizes = [8, 8], strides = [1, 1]} : vector<16x96xf32> to vector<8x8xf32>
    %cst_5 = arith.constant dense<0.000000e+00> : vector<8x8xf32>
    %18 = tpu.matmul %15, %16, %cst_5 {dimension_numbers = #tpu.dot_dimension_numbers<[1], [1], [0], [0], [0, 0, 1, 0], [], []>} : vector<8x8xf32>, vector<8x8xf32>, vector<8x8xf32> -> vector<8x8xf32>
    %19 = arith.addf %18, %6 : vector<8x8xf32>
    %cst_6 = arith.constant dense<0xFF800000> : vector<8xf32>
    %20 = vector.multi_reduction <maximumf>, %19, %cst_6 [1] : vector<8x8xf32> to vector<8xf32>
    %21 = vector.shape_cast %20 : vector<8xf32> to vector<8x1xf32>
    %22 = vector.broadcast %21 : vector<8x1xf32> to vector<8x8xf32>
    %23 = arith.subf %19, %22 : vector<8x8xf32>
    %24 = math.exp %23 : vector<8x8xf32>
    %cst_7 = arith.constant dense<0.000000e+00> : vector<8xf32>
    %25 = vector.multi_reduction <add>, %24, %cst_7 [1] : vector<8x8xf32> to vector<8xf32>
    %26 = vector.shape_cast %25 : vector<8xf32> to vector<8x1xf32>
    %27 = tpu.reciprocal %26 {approx = true} : vector<8x1xf32> -> vector<8x1xf32>
    %28 = vector.broadcast %27 : vector<8x1xf32> to vector<8x8xf32>
    %29 = arith.mulf %24, %28 : vector<8x8xf32>
    %cst_8 = arith.constant dense<0.000000e+00> : vector<8x8xf32>
    %30 = tpu.matmul %29, %17, %cst_8 {dimension_numbers = #tpu.dot_dimension_numbers<[1], [0], [0], [1], [0, 0, 1, 1], [], []>} : vector<8x8xf32>, vector<8x8xf32>, vector<8x8xf32> -> vector<8x8xf32>
    %31 = vector.extract_strided_slice %13 {offsets = [0, 0], sizes = [8, 32], strides = [1, 1]} : vector<32x32xf32> to vector<8x32xf32>
    %cst_9 = arith.constant dense<0.000000e+00> : vector<8x32xf32>
    %32 = tpu.matmul %30, %31, %cst_9 {dimension_numbers = #tpu.dot_dimension_numbers<[1], [0], [0], [1], [0, 0, 1, 1], [], []>} : vector<8x8xf32>, vector<8x32xf32>, vector<8x32xf32> -> vector<8x32xf32>
    %33 = vector.extract_strided_slice %12 {offsets = [0, 8], sizes = [8, 8], strides = [1, 1]} : vector<16x96xf32> to vector<8x8xf32>
    %34 = vector.extract_strided_slice %12 {offsets = [0, 40], sizes = [8, 8], strides = [1, 1]} : vector<16x96xf32> to vector<8x8xf32>
    %35 = vector.extract_strided_slice %12 {offsets = [0, 72], sizes = [8, 8], strides = [1, 1]} : vector<16x96xf32> to vector<8x8xf32>
    %cst_10 = arith.constant dense<0.000000e+00> : vector<8x8xf32>
    %36 = tpu.matmul %33, %34, %cst_10 {dimension_numbers = #tpu.dot_dimension_numbers<[1], [1], [0], [0], [0, 0, 1, 0], [], []>} : vector<8x8xf32>, vector<8x8xf32>, vector<8x8xf32> -> vector<8x8xf32>
    %37 = arith.addf %36, %6 : vector<8x8xf32>
    %cst_11 = arith.constant dense<0xFF800000> : vector<8xf32>
    %38 = vector.multi_reduction <maximumf>, %37, %cst_11 [1] : vector<8x8xf32> to vector<8xf32>
    %39 = vector.shape_cast %38 : vector<8xf32> to vector<8x1xf32>
    %40 = vector.broadcast %39 : vector<8x1xf32> to vector<8x8xf32>
    %41 = arith.subf %37, %40 : vector<8x8xf32>
    %42 = math.exp %41 : vector<8x8xf32>
    %cst_12 = arith.constant dense<0.000000e+00> : vector<8xf32>
    %43 = vector.multi_reduction <add>, %42, %cst_12 [1] : vector<8x8xf32> to vector<8xf32>
    %44 = vector.shape_cast %43 : vector<8xf32> to vector<8x1xf32>
    %45 = tpu.reciprocal %44 {approx = true} : vector<8x1xf32> -> vector<8x1xf32>
    %46 = vector.broadcast %45 : vector<8x1xf32> to vector<8x8xf32>
    %47 = arith.mulf %42, %46 : vector<8x8xf32>
    %cst_13 = arith.constant dense<0.000000e+00> : vector<8x8xf32>
    %48 = tpu.matmul %47, %35, %cst_13 {dimension_numbers = #tpu.dot_dimension_numbers<[1], [0], [0], [1], [0, 0, 1, 1], [], []>} : vector<8x8xf32>, vector<8x8xf32>, vector<8x8xf32> -> vector<8x8xf32>
    %49 = vector.extract_strided_slice %13 {offsets = [8, 0], sizes = [8, 32], strides = [1, 1]} : vector<32x32xf32> to vector<8x32xf32>
    %cst_14 = arith.constant dense<0.000000e+00> : vector<8x32xf32>
    %50 = tpu.matmul %48, %49, %cst_14 {dimension_numbers = #tpu.dot_dimension_numbers<[1], [0], [0], [1], [0, 0, 1, 1], [], []>} : vector<8x8xf32>, vector<8x32xf32>, vector<8x32xf32> -> vector<8x32xf32>
    %51 = arith.addf %32, %50 : vector<8x32xf32>
    %52 = vector.extract_strided_slice %12 {offsets = [0, 16], sizes = [8, 8], strides = [1, 1]} : vector<16x96xf32> to vector<8x8xf32>
    %53 = vector.extract_strided_slice %12 {offsets = [0, 48], sizes = [8, 8], strides = [1, 1]} : vector<16x96xf32> to vector<8x8xf32>
    %54 = vector.extract_strided_slice %12 {offsets = [0, 80], sizes = [8, 8], strides = [1, 1]} : vector<16x96xf32> to vector<8x8xf32>
    %cst_15 = arith.constant dense<0.000000e+00> : vector<8x8xf32>
    %55 = tpu.matmul %52, %53, %cst_15 {dimension_numbers = #tpu.dot_dimension_numbers<[1], [1], [0], [0], [0, 0, 1, 0], [], []>} : vector<8x8xf32>, vector<8x8xf32>, vector<8x8xf32> -> vector<8x8xf32>
    %56 = arith.addf %55, %6 : vector<8x8xf32>
    %cst_16 = arith.constant dense<0xFF800000> : vector<8xf32>
    %57 = vector.multi_reduction <maximumf>, %56, %cst_16 [1] : vector<8x8xf32> to vector<8xf32>
    %58 = vector.shape_cast %57 : vector<8xf32> to vector<8x1xf32>
    %59 = vector.broadcast %58 : vector<8x1xf32> to vector<8x8xf32>
    %60 = arith.subf %56, %59 : vector<8x8xf32>
    %61 = math.exp %60 : vector<8x8xf32>
    %cst_17 = arith.constant dense<0.000000e+00> : vector<8xf32>
    %62 = vector.multi_reduction <add>, %61, %cst_17 [1] : vector<8x8xf32> to vector<8xf32>
    %63 = vector.shape_cast %62 : vector<8xf32> to vector<8x1xf32>
    %64 = tpu.reciprocal %63 {approx = true} : vector<8x1xf32> -> vector<8x1xf32>
    %65 = vector.broadcast %64 : vector<8x1xf32> to vector<8x8xf32>
    %66 = arith.mulf %61, %65 : vector<8x8xf32>
    %cst_18 = arith.constant dense<0.000000e+00> : vector<8x8xf32>
    %67 = tpu.matmul %66, %54, %cst_18 {dimension_numbers = #tpu.dot_dimension_numbers<[1], [0], [0], [1], [0, 0, 1, 1], [], []>} : vector<8x8xf32>, vector<8x8xf32>, vector<8x8xf32> -> vector<8x8xf32>
    %68 = vector.extract_strided_slice %13 {offsets = [16, 0], sizes = [8, 32], strides = [1, 1]} : vector<32x32xf32> to vector<8x32xf32>
    %cst_19 = arith.constant dense<0.000000e+00> : vector<8x32xf32>
    %69 = tpu.matmul %67, %68, %cst_19 {dimension_numbers = #tpu.dot_dimension_numbers<[1], [0], [0], [1], [0, 0, 1, 1], [], []>} : vector<8x8xf32>, vector<8x32xf32>, vector<8x32xf32> -> vector<8x32xf32>
    %70 = arith.addf %51, %69 : vector<8x32xf32>
    %71 = vector.extract_strided_slice %12 {offsets = [0, 24], sizes = [8, 8], strides = [1, 1]} : vector<16x96xf32> to vector<8x8xf32>
    %72 = vector.extract_strided_slice %12 {offsets = [0, 56], sizes = [8, 8], strides = [1, 1]} : vector<16x96xf32> to vector<8x8xf32>
    %73 = vector.extract_strided_slice %12 {offsets = [0, 88], sizes = [8, 8], strides = [1, 1]} : vector<16x96xf32> to vector<8x8xf32>
    %cst_20 = arith.constant dense<0.000000e+00> : vector<8x8xf32>
    %74 = tpu.matmul %71, %72, %cst_20 {dimension_numbers = #tpu.dot_dimension_numbers<[1], [1], [0], [0], [0, 0, 1, 0], [], []>} : vector<8x8xf32>, vector<8x8xf32>, vector<8x8xf32> -> vector<8x8xf32>
    %75 = arith.addf %74, %6 : vector<8x8xf32>
    %cst_21 = arith.constant dense<0xFF800000> : vector<8xf32>
    %76 = vector.multi_reduction <maximumf>, %75, %cst_21 [1] : vector<8x8xf32> to vector<8xf32>
    %77 = vector.shape_cast %76 : vector<8xf32> to vector<8x1xf32>
    %78 = vector.broadcast %77 : vector<8x1xf32> to vector<8x8xf32>
    %79 = arith.subf %75, %78 : vector<8x8xf32>
    %80 = math.exp %79 : vector<8x8xf32>
    %cst_22 = arith.constant dense<0.000000e+00> : vector<8xf32>
    %81 = vector.multi_reduction <add>, %80, %cst_22 [1] : vector<8x8xf32> to vector<8xf32>
    %82 = vector.shape_cast %81 : vector<8xf32> to vector<8x1xf32>
    %83 = tpu.reciprocal %82 {approx = true} : vector<8x1xf32> -> vector<8x1xf32>
    %84 = vector.broadcast %83 : vector<8x1xf32> to vector<8x8xf32>
    %85 = arith.mulf %80, %84 : vector<8x8xf32>
    %cst_23 = arith.constant dense<0.000000e+00> : vector<8x8xf32>
    %86 = tpu.matmul %85, %73, %cst_23 {dimension_numbers = #tpu.dot_dimension_numbers<[1], [0], [0], [1], [0, 0, 1, 1], [], []>} : vector<8x8xf32>, vector<8x8xf32>, vector<8x8xf32> -> vector<8x8xf32>
    %87 = vector.extract_strided_slice %13 {offsets = [24, 0], sizes = [8, 32], strides = [1, 1]} : vector<32x32xf32> to vector<8x32xf32>
    %cst_24 = arith.constant dense<0.000000e+00> : vector<8x32xf32>
    %88 = tpu.matmul %86, %87, %cst_24 {dimension_numbers = #tpu.dot_dimension_numbers<[1], [0], [0], [1], [0, 0, 1, 1], [], []>} : vector<8x8xf32>, vector<8x32xf32>, vector<8x32xf32> -> vector<8x32xf32>
    %89 = arith.addf %70, %88 : vector<8x32xf32>
    %90 = vector.extract_strided_slice %12 {offsets = [8, 0], sizes = [8, 8], strides = [1, 1]} : vector<16x96xf32> to vector<8x8xf32>
    %91 = vector.extract_strided_slice %12 {offsets = [8, 32], sizes = [8, 8], strides = [1, 1]} : vector<16x96xf32> to vector<8x8xf32>
    %92 = vector.extract_strided_slice %12 {offsets = [8, 64], sizes = [8, 8], strides = [1, 1]} : vector<16x96xf32> to vector<8x8xf32>
    %cst_25 = arith.constant dense<0.000000e+00> : vector<8x8xf32>
    %93 = tpu.matmul %90, %91, %cst_25 {dimension_numbers = #tpu.dot_dimension_numbers<[1], [1], [0], [0], [0, 0, 1, 0], [], []>} : vector<8x8xf32>, vector<8x8xf32>, vector<8x8xf32> -> vector<8x8xf32>
    %94 = arith.addf %93, %6 : vector<8x8xf32>
    %cst_26 = arith.constant dense<0xFF800000> : vector<8xf32>
    %95 = vector.multi_reduction <maximumf>, %94, %cst_26 [1] : vector<8x8xf32> to vector<8xf32>
    %96 = vector.shape_cast %95 : vector<8xf32> to vector<8x1xf32>
    %97 = vector.broadcast %96 : vector<8x1xf32> to vector<8x8xf32>
    %98 = arith.subf %94, %97 : vector<8x8xf32>
    %99 = math.exp %98 : vector<8x8xf32>
    %cst_27 = arith.constant dense<0.000000e+00> : vector<8xf32>
    %100 = vector.multi_reduction <add>, %99, %cst_27 [1] : vector<8x8xf32> to vector<8xf32>
    %101 = vector.shape_cast %100 : vector<8xf32> to vector<8x1xf32>
    %102 = tpu.reciprocal %101 {approx = true} : vector<8x1xf32> -> vector<8x1xf32>
    %103 = vector.broadcast %102 : vector<8x1xf32> to vector<8x8xf32>
    %104 = arith.mulf %99, %103 : vector<8x8xf32>
    %cst_28 = arith.constant dense<0.000000e+00> : vector<8x8xf32>
    %105 = tpu.matmul %104, %92, %cst_28 {dimension_numbers = #tpu.dot_dimension_numbers<[1], [0], [0], [1], [0, 0, 1, 1], [], []>} : vector<8x8xf32>, vector<8x8xf32>, vector<8x8xf32> -> vector<8x8xf32>
    %106 = vector.extract_strided_slice %13 {offsets = [0, 0], sizes = [8, 32], strides = [1, 1]} : vector<32x32xf32> to vector<8x32xf32>
    %cst_29 = arith.constant dense<0.000000e+00> : vector<8x32xf32>
    %107 = tpu.matmul %105, %106, %cst_29 {dimension_numbers = #tpu.dot_dimension_numbers<[1], [0], [0], [1], [0, 0, 1, 1], [], []>} : vector<8x8xf32>, vector<8x32xf32>, vector<8x32xf32> -> vector<8x32xf32>
    %108 = vector.extract_strided_slice %12 {offsets = [8, 8], sizes = [8, 8], strides = [1, 1]} : vector<16x96xf32> to vector<8x8xf32>
    %109 = vector.extract_strided_slice %12 {offsets = [8, 40], sizes = [8, 8], strides = [1, 1]} : vector<16x96xf32> to vector<8x8xf32>
    %110 = vector.extract_strided_slice %12 {offsets = [8, 72], sizes = [8, 8], strides = [1, 1]} : vector<16x96xf32> to vector<8x8xf32>
    %cst_30 = arith.constant dense<0.000000e+00> : vector<8x8xf32>
    %111 = tpu.matmul %108, %109, %cst_30 {dimension_numbers = #tpu.dot_dimension_numbers<[1], [1], [0], [0], [0, 0, 1, 0], [], []>} : vector<8x8xf32>, vector<8x8xf32>, vector<8x8xf32> -> vector<8x8xf32>
    %112 = arith.addf %111, %6 : vector<8x8xf32>
    %cst_31 = arith.constant dense<0xFF800000> : vector<8xf32>
    %113 = vector.multi_reduction <maximumf>, %112, %cst_31 [1] : vector<8x8xf32> to vector<8xf32>
    %114 = vector.shape_cast %113 : vector<8xf32> to vector<8x1xf32>
    %115 = vector.broadcast %114 : vector<8x1xf32> to vector<8x8xf32>
    %116 = arith.subf %112, %115 : vector<8x8xf32>
    %117 = math.exp %116 : vector<8x8xf32>
    %cst_32 = arith.constant dense<0.000000e+00> : vector<8xf32>
    %118 = vector.multi_reduction <add>, %117, %cst_32 [1] : vector<8x8xf32> to vector<8xf32>
    %119 = vector.shape_cast %118 : vector<8xf32> to vector<8x1xf32>
    %120 = tpu.reciprocal %119 {approx = true} : vector<8x1xf32> -> vector<8x1xf32>
    %121 = vector.broadcast %120 : vector<8x1xf32> to vector<8x8xf32>
    %122 = arith.mulf %117, %121 : vector<8x8xf32>
    %cst_33 = arith.constant dense<0.000000e+00> : vector<8x8xf32>
    %123 = tpu.matmul %122, %110, %cst_33 {dimension_numbers = #tpu.dot_dimension_numbers<[1], [0], [0], [1], [0, 0, 1, 1], [], []>} : vector<8x8xf32>, vector<8x8xf32>, vector<8x8xf32> -> vector<8x8xf32>
    %124 = vector.extract_strided_slice %13 {offsets = [8, 0], sizes = [8, 32], strides = [1, 1]} : vector<32x32xf32> to vector<8x32xf32>
    %cst_34 = arith.constant dense<0.000000e+00> : vector<8x32xf32>
    %125 = tpu.matmul %123, %124, %cst_34 {dimension_numbers = #tpu.dot_dimension_numbers<[1], [0], [0], [1], [0, 0, 1, 1], [], []>} : vector<8x8xf32>, vector<8x32xf32>, vector<8x32xf32> -> vector<8x32xf32>
    %126 = arith.addf %107, %125 : vector<8x32xf32>
    %127 = vector.extract_strided_slice %12 {offsets = [8, 16], sizes = [8, 8], strides = [1, 1]} : vector<16x96xf32> to vector<8x8xf32>
    %128 = vector.extract_strided_slice %12 {offsets = [8, 48], sizes = [8, 8], strides = [1, 1]} : vector<16x96xf32> to vector<8x8xf32>
    %129 = vector.extract_strided_slice %12 {offsets = [8, 80], sizes = [8, 8], strides = [1, 1]} : vector<16x96xf32> to vector<8x8xf32>
    %cst_35 = arith.constant dense<0.000000e+00> : vector<8x8xf32>
    %130 = tpu.matmul %127, %128, %cst_35 {dimension_numbers = #tpu.dot_dimension_numbers<[1], [1], [0], [0], [0, 0, 1, 0], [], []>} : vector<8x8xf32>, vector<8x8xf32>, vector<8x8xf32> -> vector<8x8xf32>
    %131 = arith.addf %130, %6 : vector<8x8xf32>
    %cst_36 = arith.constant dense<0xFF800000> : vector<8xf32>
    %132 = vector.multi_reduction <maximumf>, %131, %cst_36 [1] : vector<8x8xf32> to vector<8xf32>
    %133 = vector.shape_cast %132 : vector<8xf32> to vector<8x1xf32>
    %134 = vector.broadcast %133 : vector<8x1xf32> to vector<8x8xf32>
    %135 = arith.subf %131, %134 : vector<8x8xf32>
    %136 = math.exp %135 : vector<8x8xf32>
    %cst_37 = arith.constant dense<0.000000e+00> : vector<8xf32>
    %137 = vector.multi_reduction <add>, %136, %cst_37 [1] : vector<8x8xf32> to vector<8xf32>
    %138 = vector.shape_cast %137 : vector<8xf32> to vector<8x1xf32>
    %139 = tpu.reciprocal %138 {approx = true} : vector<8x1xf32> -> vector<8x1xf32>
    %140 = vector.broadcast %139 : vector<8x1xf32> to vector<8x8xf32>
    %141 = arith.mulf %136, %140 : vector<8x8xf32>
    %cst_38 = arith.constant dense<0.000000e+00> : vector<8x8xf32>
    %142 = tpu.matmul %141, %129, %cst_38 {dimension_numbers = #tpu.dot_dimension_numbers<[1], [0], [0], [1], [0, 0, 1, 1], [], []>} : vector<8x8xf32>, vector<8x8xf32>, vector<8x8xf32> -> vector<8x8xf32>
    %143 = vector.extract_strided_slice %13 {offsets = [16, 0], sizes = [8, 32], strides = [1, 1]} : vector<32x32xf32> to vector<8x32xf32>
    %cst_39 = arith.constant dense<0.000000e+00> : vector<8x32xf32>
    %144 = tpu.matmul %142, %143, %cst_39 {dimension_numbers = #tpu.dot_dimension_numbers<[1], [0], [0], [1], [0, 0, 1, 1], [], []>} : vector<8x8xf32>, vector<8x32xf32>, vector<8x32xf32> -> vector<8x32xf32>
    %145 = arith.addf %126, %144 : vector<8x32xf32>
    %146 = vector.extract_strided_slice %12 {offsets = [8, 24], sizes = [8, 8], strides = [1, 1]} : vector<16x96xf32> to vector<8x8xf32>
    %147 = vector.extract_strided_slice %12 {offsets = [8, 56], sizes = [8, 8], strides = [1, 1]} : vector<16x96xf32> to vector<8x8xf32>
    %148 = vector.extract_strided_slice %12 {offsets = [8, 88], sizes = [8, 8], strides = [1, 1]} : vector<16x96xf32> to vector<8x8xf32>
    %cst_40 = arith.constant dense<0.000000e+00> : vector<8x8xf32>
    %149 = tpu.matmul %146, %147, %cst_40 {dimension_numbers = #tpu.dot_dimension_numbers<[1], [1], [0], [0], [0, 0, 1, 0], [], []>} : vector<8x8xf32>, vector<8x8xf32>, vector<8x8xf32> -> vector<8x8xf32>
    %150 = arith.addf %149, %6 : vector<8x8xf32>
    %cst_41 = arith.constant dense<0xFF800000> : vector<8xf32>
    %151 = vector.multi_reduction <maximumf>, %150, %cst_41 [1] : vector<8x8xf32> to vector<8xf32>
    %152 = vector.shape_cast %151 : vector<8xf32> to vector<8x1xf32>
    %153 = vector.broadcast %152 : vector<8x1xf32> to vector<8x8xf32>
    %154 = arith.subf %150, %153 : vector<8x8xf32>
    %155 = math.exp %154 : vector<8x8xf32>
    %cst_42 = arith.constant dense<0.000000e+00> : vector<8xf32>
    %156 = vector.multi_reduction <add>, %155, %cst_42 [1] : vector<8x8xf32> to vector<8xf32>
    %157 = vector.shape_cast %156 : vector<8xf32> to vector<8x1xf32>
    %158 = tpu.reciprocal %157 {approx = true} : vector<8x1xf32> -> vector<8x1xf32>
    %159 = vector.broadcast %158 : vector<8x1xf32> to vector<8x8xf32>
    %160 = arith.mulf %155, %159 : vector<8x8xf32>
    %cst_43 = arith.constant dense<0.000000e+00> : vector<8x8xf32>
    %161 = tpu.matmul %160, %148, %cst_43 {dimension_numbers = #tpu.dot_dimension_numbers<[1], [0], [0], [1], [0, 0, 1, 1], [], []>} : vector<8x8xf32>, vector<8x8xf32>, vector<8x8xf32> -> vector<8x8xf32>
    %162 = vector.extract_strided_slice %13 {offsets = [24, 0], sizes = [8, 32], strides = [1, 1]} : vector<32x32xf32> to vector<8x32xf32>
    %cst_44 = arith.constant dense<0.000000e+00> : vector<8x32xf32>
    %163 = tpu.matmul %161, %162, %cst_44 {dimension_numbers = #tpu.dot_dimension_numbers<[1], [0], [0], [1], [0, 0, 1, 1], [], []>} : vector<8x8xf32>, vector<8x32xf32>, vector<8x32xf32> -> vector<8x32xf32>
    %164 = arith.addf %145, %163 : vector<8x32xf32>
    %165 = tpu.concatenate %89, %164 in 0 : vector<8x32xf32>, vector<8x32xf32> -> vector<16x32xf32>
    %166 = arith.addf %165, %14 : vector<16x32xf32>
    %167 = arith.addf %166, %3 : vector<16x32xf32>
    %cst_45 = arith.constant dense<0.000000e+00> : vector<16xf32>
    %168 = vector.multi_reduction <add>, %167, %cst_45 [1] : vector<16x32xf32> to vector<16xf32>
    %169 = vector.shape_cast %168 : vector<16xf32> to vector<16x1xf32>
    %cst_46 = arith.constant 3.200000e+01 : f32
    %170 = vector.broadcast %cst_46 : f32 to vector<16x1xf32>
    %171 = arith.divf %169, %170 : vector<16x1xf32>
    %172 = vector.broadcast %171 : vector<16x1xf32> to vector<16x32xf32>
    %173 = arith.subf %167, %172 : vector<16x32xf32>
    %174 = arith.mulf %173, %173 : vector<16x32xf32>
    %cst_47 = arith.constant dense<0.000000e+00> : vector<16xf32>
    %175 = vector.multi_reduction <add>, %174, %cst_47 [1] : vector<16x32xf32> to vector<16xf32>
    %176 = vector.shape_cast %175 : vector<16xf32> to vector<16x1xf32>
    %cst_48 = arith.constant 3.200000e+01 : f32
    %177 = vector.broadcast %cst_48 : f32 to vector<16x1xf32>
    %178 = arith.divf %176, %177 : vector<16x1xf32>
    %cst_49 = arith.constant 9.99999974E-6 : f32
    %179 = vector.broadcast %cst_49 : f32 to vector<16x1xf32>
    %180 = arith.addf %178, %179 : vector<16x1xf32>
    %181 = math.rsqrt %180 : vector<16x1xf32>
    %182 = vector.broadcast %181 : vector<16x1xf32> to vector<16x32xf32>
    %183 = arith.mulf %173, %182 : vector<16x32xf32>
    %184 = arith.mulf %183, %7 : vector<16x32xf32>
    %185 = arith.addf %184, %8 : vector<16x32xf32>
    %186 = vector.extract_strided_slice %1 {offsets = [0, 256], sizes = [32, 32], strides = [1, 1]} : vector<32x896xf32> to vector<32x32xf32>
    %cst_50 = arith.constant dense<0.000000e+00> : vector<16x32xf32>
    %187 = tpu.matmul %185, %186, %cst_50 {dimension_numbers = #tpu.dot_dimension_numbers<[1], [0], [0], [1], [0, 0, 1, 1], [], []>} : vector<16x32xf32>, vector<32x32xf32>, vector<16x32xf32> -> vector<16x32xf32>
    %188 = vector.extract_strided_slice %2 {offsets = [0, 256], sizes = [16, 32], strides = [1, 1]} : vector<16x1152xf32> to vector<16x32xf32>
    %189 = arith.addf %187, %188 : vector<16x32xf32>
    %190 = vector.extract_strided_slice %1 {offsets = [0, 384], sizes = [32, 64], strides = [1, 1]} : vector<32x896xf32> to vector<32x64xf32>
    %cst_51 = arith.constant dense<0.000000e+00> : vector<16x64xf32>
    %191 = tpu.matmul %4, %190, %cst_51 {dimension_numbers = #tpu.dot_dimension_numbers<[1], [0], [0], [1], [0, 0, 1, 1], [], []>} : vector<16x32xf32>, vector<32x64xf32>, vector<16x64xf32> -> vector<16x64xf32>
    %192 = vector.extract_strided_slice %2 {offsets = [0, 384], sizes = [16, 64], strides = [1, 1]} : vector<16x1152xf32> to vector<16x64xf32>
    %193 = arith.addf %191, %192 : vector<16x64xf32>
    %194 = vector.extract_strided_slice %1 {offsets = [0, 512], sizes = [32, 32], strides = [1, 1]} : vector<32x896xf32> to vector<32x32xf32>
    %195 = vector.extract_strided_slice %2 {offsets = [0, 512], sizes = [16, 32], strides = [1, 1]} : vector<16x1152xf32> to vector<16x32xf32>
    %196 = vector.extract_strided_slice %5 {offsets = [0, 0], sizes = [8, 8], strides = [1, 1]} : vector<16x8xf32> to vector<8x8xf32>
    %197 = vector.extract_strided_slice %189 {offsets = [0, 0], sizes = [8, 8], strides = [1, 1]} : vector<16x32xf32> to vector<8x8xf32>
    %198 = vector.extract_strided_slice %193 {offsets = [0, 0], sizes = [8, 8], strides = [1, 1]} : vector<16x64xf32> to vector<8x8xf32>
    %199 = vector.extract_strided_slice %193 {offsets = [0, 32], sizes = [8, 8], strides = [1, 1]} : vector<16x64xf32> to vector<8x8xf32>
    %cst_52 = arith.constant dense<0.000000e+00> : vector<8x8xf32>
    %200 = tpu.matmul %197, %198, %cst_52 {dimension_numbers = #tpu.dot_dimension_numbers<[1], [1], [0], [0], [0, 0, 1, 0], [], []>} : vector<8x8xf32>, vector<8x8xf32>, vector<8x8xf32> -> vector<8x8xf32>
    %201 = arith.addf %200, %196 : vector<8x8xf32>
    %cst_53 = arith.constant dense<0xFF800000> : vector<8xf32>
    %202 = vector.multi_reduction <maximumf>, %201, %cst_53 [1] : vector<8x8xf32> to vector<8xf32>
    %203 = vector.shape_cast %202 : vector<8xf32> to vector<8x1xf32>
    %204 = vector.broadcast %203 : vector<8x1xf32> to vector<8x8xf32>
    %205 = arith.subf %201, %204 : vector<8x8xf32>
    %206 = math.exp %205 : vector<8x8xf32>
    %cst_54 = arith.constant dense<0.000000e+00> : vector<8xf32>
    %207 = vector.multi_reduction <add>, %206, %cst_54 [1] : vector<8x8xf32> to vector<8xf32>
    %208 = vector.shape_cast %207 : vector<8xf32> to vector<8x1xf32>
    %209 = tpu.reciprocal %208 {approx = true} : vector<8x1xf32> -> vector<8x1xf32>
    %210 = vector.broadcast %209 : vector<8x1xf32> to vector<8x8xf32>
    %211 = arith.mulf %206, %210 : vector<8x8xf32>
    %cst_55 = arith.constant dense<0.000000e+00> : vector<8x8xf32>
    %212 = tpu.matmul %211, %199, %cst_55 {dimension_numbers = #tpu.dot_dimension_numbers<[1], [0], [0], [1], [0, 0, 1, 1], [], []>} : vector<8x8xf32>, vector<8x8xf32>, vector<8x8xf32> -> vector<8x8xf32>
    %213 = vector.extract_strided_slice %194 {offsets = [0, 0], sizes = [8, 32], strides = [1, 1]} : vector<32x32xf32> to vector<8x32xf32>
    %cst_56 = arith.constant dense<0.000000e+00> : vector<8x32xf32>
    %214 = tpu.matmul %212, %213, %cst_56 {dimension_numbers = #tpu.dot_dimension_numbers<[1], [0], [0], [1], [0, 0, 1, 1], [], []>} : vector<8x8xf32>, vector<8x32xf32>, vector<8x32xf32> -> vector<8x32xf32>
    %215 = vector.extract_strided_slice %189 {offsets = [0, 8], sizes = [8, 8], strides = [1, 1]} : vector<16x32xf32> to vector<8x8xf32>
    %216 = vector.extract_strided_slice %193 {offsets = [0, 8], sizes = [8, 8], strides = [1, 1]} : vector<16x64xf32> to vector<8x8xf32>
    %217 = vector.extract_strided_slice %193 {offsets = [0, 40], sizes = [8, 8], strides = [1, 1]} : vector<16x64xf32> to vector<8x8xf32>
    %cst_57 = arith.constant dense<0.000000e+00> : vector<8x8xf32>
    %218 = tpu.matmul %215, %216, %cst_57 {dimension_numbers = #tpu.dot_dimension_numbers<[1], [1], [0], [0], [0, 0, 1, 0], [], []>} : vector<8x8xf32>, vector<8x8xf32>, vector<8x8xf32> -> vector<8x8xf32>
    %219 = arith.addf %218, %196 : vector<8x8xf32>
    %cst_58 = arith.constant dense<0xFF800000> : vector<8xf32>
    %220 = vector.multi_reduction <maximumf>, %219, %cst_58 [1] : vector<8x8xf32> to vector<8xf32>
    %221 = vector.shape_cast %220 : vector<8xf32> to vector<8x1xf32>
    %222 = vector.broadcast %221 : vector<8x1xf32> to vector<8x8xf32>
    %223 = arith.subf %219, %222 : vector<8x8xf32>
    %224 = math.exp %223 : vector<8x8xf32>
    %cst_59 = arith.constant dense<0.000000e+00> : vector<8xf32>
    %225 = vector.multi_reduction <add>, %224, %cst_59 [1] : vector<8x8xf32> to vector<8xf32>
    %226 = vector.shape_cast %225 : vector<8xf32> to vector<8x1xf32>
    %227 = tpu.reciprocal %226 {approx = true} : vector<8x1xf32> -> vector<8x1xf32>
    %228 = vector.broadcast %227 : vector<8x1xf32> to vector<8x8xf32>
    %229 = arith.mulf %224, %228 : vector<8x8xf32>
    %cst_60 = arith.constant dense<0.000000e+00> : vector<8x8xf32>
    %230 = tpu.matmul %229, %217, %cst_60 {dimension_numbers = #tpu.dot_dimension_numbers<[1], [0], [0], [1], [0, 0, 1, 1], [], []>} : vector<8x8xf32>, vector<8x8xf32>, vector<8x8xf32> -> vector<8x8xf32>
    %231 = vector.extract_strided_slice %194 {offsets = [8, 0], sizes = [8, 32], strides = [1, 1]} : vector<32x32xf32> to vector<8x32xf32>
    %cst_61 = arith.constant dense<0.000000e+00> : vector<8x32xf32>
    %232 = tpu.matmul %230, %231, %cst_61 {dimension_numbers = #tpu.dot_dimension_numbers<[1], [0], [0], [1], [0, 0, 1, 1], [], []>} : vector<8x8xf32>, vector<8x32xf32>, vector<8x32xf32> -> vector<8x32xf32>
    %233 = arith.addf %214, %232 : vector<8x32xf32>
    %234 = vector.extract_strided_slice %189 {offsets = [0, 16], sizes = [8, 8], strides = [1, 1]} : vector<16x32xf32> to vector<8x8xf32>
    %235 = vector.extract_strided_slice %193 {offsets = [0, 16], sizes = [8, 8], strides = [1, 1]} : vector<16x64xf32> to vector<8x8xf32>
    %236 = vector.extract_strided_slice %193 {offsets = [0, 48], sizes = [8, 8], strides = [1, 1]} : vector<16x64xf32> to vector<8x8xf32>
    %cst_62 = arith.constant dense<0.000000e+00> : vector<8x8xf32>
    %237 = tpu.matmul %234, %235, %cst_62 {dimension_numbers = #tpu.dot_dimension_numbers<[1], [1], [0], [0], [0, 0, 1, 0], [], []>} : vector<8x8xf32>, vector<8x8xf32>, vector<8x8xf32> -> vector<8x8xf32>
    %238 = arith.addf %237, %196 : vector<8x8xf32>
    %cst_63 = arith.constant dense<0xFF800000> : vector<8xf32>
    %239 = vector.multi_reduction <maximumf>, %238, %cst_63 [1] : vector<8x8xf32> to vector<8xf32>
    %240 = vector.shape_cast %239 : vector<8xf32> to vector<8x1xf32>
    %241 = vector.broadcast %240 : vector<8x1xf32> to vector<8x8xf32>
    %242 = arith.subf %238, %241 : vector<8x8xf32>
    %243 = math.exp %242 : vector<8x8xf32>
    %cst_64 = arith.constant dense<0.000000e+00> : vector<8xf32>
    %244 = vector.multi_reduction <add>, %243, %cst_64 [1] : vector<8x8xf32> to vector<8xf32>
    %245 = vector.shape_cast %244 : vector<8xf32> to vector<8x1xf32>
    %246 = tpu.reciprocal %245 {approx = true} : vector<8x1xf32> -> vector<8x1xf32>
    %247 = vector.broadcast %246 : vector<8x1xf32> to vector<8x8xf32>
    %248 = arith.mulf %243, %247 : vector<8x8xf32>
    %cst_65 = arith.constant dense<0.000000e+00> : vector<8x8xf32>
    %249 = tpu.matmul %248, %236, %cst_65 {dimension_numbers = #tpu.dot_dimension_numbers<[1], [0], [0], [1], [0, 0, 1, 1], [], []>} : vector<8x8xf32>, vector<8x8xf32>, vector<8x8xf32> -> vector<8x8xf32>
    %250 = vector.extract_strided_slice %194 {offsets = [16, 0], sizes = [8, 32], strides = [1, 1]} : vector<32x32xf32> to vector<8x32xf32>
    %cst_66 = arith.constant dense<0.000000e+00> : vector<8x32xf32>
    %251 = tpu.matmul %249, %250, %cst_66 {dimension_numbers = #tpu.dot_dimension_numbers<[1], [0], [0], [1], [0, 0, 1, 1], [], []>} : vector<8x8xf32>, vector<8x32xf32>, vector<8x32xf32> -> vector<8x32xf32>
    %252 = arith.addf %233, %251 : vector<8x32xf32>
    %253 = vector.extract_strided_slice %189 {offsets = [0, 24], sizes = [8, 8], strides = [1, 1]} : vector<16x32xf32> to vector<8x8xf32>
    %254 = vector.extract_strided_slice %193 {offsets = [0, 24], sizes = [8, 8], strides = [1, 1]} : vector<16x64xf32> to vector<8x8xf32>
    %255 = vector.extract_strided_slice %193 {offsets = [0, 56], sizes = [8, 8], strides = [1, 1]} : vector<16x64xf32> to vector<8x8xf32>
    %cst_67 = arith.constant dense<0.000000e+00> : vector<8x8xf32>
    %256 = tpu.matmul %253, %254, %cst_67 {dimension_numbers = #tpu.dot_dimension_numbers<[1], [1], [0], [0], [0, 0, 1, 0], [], []>} : vector<8x8xf32>, vector<8x8xf32>, vector<8x8xf32> -> vector<8x8xf32>
    %257 = arith.addf %256, %196 : vector<8x8xf32>
    %cst_68 = arith.constant dense<0xFF800000> : vector<8xf32>
    %258 = vector.multi_reduction <maximumf>, %257, %cst_68 [1] : vector<8x8xf32> to vector<8xf32>
    %259 = vector.shape_cast %258 : vector<8xf32> to vector<8x1xf32>
    %260 = vector.broadcast %259 : vector<8x1xf32> to vector<8x8xf32>
    %261 = arith.subf %257, %260 : vector<8x8xf32>
    %262 = math.exp %261 : vector<8x8xf32>
    %cst_69 = arith.constant dense<0.000000e+00> : vector<8xf32>
    %263 = vector.multi_reduction <add>, %262, %cst_69 [1] : vector<8x8xf32> to vector<8xf32>
    %264 = vector.shape_cast %263 : vector<8xf32> to vector<8x1xf32>
    %265 = tpu.reciprocal %264 {approx = true} : vector<8x1xf32> -> vector<8x1xf32>
    %266 = vector.broadcast %265 : vector<8x1xf32> to vector<8x8xf32>
    %267 = arith.mulf %262, %266 : vector<8x8xf32>
    %cst_70 = arith.constant dense<0.000000e+00> : vector<8x8xf32>
    %268 = tpu.matmul %267, %255, %cst_70 {dimension_numbers = #tpu.dot_dimension_numbers<[1], [0], [0], [1], [0, 0, 1, 1], [], []>} : vector<8x8xf32>, vector<8x8xf32>, vector<8x8xf32> -> vector<8x8xf32>
    %269 = vector.extract_strided_slice %194 {offsets = [24, 0], sizes = [8, 32], strides = [1, 1]} : vector<32x32xf32> to vector<8x32xf32>
    %cst_71 = arith.constant dense<0.000000e+00> : vector<8x32xf32>
    %270 = tpu.matmul %268, %269, %cst_71 {dimension_numbers = #tpu.dot_dimension_numbers<[1], [0], [0], [1], [0, 0, 1, 1], [], []>} : vector<8x8xf32>, vector<8x32xf32>, vector<8x32xf32> -> vector<8x32xf32>
    %271 = arith.addf %252, %270 : vector<8x32xf32>
    %272 = vector.extract_strided_slice %5 {offsets = [8, 0], sizes = [8, 8], strides = [1, 1]} : vector<16x8xf32> to vector<8x8xf32>
    %273 = vector.extract_strided_slice %189 {offsets = [8, 0], sizes = [8, 8], strides = [1, 1]} : vector<16x32xf32> to vector<8x8xf32>
    %274 = vector.extract_strided_slice %193 {offsets = [8, 0], sizes = [8, 8], strides = [1, 1]} : vector<16x64xf32> to vector<8x8xf32>
    %275 = vector.extract_strided_slice %193 {offsets = [8, 32], sizes = [8, 8], strides = [1, 1]} : vector<16x64xf32> to vector<8x8xf32>
    %cst_72 = arith.constant dense<0.000000e+00> : vector<8x8xf32>
    %276 = tpu.matmul %273, %274, %cst_72 {dimension_numbers = #tpu.dot_dimension_numbers<[1], [1], [0], [0], [0, 0, 1, 0], [], []>} : vector<8x8xf32>, vector<8x8xf32>, vector<8x8xf32> -> vector<8x8xf32>
    %277 = arith.addf %276, %272 : vector<8x8xf32>
    %cst_73 = arith.constant dense<0xFF800000> : vector<8xf32>
    %278 = vector.multi_reduction <maximumf>, %277, %cst_73 [1] : vector<8x8xf32> to vector<8xf32>
    %279 = vector.shape_cast %278 : vector<8xf32> to vector<8x1xf32>
    %280 = vector.broadcast %279 : vector<8x1xf32> to vector<8x8xf32>
    %281 = arith.subf %277, %280 : vector<8x8xf32>
    %282 = math.exp %281 : vector<8x8xf32>
    %cst_74 = arith.constant dense<0.000000e+00> : vector<8xf32>
    %283 = vector.multi_reduction <add>, %282, %cst_74 [1] : vector<8x8xf32> to vector<8xf32>
    %284 = vector.shape_cast %283 : vector<8xf32> to vector<8x1xf32>
    %285 = tpu.reciprocal %284 {approx = true} : vector<8x1xf32> -> vector<8x1xf32>
    %286 = vector.broadcast %285 : vector<8x1xf32> to vector<8x8xf32>
    %287 = arith.mulf %282, %286 : vector<8x8xf32>
    %cst_75 = arith.constant dense<0.000000e+00> : vector<8x8xf32>
    %288 = tpu.matmul %287, %275, %cst_75 {dimension_numbers = #tpu.dot_dimension_numbers<[1], [0], [0], [1], [0, 0, 1, 1], [], []>} : vector<8x8xf32>, vector<8x8xf32>, vector<8x8xf32> -> vector<8x8xf32>
    %289 = vector.extract_strided_slice %194 {offsets = [0, 0], sizes = [8, 32], strides = [1, 1]} : vector<32x32xf32> to vector<8x32xf32>
    %cst_76 = arith.constant dense<0.000000e+00> : vector<8x32xf32>
    %290 = tpu.matmul %288, %289, %cst_76 {dimension_numbers = #tpu.dot_dimension_numbers<[1], [0], [0], [1], [0, 0, 1, 1], [], []>} : vector<8x8xf32>, vector<8x32xf32>, vector<8x32xf32> -> vector<8x32xf32>
    %291 = vector.extract_strided_slice %189 {offsets = [8, 8], sizes = [8, 8], strides = [1, 1]} : vector<16x32xf32> to vector<8x8xf32>
    %292 = vector.extract_strided_slice %193 {offsets = [8, 8], sizes = [8, 8], strides = [1, 1]} : vector<16x64xf32> to vector<8x8xf32>
    %293 = vector.extract_strided_slice %193 {offsets = [8, 40], sizes = [8, 8], strides = [1, 1]} : vector<16x64xf32> to vector<8x8xf32>
    %cst_77 = arith.constant dense<0.000000e+00> : vector<8x8xf32>
    %294 = tpu.matmul %291, %292, %cst_77 {dimension_numbers = #tpu.dot_dimension_numbers<[1], [1], [0], [0], [0, 0, 1, 0], [], []>} : vector<8x8xf32>, vector<8x8xf32>, vector<8x8xf32> -> vector<8x8xf32>
    %295 = arith.addf %294, %272 : vector<8x8xf32>
    %cst_78 = arith.constant dense<0xFF800000> : vector<8xf32>
    %296 = vector.multi_reduction <maximumf>, %295, %cst_78 [1] : vector<8x8xf32> to vector<8xf32>
    %297 = vector.shape_cast %296 : vector<8xf32> to vector<8x1xf32>
    %298 = vector.broadcast %297 : vector<8x1xf32> to vector<8x8xf32>
    %299 = arith.subf %295, %298 : vector<8x8xf32>
    %300 = math.exp %299 : vector<8x8xf32>
    %cst_79 = arith.constant dense<0.000000e+00> : vector<8xf32>
    %301 = vector.multi_reduction <add>, %300, %cst_79 [1] : vector<8x8xf32> to vector<8xf32>
    %302 = vector.shape_cast %301 : vector<8xf32> to vector<8x1xf32>
    %303 = tpu.reciprocal %302 {approx = true} : vector<8x1xf32> -> vector<8x1xf32>
    %304 = vector.broadcast %303 : vector<8x1xf32> to vector<8x8xf32>
    %305 = arith.mulf %300, %304 : vector<8x8xf32>
    %cst_80 = arith.constant dense<0.000000e+00> : vector<8x8xf32>
    %306 = tpu.matmul %305, %293, %cst_80 {dimension_numbers = #tpu.dot_dimension_numbers<[1], [0], [0], [1], [0, 0, 1, 1], [], []>} : vector<8x8xf32>, vector<8x8xf32>, vector<8x8xf32> -> vector<8x8xf32>
    %307 = vector.extract_strided_slice %194 {offsets = [8, 0], sizes = [8, 32], strides = [1, 1]} : vector<32x32xf32> to vector<8x32xf32>
    %cst_81 = arith.constant dense<0.000000e+00> : vector<8x32xf32>
    %308 = tpu.matmul %306, %307, %cst_81 {dimension_numbers = #tpu.dot_dimension_numbers<[1], [0], [0], [1], [0, 0, 1, 1], [], []>} : vector<8x8xf32>, vector<8x32xf32>, vector<8x32xf32> -> vector<8x32xf32>
    %309 = arith.addf %290, %308 : vector<8x32xf32>
    %310 = vector.extract_strided_slice %189 {offsets = [8, 16], sizes = [8, 8], strides = [1, 1]} : vector<16x32xf32> to vector<8x8xf32>
    %311 = vector.extract_strided_slice %193 {offsets = [8, 16], sizes = [8, 8], strides = [1, 1]} : vector<16x64xf32> to vector<8x8xf32>
    %312 = vector.extract_strided_slice %193 {offsets = [8, 48], sizes = [8, 8], strides = [1, 1]} : vector<16x64xf32> to vector<8x8xf32>
    %cst_82 = arith.constant dense<0.000000e+00> : vector<8x8xf32>
    %313 = tpu.matmul %310, %311, %cst_82 {dimension_numbers = #tpu.dot_dimension_numbers<[1], [1], [0], [0], [0, 0, 1, 0], [], []>} : vector<8x8xf32>, vector<8x8xf32>, vector<8x8xf32> -> vector<8x8xf32>
    %314 = arith.addf %313, %272 : vector<8x8xf32>
    %cst_83 = arith.constant dense<0xFF800000> : vector<8xf32>
    %315 = vector.multi_reduction <maximumf>, %314, %cst_83 [1] : vector<8x8xf32> to vector<8xf32>
    %316 = vector.shape_cast %315 : vector<8xf32> to vector<8x1xf32>
    %317 = vector.broadcast %316 : vector<8x1xf32> to vector<8x8xf32>
    %318 = arith.subf %314, %317 : vector<8x8xf32>
    %319 = math.exp %318 : vector<8x8xf32>
    %cst_84 = arith.constant dense<0.000000e+00> : vector<8xf32>
    %320 = vector.multi_reduction <add>, %319, %cst_84 [1] : vector<8x8xf32> to vector<8xf32>
    %321 = vector.shape_cast %320 : vector<8xf32> to vector<8x1xf32>
    %322 = tpu.reciprocal %321 {approx = true} : vector<8x1xf32> -> vector<8x1xf32>
    %323 = vector.broadcast %322 : vector<8x1xf32> to vector<8x8xf32>
    %324 = arith.mulf %319, %323 : vector<8x8xf32>
    %cst_85 = arith.constant dense<0.000000e+00> : vector<8x8xf32>
    %325 = tpu.matmul %324, %312, %cst_85 {dimension_numbers = #tpu.dot_dimension_numbers<[1], [0], [0], [1], [0, 0, 1, 1], [], []>} : vector<8x8xf32>, vector<8x8xf32>, vector<8x8xf32> -> vector<8x8xf32>
    %326 = vector.extract_strided_slice %194 {offsets = [16, 0], sizes = [8, 32], strides = [1, 1]} : vector<32x32xf32> to vector<8x32xf32>
    %cst_86 = arith.constant dense<0.000000e+00> : vector<8x32xf32>
    %327 = tpu.matmul %325, %326, %cst_86 {dimension_numbers = #tpu.dot_dimension_numbers<[1], [0], [0], [1], [0, 0, 1, 1], [], []>} : vector<8x8xf32>, vector<8x32xf32>, vector<8x32xf32> -> vector<8x32xf32>
    %328 = arith.addf %309, %327 : vector<8x32xf32>
    %329 = vector.extract_strided_slice %189 {offsets = [8, 24], sizes = [8, 8], strides = [1, 1]} : vector<16x32xf32> to vector<8x8xf32>
    %330 = vector.extract_strided_slice %193 {offsets = [8, 24], sizes = [8, 8], strides = [1, 1]} : vector<16x64xf32> to vector<8x8xf32>
    %331 = vector.extract_strided_slice %193 {offsets = [8, 56], sizes = [8, 8], strides = [1, 1]} : vector<16x64xf32> to vector<8x8xf32>
    %cst_87 = arith.constant dense<0.000000e+00> : vector<8x8xf32>
    %332 = tpu.matmul %329, %330, %cst_87 {dimension_numbers = #tpu.dot_dimension_numbers<[1], [1], [0], [0], [0, 0, 1, 0], [], []>} : vector<8x8xf32>, vector<8x8xf32>, vector<8x8xf32> -> vector<8x8xf32>
    %333 = arith.addf %332, %272 : vector<8x8xf32>
    %cst_88 = arith.constant dense<0xFF800000> : vector<8xf32>
    %334 = vector.multi_reduction <maximumf>, %333, %cst_88 [1] : vector<8x8xf32> to vector<8xf32>
    %335 = vector.shape_cast %334 : vector<8xf32> to vector<8x1xf32>
    %336 = vector.broadcast %335 : vector<8x1xf32> to vector<8x8xf32>
    %337 = arith.subf %333, %336 : vector<8x8xf32>
    %338 = math.exp %337 : vector<8x8xf32>
    %cst_89 = arith.constant dense<0.000000e+00> : vector<8xf32>
    %339 = vector.multi_reduction <add>, %338, %cst_89 [1] : vector<8x8xf32> to vector<8xf32>
    %340 = vector.shape_cast %339 : vector<8xf32> to vector<8x1xf32>
    %341 = tpu.reciprocal %340 {approx = true} : vector<8x1xf32> -> vector<8x1xf32>
    %342 = vector.broadcast %341 : vector<8x1xf32> to vector<8x8xf32>
    %343 = arith.mulf %338, %342 : vector<8x8xf32>
    %cst_90 = arith.constant dense<0.000000e+00> : vector<8x8xf32>
    %344 = tpu.matmul %343, %331, %cst_90 {dimension_numbers = #tpu.dot_dimension_numbers<[1], [0], [0], [1], [0, 0, 1, 1], [], []>} : vector<8x8xf32>, vector<8x8xf32>, vector<8x8xf32> -> vector<8x8xf32>
    %345 = vector.extract_strided_slice %194 {offsets = [24, 0], sizes = [8, 32], strides = [1, 1]} : vector<32x32xf32> to vector<8x32xf32>
    %cst_91 = arith.constant dense<0.000000e+00> : vector<8x32xf32>
    %346 = tpu.matmul %344, %345, %cst_91 {dimension_numbers = #tpu.dot_dimension_numbers<[1], [0], [0], [1], [0, 0, 1, 1], [], []>} : vector<8x8xf32>, vector<8x32xf32>, vector<8x32xf32> -> vector<8x32xf32>
    %347 = arith.addf %328, %346 : vector<8x32xf32>
    %348 = tpu.concatenate %271, %347 in 0 : vector<8x32xf32>, vector<8x32xf32> -> vector<16x32xf32>
    %349 = arith.addf %348, %195 : vector<16x32xf32>
    %350 = arith.addf %349, %185 : vector<16x32xf32>
    %cst_92 = arith.constant dense<0.000000e+00> : vector<16xf32>
    %351 = vector.multi_reduction <add>, %350, %cst_92 [1] : vector<16x32xf32> to vector<16xf32>
    %352 = vector.shape_cast %351 : vector<16xf32> to vector<16x1xf32>
    %cst_93 = arith.constant 3.200000e+01 : f32
    %353 = vector.broadcast %cst_93 : f32 to vector<16x1xf32>
    %354 = arith.divf %352, %353 : vector<16x1xf32>
    %355 = vector.broadcast %354 : vector<16x1xf32> to vector<16x32xf32>
    %356 = arith.subf %350, %355 : vector<16x32xf32>
    %357 = arith.mulf %356, %356 : vector<16x32xf32>
    %cst_94 = arith.constant dense<0.000000e+00> : vector<16xf32>
    %358 = vector.multi_reduction <add>, %357, %cst_94 [1] : vector<16x32xf32> to vector<16xf32>
    %359 = vector.shape_cast %358 : vector<16xf32> to vector<16x1xf32>
    %cst_95 = arith.constant 3.200000e+01 : f32
    %360 = vector.broadcast %cst_95 : f32 to vector<16x1xf32>
    %361 = arith.divf %359, %360 : vector<16x1xf32>
    %cst_96 = arith.constant 9.99999974E-6 : f32
    %362 = vector.broadcast %cst_96 : f32 to vector<16x1xf32>
    %363 = arith.addf %361, %362 : vector<16x1xf32>
    %364 = math.rsqrt %363 : vector<16x1xf32>
    %365 = vector.broadcast %364 : vector<16x1xf32> to vector<16x32xf32>
    %366 = arith.mulf %356, %365 : vector<16x32xf32>
    %367 = arith.mulf %366, %7 : vector<16x32xf32>
    %368 = arith.addf %367, %8 : vector<16x32xf32>
    %369 = vector.extract_strided_slice %1 {offsets = [0, 640], sizes = [32, 64], strides = [1, 1]} : vector<32x896xf32> to vector<32x64xf32>
    %cst_97 = arith.constant dense<0.000000e+00> : vector<16x64xf32>
    %370 = tpu.matmul %368, %369, %cst_97 {dimension_numbers = #tpu.dot_dimension_numbers<[1], [0], [0], [1], [0, 0, 1, 1], [], []>} : vector<16x32xf32>, vector<32x64xf32>, vector<16x64xf32> -> vector<16x64xf32>
    %371 = vector.extract_strided_slice %2 {offsets = [0, 640], sizes = [16, 64], strides = [1, 1]} : vector<16x1152xf32> to vector<16x64xf32>
    %372 = arith.addf %370, %371 : vector<16x64xf32>
    %cst_98 = arith.constant 0.000000e+00 : f32
    %373 = vector.broadcast %cst_98 : f32 to vector<16x64xf32>
    %374 = arith.maximumf %372, %373 : vector<16x64xf32>
    %375 = vector.extract_strided_slice %1 {offsets = [0, 768], sizes = [32, 64], strides = [1, 1]} : vector<32x896xf32> to vector<32x64xf32>
    %cst_99 = arith.constant dense<0.000000e+00> : vector<16x32xf32>
    %376 = tpu.matmul %374, %375, %cst_99 {dimension_numbers = #tpu.dot_dimension_numbers<[1], [1], [0], [0], [0, 0, 1, 0], [], []>} : vector<16x64xf32>, vector<32x64xf32>, vector<16x32xf32> -> vector<16x32xf32>
    %377 = vector.extract_strided_slice %2 {offsets = [0, 768], sizes = [16, 32], strides = [1, 1]} : vector<16x1152xf32> to vector<16x32xf32>
    %378 = arith.addf %376, %377 : vector<16x32xf32>
    %379 = arith.addf %378, %368 : vector<16x32xf32>
    %cst_100 = arith.constant dense<0.000000e+00> : vector<16xf32>
    %380 = vector.multi_reduction <add>, %379, %cst_100 [1] : vector<16x32xf32> to vector<16xf32>
    %381 = vector.shape_cast %380 : vector<16xf32> to vector<16x1xf32>
    %cst_101 = arith.constant 3.200000e+01 : f32
    %382 = vector.broadcast %cst_101 : f32 to vector<16x1xf32>
    %383 = arith.divf %381, %382 : vector<16x1xf32>
    %384 = vector.broadcast %383 : vector<16x1xf32> to vector<16x32xf32>
    %385 = arith.subf %379, %384 : vector<16x32xf32>
    %386 = arith.mulf %385, %385 : vector<16x32xf32>
    %cst_102 = arith.constant dense<0.000000e+00> : vector<16xf32>
    %387 = vector.multi_reduction <add>, %386, %cst_102 [1] : vector<16x32xf32> to vector<16xf32>
    %388 = vector.shape_cast %387 : vector<16xf32> to vector<16x1xf32>
    %cst_103 = arith.constant 3.200000e+01 : f32
    %389 = vector.broadcast %cst_103 : f32 to vector<16x1xf32>
    %390 = arith.divf %388, %389 : vector<16x1xf32>
    %cst_104 = arith.constant 9.99999974E-6 : f32
    %391 = vector.broadcast %cst_104 : f32 to vector<16x1xf32>
    %392 = arith.addf %390, %391 : vector<16x1xf32>
    %393 = math.rsqrt %392 : vector<16x1xf32>
    %394 = vector.broadcast %393 : vector<16x1xf32> to vector<16x32xf32>
    %395 = arith.mulf %385, %394 : vector<16x32xf32>
    %396 = arith.mulf %395, %7 : vector<16x32xf32>
    %397 = arith.addf %396, %8 : vector<16x32xf32>
    %c0_105 = arith.constant 0 : index
    %c0_106 = arith.constant 0 : index
    %398 = vector.load %arg4[%c0_105, %c0_106] : memref<16x32xf32, #tpu.memory_space<vmem>>, vector<16x32xf32>
    tpu.vector_store %arg4[%c0_105, %c0_106], %397 {strides = array<i32>} : memref<16x32xf32, #tpu.memory_space<vmem>>, vector<16x32xf32>,
    return
  }
  func.func @transform_0(%arg0: i32) -> (i32, i32) {
    %c0_i32 = arith.constant 0 : i32
    %c0_i32_0 = arith.constant 0 : i32
    %c0_i32_1 = arith.constant 0 : i32
    return %c0_i32, %c0_i32_0 : i32, i32
  }
  func.func @transform_1(%arg0: i32) -> (i32, i32) {
    %c0_i32 = arith.constant 0 : i32
    %c0_i32_0 = arith.constant 0 : i32
    %c0_i32_1 = arith.constant 0 : i32
    return %c0_i32, %c0_i32_0 : i32, i32
  }
  func.func @transform_2(%arg0: i32) -> (i32, i32) {
    %c0_i32 = arith.constant 0 : i32
    %c0_i32_0 = arith.constant 0 : i32
    %c0_i32_1 = arith.constant 0 : i32
    return %c0_i32, %c0_i32_0 : i32, i32
  }
  func.func @transform_3(%arg0: i32) -> (i32, i32) {
    %c0_i32 = arith.constant 0 : i32
    %c0_i32_0 = arith.constant 0 : i32
    %c0_i32_1 = arith.constant 0 : i32
    return %c0_i32, %c0_i32_0 : i32, i32
  }
}

</mosaic_0001>

<llo_original>
// kernel: decoder_block.1
$region0: #{decoder_block.1}
  #allocation0 [shape = 'u32[]', space=smem, size = 0x4, offset = 0x4, fixed_abs, tag = 'smem constant byte address 0x4 - core index']
  #allocation1 [shape = 'u32[144,128]{1,0:T(1,128)}', space=vmem, size = 0x12000, scoped, tag = 'internal scratch']
  %s0 = inlined_call_operand.vmem [shape: f32[16,512], index: 0, kind: input, shape index: {}]
  %s1 = inlined_call_operand.vmem [shape: f32[32,896], index: 1, kind: input, shape index: {}]
  %s2 = inlined_call_operand.vmem [shape: f32[16,1152], index: 2, kind: input, shape index: {}]
  %s3 = inlined_call_operand.hbm [shape: f32[16,32], index: 3, kind: output, shape index: {}]
  %s4 = sld [smem:[#allocation0]]
  $region22: #{decoder_block.1} parent=0
    _
  %s6 = ssub.s32 1, %s4
  %s7 = scalar_select 0, %s6, %s4
  $region1: #{decoder_block.1} parent=0
    #allocation2 [shape = 'u8[8192]{0}', space=vmem, size = 0x2000, scoped, tag = 'output window, operand 0, single buffered']
    #allocation3 [shape = 's32[1]{0}', space=sflag, size = 0x4, scoped, tag = 'scoped memory for decoder_block.1']
    %8 = vsyncpa [#allocation3], 0
    // Predicated region
    $region2: #{decoder_block.1} parent=1 // pred_check
      _
    $region3: #{decoder_block.1} parent=1 // pred_check_branch
      %10 = sbr.rel (0) target = $region5
    $region4: #{decoder_block.1} parent=1 // pred_region
      _
    $region5: #{decoder_block.1} parent=1 // pred_fallthru
      _
    // Predicated region
    $region6: #{decoder_block.1} parent=1 // pred_check
      _
    $region7: #{decoder_block.1} parent=1 // pred_check_branch
      %12 = sbr.rel (0) target = $region9
    $region8: #{decoder_block.1} parent=1 // pred_region
      _
    $region9: #{decoder_block.1} parent=1 // pred_fallthru
      _
    // Predicated region
    $region10: #{decoder_block.1} parent=1 // pred_check
      _
    $region11: #{decoder_block.1} parent=1 // pred_check_branch
      %14 = sbr.rel (0) target = $region13
    $region12: #{decoder_block.1} parent=1 // pred_region
      _
    $region13: #{decoder_block.1} parent=1 // pred_fallthru
      _
    %v15 = vld [vmem:[%s0] sm:$0xff]
    %v16 = vld [vmem:[%s0 + $0x8] sm:$0xff]
    %v17 = vld [vmem:[%s0 + $0x10] sm:$0xff]
    %v18 = vld [vmem:[%s0 + $0x18] sm:$0xff]
    %v19 = vld [vmem:[%s0 + $0x20] sm:$0xff]
    %v20 = vld [vmem:[%s0 + $0x28] sm:$0xff]
    %v21 = vld [vmem:[%s0 + $0x30] sm:$0xff]
    %v22 = vld [vmem:[%s1] sm:$0xff]
    %v23 = vld [vmem:[%s1 + $0x8] sm:$0xff]
    %v24 = vld [vmem:[%s1 + $0x10] sm:$0xff]
    %v25 = vld [vmem:[%s1 + $0x18] sm:$0xff]
    %v26 = vld [vmem:[%s1 + $0x20] sm:$0xff]
    %v27 = vld [vmem:[%s1 + $0x28] sm:$0xff]
    %v28 = vld [vmem:[%s1 + $0x30] sm:$0xff]
    %v29 = vld [vmem:[%s1 + $0x38] sm:$0xff]
    %v30 = vld [vmem:[%s1 + $0x40] sm:$0xff]
    %v31 = vld [vmem:[%s1 + $0x48] sm:$0xff]
    %v32 = vld [vmem:[%s1 + $0x50] sm:$0xff]
    %v33 = vld [vmem:[%s1 + $0x58] sm:$0xff]
    %v34 = vld [vmem:[%s1 + $0x60] sm:$0xff]
    %v35 = vld [vmem:[%s1 + $0x68] sm:$0xff]
    %v36 = vld [vmem:[%s1 + $0x70] sm:$0xff]
    %v37 = vld [vmem:[%s1 + $0x78] sm:$0xff]
    %v38 = vld [vmem:[%s1 + $0x80] sm:$0xff]
    %v39 = vld [vmem:[%s1 + $0x88] sm:$0xff]
    %v40 = vld [vmem:[%s1 + $0x90] sm:$0xff]
    %v41 = vld [vmem:[%s1 + $0x98] sm:$0xff]
    %v42 = vld [vmem:[%s1 + $0xa0] sm:$0xff]
    %v43 = vld [vmem:[%s1 + $0xa8] sm:$0xff]
    %v44 = vld [vmem:[%s1 + $0xb0] sm:$0xff]
    %v45 = vld [vmem:[%s1 + $0xb8] sm:$0xff]
    %v46 = vld [vmem:[%s1 + $0xc0] sm:$0xff]
    %v47 = vld [vmem:[%s1 + $0xc8] sm:$0xff]
    %v48 = vld [vmem:[%s1 + $0xd0] sm:$0xff]
    %v49 = vld [vmem:[%s1 + $0xd8] sm:$0xff]
    %v50 = vld [vmem:[%s2] sm:$0xff]
    %v51 = vld [vmem:[%s2 + $0x8] sm:$0xff]
    %v52 = vld [vmem:[%s2 + $0x10] sm:$0xff]
    %v53 = vld [vmem:[%s2 + $0x18] sm:$0xff]
    %v54 = vld [vmem:[%s2 + $0x20] sm:$0xff]
    %v55 = vld [vmem:[%s2 + $0x28] sm:$0xff]
    %v56 = vld [vmem:[%s2 + $0x30] sm:$0xff]
    %v57 = vld [vmem:[%s2 + $0x38] sm:$0xff]
    %v58 = vld [vmem:[%s2 + $0x40] sm:$0xff]
    %v59 = vld [vmem:[%s2 + $0x48] sm:$0xff]
    %v60 = vld [vmem:[%s2 + $0x50] sm:$0xff]
    %v61 = vld [vmem:[%s2 + $0x58] sm:$0xff]
    %v62 = vld [vmem:[%s2 + $0x60] sm:$0xff]
    %v63 = vld [vmem:[%s2 + $0x68] sm:$0xff]
    %v64 = vld [vmem:[%s2 + $0x70] sm:$0xff]
    %v65 = vld [vmem:[%s2 + $0x78] sm:$0xff]
    %v66 = vld [vmem:[%s2 + $0x80] sm:$0xff]
    %v67 = vld [vmem:[%s2 + $0x88] sm:$0xff]
    %vm68 = vcmask 261120
    %v70 = vsel %vm68, %v15, 0
    %v73 = vsel %vm68, %v19, 0
    %75 = vmatprep.subr.mxu0 0.0
    %76 = vmatpush1.msra.mxu0 %v22
    %77 = vmatprep.subr.mxu0 0.0
    %78 = vmatpush1.msra.mxu0 %v29
    %79 = vmatprep.subr.mxu0 0.0
    %80 = vmatpush1.msra.mxu0 %v36
    %81 = vmatprep.subr.mxu0 0.0
    %82 = vmatpush1.msra.mxu0 %v43
    %83 = vmatprep.subr.mxu0 0.0
    %84 = vmatpush1.msra.mxu0 0.0
    %85 = vmatprep.subr.mxu0 0.0
    %86 = vmatpush1.msra.mxu0 0.0
    %87 = vmatprep.subr.mxu0 0.0
    %88 = vmatpush1.msra.mxu0 0.0
    %89 = vmatprep.subr.mxu0 0.0
    %90 = vmatpush1.msra.mxu0 0.0
    %91 = vmatprep.subr.mxu0 0.0
    %92 = vmatpush1.msra.mxu0 0.0
    %93 = vmatprep.subr.mxu0 0.0
    %94 = vmatpush1.msra.mxu0 0.0
    %95 = vmatprep.subr.mxu0 0.0
    %96 = vmatpush1.msra.mxu0 0.0
    %97 = vmatprep.subr.mxu0 0.0
    %98 = vmatpush1.msra.mxu0 0.0
    %99 = vmatprep.subr.mxu0 0.0
    %100 = vmatpush1.msra.mxu0 0.0
    %101 = vmatprep.subr.mxu0 0.0
    %102 = vmatpush1.msra.mxu0 0.0
    %103 = vmatprep.subr.mxu0 0.0
    %104 = vmatpush1.msra.mxu0 0.0
    %105 = vmatprep.subr.mxu0 0.0
    %106 = vmatpush1.msra.mxu0 0.0
    %107 = vmatprep.subr.mxu0 0.0
    %108 = vmatpush1.msra.mxu0 0.0
    %109 = vmatprep.subr.mxu0 0.0
    %110 = vmatpush1.msra.mxu0 0.0
    %111 = vmatprep.subr.mxu0 0.0
    %112 = vmatpush1.msra.mxu0 0.0
    %113 = vmatprep.subr.mxu0 0.0
    %114 = vmatpush1.msra.mxu0 0.0
    %115 = vmatprep.subr.mxu0 0.0
    %116 = vmatpush1.msra.mxu0 0.0
    %117 = vmatprep.subr.mxu0 0.0
    %118 = vmatpush1.msra.mxu0 0.0
    %119 = vmatprep.subr.mxu0 0.0
    %120 = vmatpush1.msra.mxu0 0.0
    %121 = vmatprep.subr.mxu0 0.0
    %122 = vmatpush1.msra.mxu0 0.0
    %123 = vmatprep.subr.mxu0 0.0
    %124 = vmatpush1.msra.mxu0 0.0
    %125 = vmatprep.subr.mxu0 0.0
    %126 = vmatpush1.msra.mxu0 0.0
    %127 = vmatprep.subr.mxu0 0.0
    %128 = vmatpush1.msra.mxu0 0.0
    %129 = vmatprep.subr.mxu0 0.0
    %130 = vmatpush1.msra.mxu0 0.0
    %131 = vmatprep.subr.mxu0 0.0
    %132 = vmatpush1.msra.mxu0 0.0
    %133 = vmatprep.subr.mxu0 0.0
    %134 = vmatpush1.msra.mxu0 0.0
    %135 = vmatprep.subr.mxu0 0.0
    %136 = vmatpush1.msra.mxu0 0.0
    %137 = vmatprep.subr.mxu0 0.0
    %138 = vmatpush1.msra.mxu0 0.0
    %139 = vmatprep.mubr.f32.mxu0 0.0
    %140 = vmatmul.mubr.f32.gmra.mrb[0].mxu0 %v70
    %v141 = vpop.f32.mrb[0].mxu0
    %v142 = vadd.f32 %v50, %v141
    %v143 = vpop.f32.mrb[0].mxu0
    %144 = vmatprep.mubr.f32.mxu0 0.0
    %145 = vmatmul.mubr.f32.gmra.mrb[0].mxu0 %v73
    %v146 = vpop.f32.mrb[0].mxu0
    %v147 = vadd.f32 %v59, %v146
    %v148 = vpop.f32.mrb[0].mxu0
    %149 = vdwg.mxu0
    %151 = vrot.lane.b32.xlu0 %v142, 96
    %v152 = vpop.permute.xlu0 %151
    %vm153 = vcmask 64512
    %v154 = vsel %vm153, %v142, 0
    %v156 = vsel %vm153, %v152, 0
    %158 = vmatprep.subr.mxu0 0.0
    %159 = vmatpush1.xpose.msra.mxu0 %v156
    %160 = vmatprep.subr.mxu0 0.0
    %161 = vmatpush1.xpose.msra.mxu0 0.0
    %162 = vmatprep.subr.mxu0 0.0
    %163 = vmatpush1.xpose.msra.mxu0 0.0
    %164 = vmatprep.subr.mxu0 0.0
    %165 = vmatpush1.xpose.msra.mxu0 0.0
    %166 = vmatprep.subr.mxu0 0.0
    %167 = vmatpush1.xpose.msra.mxu0 0.0
    %168 = vmatprep.subr.mxu0 0.0
    %169 = vmatpush1.xpose.msra.mxu0 0.0
    %170 = vmatprep.subr.mxu0 0.0
    %171 = vmatpush1.xpose.msra.mxu0 0.0
    %172 = vmatprep.subr.mxu0 0.0
    %173 = vmatpush1.xpose.msra.mxu0 0.0
    %174 = vmatprep.subr.mxu0 0.0
    %175 = vmatpush1.xpose.msra.mxu0 0.0
    %176 = vmatprep.subr.mxu0 0.0
    %177 = vmatpush1.xpose.msra.mxu0 0.0
    %178 = vmatprep.subr.mxu0 0.0
    %179 = vmatpush1.xpose.msra.mxu0 0.0
    %180 = vmatprep.subr.mxu0 0.0
    %181 = vmatpush1.xpose.msra.mxu0 0.0
    %182 = vmatprep.subr.mxu0 0.0
    %183 = vmatpush1.xpose.msra.mxu0 0.0
    %184 = vmatprep.subr.mxu0 0.0
    %185 = vmatpush1.xpose.msra.mxu0 0.0
    %186 = vmatprep.subr.mxu0 0.0
    %187 = vmatpush1.xpose.msra.mxu0 0.0
    %188 = vmatprep.subr.mxu0 0.0
    %189 = vmatpush1.xpose.msra.mxu0 0.0
    %190 = vmatprep.subr.mxu0 0.0
    %191 = vmatpush1.xpose.msra.mxu0 0.0
    %192 = vmatprep.subr.mxu0 0.0
    %193 = vmatpush1.xpose.msra.mxu0 0.0
    %194 = vmatprep.subr.mxu0 0.0
    %195 = vmatpush1.xpose.msra.mxu0 0.0
    %196 = vmatprep.subr.mxu0 0.0
    %197 = vmatpush1.xpose.msra.mxu0 0.0
    %198 = vmatprep.subr.mxu0 0.0
    %199 = vmatpush1.xpose.msra.mxu0 0.0
    %200 = vmatprep.subr.mxu0 0.0
    %201 = vmatpush1.xpose.msra.mxu0 0.0
    %202 = vmatprep.subr.mxu0 0.0
    %203 = vmatpush1.xpose.msra.mxu0 0.0
    %204 = vmatprep.subr.mxu0 0.0
    %205 = vmatpush1.xpose.msra.mxu0 0.0
    %206 = vmatprep.subr.mxu0 0.0
    %207 = vmatpush1.xpose.msra.mxu0 0.0
    %208 = vmatprep.subr.mxu0 0.0
    %209 = vmatpush1.xpose.msra.mxu0 0.0
    %210 = vmatprep.subr.mxu0 0.0
    %211 = vmatpush1.xpose.msra.mxu0 0.0
    %212 = vmatprep.subr.mxu0 0.0
    %213 = vmatpush1.xpose.msra.mxu0 0.0
    %214 = vmatprep.subr.mxu0 0.0
    %215 = vmatpush1.xpose.msra.mxu0 0.0
    %216 = vmatprep.subr.mxu0 0.0
    %217 = vmatpush1.xpose.msra.mxu0 0.0
    %218 = vmatprep.subr.mxu0 0.0
    %219 = vmatpush1.xpose.msra.mxu0 0.0
    %220 = vmatprep.subr.mxu0 0.0
    %221 = vmatpush1.xpose.msra.mxu0 0.0
    %222 = vmatprep.mubr.f32.mxu0 0.0
    %223 = vmatmul.mubr.f32.gmra.mrb[0].mxu0 %v154
    %v224 = vpop.f32.mrb[0].mxu0
    %v225 = vadd.f32 %v18, %v224
    %v226 = vpop.f32.mrb[0].mxu0
    %227 = vdwg.mxu0
    %v228 = vsel %vm153, %v225, -inf
    %229 = vmax.xlane.f32.xlu0 %v228
    %v230 = vpop.xlane.xlu0 %229
    %v231 = vsub.f32 %v225, %v230
    %v232 = vmul.f32 %v231, 1.442695
    %v233 = vpow.pop %v232
    %v234 = vsel %vm153, %v233, 0.0
    %235 = vadd.xlane.f32.xlu0 %v234
    %v236 = vpop.xlane.xlu0 %235
    %v237 = vrcp.pop %v236
    %v238 = vmul.f32 %v233, %v237
    %239 = vrot.lane.b32.xlu0 %v142, 64
    %v240 = vpop.permute.xlu0 %239
    %v243 = vsel %vm153, %v238, 0
    %245 = vmatprep.subr.mxu0 0.0
    %246 = vmatpush1.msra.mxu0 %v240
    %247 = vmatprep.subr.mxu0 0.0
    %248 = vmatpush1.msra.mxu0 0.0
    %249 = vmatprep.subr.mxu0 0.0
    %250 = vmatpush1.msra.mxu0 0.0
    %251 = vmatprep.subr.mxu0 0.0
    %252 = vmatpush1.msra.mxu0 0.0
    %253 = vmatprep.subr.mxu0 0.0
    %254 = vmatpush1.msra.mxu0 0.0
    %255 = vmatprep.subr.mxu0 0.0
    %256 = vmatpush1.msra.mxu0 0.0
    %257 = vmatprep.subr.mxu0 0.0
    %258 = vmatpush1.msra.mxu0 0.0
    %259 = vmatprep.subr.mxu0 0.0
    %260 = vmatpush1.msra.mxu0 0.0
    %261 = vmatprep.subr.mxu0 0.0
    %262 = vmatpush1.msra.mxu0 0.0
    %263 = vmatprep.subr.mxu0 0.0
    %264 = vmatpush1.msra.mxu0 0.0
    %265 = vmatprep.subr.mxu0 0.0
    %266 = vmatpush1.msra.mxu0 0.0
    %267 = vmatprep.subr.mxu0 0.0
    %268 = vmatpush1.msra.mxu0 0.0
    %269 = vmatprep.subr.mxu0 0.0
    %270 = vmatpush1.msra.mxu0 0.0
    %271 = vmatprep.subr.mxu0 0.0
    %272 = vmatpush1.msra.mxu0 0.0
    %273 = vmatprep.subr.mxu0 0.0
    %274 = vmatpush1.msra.mxu0 0.0
    %275 = vmatprep.subr.mxu0 0.0
    %276 = vmatpush1.msra.mxu0 0.0
    %277 = vmatprep.subr.mxu0 0.0
    %278 = vmatpush1.msra.mxu0 0.0
    %279 = vmatprep.subr.mxu0 0.0
    %280 = vmatpush1.msra.mxu0 0.0
    %281 = vmatprep.subr.mxu0 0.0
    %282 = vmatpush1.msra.mxu0 0.0
    %283 = vmatprep.subr.mxu0 0.0
    %284 = vmatpush1.msra.mxu0 0.0
    %285 = vmatprep.subr.mxu0 0.0
    %286 = vmatpush1.msra.mxu0 0.0
    %287 = vmatprep.subr.mxu0 0.0
    %288 = vmatpush1.msra.mxu0 0.0
    %289 = vmatprep.subr.mxu0 0.0
    %290 = vmatpush1.msra.mxu0 0.0
    %291 = vmatprep.subr.mxu0 0.0
    %292 = vmatpush1.msra.mxu0 0.0
    %293 = vmatprep.subr.mxu0 0.0
    %294 = vmatpush1.msra.mxu0 0.0
    %295 = vmatprep.subr.mxu0 0.0
    %296 = vmatpush1.msra.mxu0 0.0
    %297 = vmatprep.subr.mxu0 0.0
    %298 = vmatpush1.msra.mxu0 0.0
    %299 = vmatprep.subr.mxu0 0.0
    %300 = vmatpush1.msra.mxu0 0.0
    %301 = vmatprep.subr.mxu0 0.0
    %302 = vmatpush1.msra.mxu0 0.0
    %303 = vmatprep.subr.mxu0 0.0
    %304 = vmatpush1.msra.mxu0 0.0
    %305 = vmatprep.subr.mxu0 0.0
    %306 = vmatpush1.msra.mxu0 0.0
    %307 = vmatprep.subr.mxu0 0.0
    %308 = vmatpush1.msra.mxu0 0.0
    %309 = vmatprep.mubr.f32.mxu0 0.0
    %310 = vmatmul.mubr.f32.gmra.mrb[0].mxu0 %v243
    %v311 = vpop.f32.mrb[0].mxu0
    %v312 = vadd.f32 0.0, %v311
    %v313 = vpop.f32.mrb[0].mxu0
    %314 = vdwg.mxu0
    %315 = vrot.lane.b32.xlu0 %v142, 120
    %v316 = vpop.permute.xlu0 %315
    %317 = vrot.lane.b32.xlu0 %v142, 88
    %v318 = vpop.permute.xlu0 %317
    %v319 = vsel %vm153, %v316, 0
    %v321 = vsel %vm153, %v318, 0
    %323 = vmatprep.subr.mxu0 0.0
    %324 = vmatpush1.xpose.msra.mxu0 %v321
    %325 = vmatprep.subr.mxu0 0.0
    %326 = vmatpush1.xpose.msra.mxu0 0.0
    %327 = vmatprep.subr.mxu0 0.0
    %328 = vmatpush1.xpose.msra.mxu0 0.0
    %329 = vmatprep.subr.mxu0 0.0
    %330 = vmatpush1.xpose.msra.mxu0 0.0
    %331 = vmatprep.subr.mxu0 0.0
    %332 = vmatpush1.xpose.msra.mxu0 0.0
    %333 = vmatprep.subr.mxu0 0.0
    %334 = vmatpush1.xpose.msra.mxu0 0.0
    %335 = vmatprep.subr.mxu0 0.0
    %336 = vmatpush1.xpose.msra.mxu0 0.0
    %337 = vmatprep.subr.mxu0 0.0
    %338 = vmatpush1.xpose.msra.mxu0 0.0
    %339 = vmatprep.subr.mxu0 0.0
    %340 = vmatpush1.xpose.msra.mxu0 0.0
    %341 = vmatprep.subr.mxu0 0.0
    %342 = vmatpush1.xpose.msra.mxu0 0.0
    %343 = vmatprep.subr.mxu0 0.0
    %344 = vmatpush1.xpose.msra.mxu0 0.0
    %345 = vmatprep.subr.mxu0 0.0
    %346 = vmatpush1.xpose.msra.mxu0 0.0
    %347 = vmatprep.subr.mxu0 0.0
    %348 = vmatpush1.xpose.msra.mxu0 0.0
    %349 = vmatprep.subr.mxu0 0.0
    %350 = vmatpush1.xpose.msra.mxu0 0.0
    %351 = vmatprep.subr.mxu0 0.0
    %352 = vmatpush1.xpose.msra.mxu0 0.0
    %353 = vmatprep.subr.mxu0 0.0
    %354 = vmatpush1.xpose.msra.mxu0 0.0
    %355 = vmatprep.subr.mxu0 0.0
    %356 = vmatpush1.xpose.msra.mxu0 0.0
    %357 = vmatprep.subr.mxu0 0.0
    %358 = vmatpush1.xpose.msra.mxu0 0.0
    %359 = vmatprep.subr.mxu0 0.0
    %360 = vmatpush1.xpose.msra.mxu0 0.0
    %361 = vmatprep.subr.mxu0 0.0
    %362 = vmatpush1.xpose.msra.mxu0 0.0
    %363 = vmatprep.subr.mxu0 0.0
    %364 = vmatpush1.xpose.msra.mxu0 0.0
    %365 = vmatprep.subr.mxu0 0.0
    %366 = vmatpush1.xpose.msra.mxu0 0.0
    %367 = vmatprep.subr.mxu0 0.0
    %368 = vmatpush1.xpose.msra.mxu0 0.0
    %369 = vmatprep.subr.mxu0 0.0
    %370 = vmatpush1.xpose.msra.mxu0 0.0
    %371 = vmatprep.subr.mxu0 0.0
    %372 = vmatpush1.xpose.msra.mxu0 0.0
    %373 = vmatprep.subr.mxu0 0.0
    %374 = vmatpush1.xpose.msra.mxu0 0.0
    %375 = vmatprep.subr.mxu0 0.0
    %376 = vmatpush1.xpose.msra.mxu0 0.0
    %377 = vmatprep.subr.mxu0 0.0
    %378 = vmatpush1.xpose.msra.mxu0 0.0
    %379 = vmatprep.subr.mxu0 0.0
    %380 = vmatpush1.xpose.msra.mxu0 0.0
    %381 = vmatprep.subr.mxu0 0.0
    %382 = vmatpush1.xpose.msra.mxu0 0.0
    %383 = vmatprep.subr.mxu0 0.0
    %384 = vmatpush1.xpose.msra.mxu0 0.0
    %385 = vmatprep.subr.mxu0 0.0
    %386 = vmatpush1.xpose.msra.mxu0 0.0
    %387 = vmatprep.mubr.f32.mxu0 0.0
    %388 = vmatmul.mubr.f32.gmra.mrb[0].mxu0 %v319
    %v389 = vpop.f32.mrb[0].mxu0
    %v390 = vadd.f32 %v18, %v389
    %v391 = vpop.f32.mrb[0].mxu0
    %392 = vdwg.mxu0
    %v393 = vsel %vm153, %v390, -inf
    %394 = vmax.xlane.f32.xlu0 %v393
    %v395 = vpop.xlane.xlu0 %394
    %v396 = vsub.f32 %v390, %v395
    %v397 = vmul.f32 %v396, 1.442695
    %v398 = vpow.pop %v397
    %v399 = vsel %vm153, %v398, 0.0
    %400 = vadd.xlane.f32.xlu0 %v399
    %v401 = vpop.xlane.xlu0 %400
    %v402 = vrcp.pop %v401
    %v403 = vmul.f32 %v398, %v402
    %404 = vrot.lane.b32.xlu0 %v142, 56
    %v405 = vpop.permute.xlu0 %404
    %v408 = vsel %vm153, %v403, 0
    %410 = vmatprep.subr.mxu0 0.0
    %411 = vmatpush1.msra.mxu0 %v405
    %412 = vmatprep.subr.mxu0 0.0
    %413 = vmatpush1.msra.mxu0 0.0
    %414 = vmatprep.subr.mxu0 0.0
    %415 = vmatpush1.msra.mxu0 0.0
    %416 = vmatprep.subr.mxu0 0.0
    %417 = vmatpush1.msra.mxu0 0.0
    %418 = vmatprep.subr.mxu0 0.0
    %419 = vmatpush1.msra.mxu0 0.0
    %420 = vmatprep.subr.mxu0 0.0
    %421 = vmatpush1.msra.mxu0 0.0
    %422 = vmatprep.subr.mxu0 0.0
    %423 = vmatpush1.msra.mxu0 0.0
    %424 = vmatprep.subr.mxu0 0.0
    %425 = vmatpush1.msra.mxu0 0.0
    %426 = vmatprep.subr.mxu0 0.0
    %427 = vmatpush1.msra.mxu0 0.0
    %428 = vmatprep.subr.mxu0 0.0
    %429 = vmatpush1.msra.mxu0 0.0
    %430 = vmatprep.subr.mxu0 0.0
    %431 = vmatpush1.msra.mxu0 0.0
    %432 = vmatprep.subr.mxu0 0.0
    %433 = vmatpush1.msra.mxu0 0.0
    %434 = vmatprep.subr.mxu0 0.0
    %435 = vmatpush1.msra.mxu0 0.0
    %436 = vmatprep.subr.mxu0 0.0
    %437 = vmatpush1.msra.mxu0 0.0
    %438 = vmatprep.subr.mxu0 0.0
    %439 = vmatpush1.msra.mxu0 0.0
    %440 = vmatprep.subr.mxu0 0.0
    %441 = vmatpush1.msra.mxu0 0.0
    %442 = vmatprep.subr.mxu0 0.0
    %443 = vmatpush1.msra.mxu0 0.0
    %444 = vmatprep.subr.mxu0 0.0
    %445 = vmatpush1.msra.mxu0 0.0
    %446 = vmatprep.subr.mxu0 0.0
    %447 = vmatpush1.msra.mxu0 0.0
    %448 = vmatprep.subr.mxu0 0.0
    %449 = vmatpush1.msra.mxu0 0.0
    %450 = vmatprep.subr.mxu0 0.0
    %451 = vmatpush1.msra.mxu0 0.0
    %452 = vmatprep.subr.mxu0 0.0
    %453 = vmatpush1.msra.mxu0 0.0
    %454 = vmatprep.subr.mxu0 0.0
    %455 = vmatpush1.msra.mxu0 0.0
    %456 = vmatprep.subr.mxu0 0.0
    %457 = vmatpush1.msra.mxu0 0.0
    %458 = vmatprep.subr.mxu0 0.0
    %459 = vmatpush1.msra.mxu0 0.0
    %460 = vmatprep.subr.mxu0 0.0
    %461 = vmatpush1.msra.mxu0 0.0
    %462 = vmatprep.subr.mxu0 0.0
    %463 = vmatpush1.msra.mxu0 0.0
    %464 = vmatprep.subr.mxu0 0.0
    %465 = vmatpush1.msra.mxu0 0.0
    %466 = vmatprep.subr.mxu0 0.0
    %467 = vmatpush1.msra.mxu0 0.0
    %468 = vmatprep.subr.mxu0 0.0
    %469 = vmatpush1.msra.mxu0 0.0
    %470 = vmatprep.subr.mxu0 0.0
    %471 = vmatpush1.msra.mxu0 0.0
    %472 = vmatprep.subr.mxu0 0.0
    %473 = vmatpush1.msra.mxu0 0.0
    %474 = vmatprep.mubr.f32.mxu0 0.0
    %475 = vmatmul.mubr.f32.gmra.mrb[0].mxu0 %v408
    %v476 = vpop.f32.mrb[0].mxu0
    %v477 = vadd.f32 0.0, %v476
    %v478 = vpop.f32.mrb[0].mxu0
    %479 = vdwg.mxu0
    %v481 = vsel %vm153, %v477, 0
    %483 = vmatprep.subr.mxu0 0.0
    %484 = vmatpush1.msra.mxu0 %v30
    %485 = vmatprep.subr.mxu0 0.0
    %486 = vmatpush1.msra.mxu0 0.0
    %487 = vmatprep.subr.mxu0 0.0
    %488 = vmatpush1.msra.mxu0 0.0
    %489 = vmatprep.subr.mxu0 0.0
    %490 = vmatpush1.msra.mxu0 0.0
    %491 = vmatprep.subr.mxu0 0.0
    %492 = vmatpush1.msra.mxu0 0.0
    %493 = vmatprep.subr.mxu0 0.0
    %494 = vmatpush1.msra.mxu0 0.0
    %495 = vmatprep.subr.mxu0 0.0
    %496 = vmatpush1.msra.mxu0 0.0
    %497 = vmatprep.subr.mxu0 0.0
    %498 = vmatpush1.msra.mxu0 0.0
    %499 = vmatprep.subr.mxu0 0.0
    %500 = vmatpush1.msra.mxu0 0.0
    %501 = vmatprep.subr.mxu0 0.0
    %502 = vmatpush1.msra.mxu0 0.0
    %503 = vmatprep.subr.mxu0 0.0
    %504 = vmatpush1.msra.mxu0 0.0
    %505 = vmatprep.subr.mxu0 0.0
    %506 = vmatpush1.msra.mxu0 0.0
    %507 = vmatprep.subr.mxu0 0.0
    %508 = vmatpush1.msra.mxu0 0.0
    %509 = vmatprep.subr.mxu0 0.0
    %510 = vmatpush1.msra.mxu0 0.0
    %511 = vmatprep.subr.mxu0 0.0
    %512 = vmatpush1.msra.mxu0 0.0
    %513 = vmatprep.subr.mxu0 0.0
    %514 = vmatpush1.msra.mxu0 0.0
    %515 = vmatprep.subr.mxu0 0.0
    %516 = vmatpush1.msra.mxu0 0.0
    %517 = vmatprep.subr.mxu0 0.0
    %518 = vmatpush1.msra.mxu0 0.0
    %519 = vmatprep.subr.mxu0 0.0
    %520 = vmatpush1.msra.mxu0 0.0
    %521 = vmatprep.subr.mxu0 0.0
    %522 = vmatpush1.msra.mxu0 0.0
    %523 = vmatprep.subr.mxu0 0.0
    %524 = vmatpush1.msra.mxu0 0.0
    %525 = vmatprep.subr.mxu0 0.0
    %526 = vmatpush1.msra.mxu0 0.0
    %527 = vmatprep.subr.mxu0 0.0
    %528 = vmatpush1.msra.mxu0 0.0
    %529 = vmatprep.subr.mxu0 0.0
    %530 = vmatpush1.msra.mxu0 0.0
    %531 = vmatprep.subr.mxu0 0.0
    %532 = vmatpush1.msra.mxu0 0.0
    %533 = vmatprep.subr.mxu0 0.0
    %534 = vmatpush1.msra.mxu0 0.0
    %535 = vmatprep.subr.mxu0 0.0
    %536 = vmatpush1.msra.mxu0 0.0
    %537 = vmatprep.subr.mxu0 0.0
    %538 = vmatpush1.msra.mxu0 0.0
    %539 = vmatprep.subr.mxu0 0.0
    %540 = vmatpush1.msra.mxu0 0.0
    %541 = vmatprep.subr.mxu0 0.0
    %542 = vmatpush1.msra.mxu0 0.0
    %543 = vmatprep.subr.mxu0 0.0
    %544 = vmatpush1.msra.mxu0 0.0
    %545 = vmatprep.subr.mxu0 0.0
    %546 = vmatpush1.msra.mxu0 0.0
    %547 = vmatprep.mubr.f32.mxu0 0.0
    %548 = vmatmul.mubr.f32.gmra.mrb[0].mxu0 %v481
    %v549 = vpop.f32.mrb[0].mxu0
    %v550 = vadd.f32 0.0, %v549
    %v551 = vpop.f32.mrb[0].mxu0
    %552 = vdwg.mxu0
    %v554 = vsel %vm153, %v312, 0
    %556 = vmatprep.subr.mxu0 0.0
    %557 = vmatpush1.msra.mxu0 %v23
    %558 = vmatprep.subr.mxu0 0.0
    %559 = vmatpush1.msra.mxu0 0.0
    %560 = vmatprep.subr.mxu0 0.0
    %561 = vmatpush1.msra.mxu0 0.0
    %562 = vmatprep.subr.mxu0 0.0
    %563 = vmatpush1.msra.mxu0 0.0
    %564 = vmatprep.subr.mxu0 0.0
    %565 = vmatpush1.msra.mxu0 0.0
    %566 = vmatprep.subr.mxu0 0.0
    %567 = vmatpush1.msra.mxu0 0.0
    %568 = vmatprep.subr.mxu0 0.0
    %569 = vmatpush1.msra.mxu0 0.0
    %570 = vmatprep.subr.mxu0 0.0
    %571 = vmatpush1.msra.mxu0 0.0
    %572 = vmatprep.subr.mxu0 0.0
    %573 = vmatpush1.msra.mxu0 0.0
    %574 = vmatprep.subr.mxu0 0.0
    %575 = vmatpush1.msra.mxu0 0.0
    %576 = vmatprep.subr.mxu0 0.0
    %577 = vmatpush1.msra.mxu0 0.0
    %578 = vmatprep.subr.mxu0 0.0
    %579 = vmatpush1.msra.mxu0 0.0
    %580 = vmatprep.subr.mxu0 0.0
    %581 = vmatpush1.msra.mxu0 0.0
    %582 = vmatprep.subr.mxu0 0.0
    %583 = vmatpush1.msra.mxu0 0.0
    %584 = vmatprep.subr.mxu0 0.0
    %585 = vmatpush1.msra.mxu0 0.0
    %586 = vmatprep.subr.mxu0 0.0
    %587 = vmatpush1.msra.mxu0 0.0
    %588 = vmatprep.subr.mxu0 0.0
    %589 = vmatpush1.msra.mxu0 0.0
    %590 = vmatprep.subr.mxu0 0.0
    %591 = vmatpush1.msra.mxu0 0.0
    %592 = vmatprep.subr.mxu0 0.0
    %593 = vmatpush1.msra.mxu0 0.0
    %594 = vmatprep.subr.mxu0 0.0
    %595 = vmatpush1.msra.mxu0 0.0
    %596 = vmatprep.subr.mxu0 0.0
    %597 = vmatpush1.msra.mxu0 0.0
    %598 = vmatprep.subr.mxu0 0.0
    %599 = vmatpush1.msra.mxu0 0.0
    %600 = vmatprep.subr.mxu0 0.0
    %601 = vmatpush1.msra.mxu0 0.0
    %602 = vmatprep.subr.mxu0 0.0
    %603 = vmatpush1.msra.mxu0 0.0
    %604 = vmatprep.subr.mxu0 0.0
    %605 = vmatpush1.msra.mxu0 0.0
    %606 = vmatprep.subr.mxu0 0.0
    %607 = vmatpush1.msra.mxu0 0.0
    %608 = vmatprep.subr.mxu0 0.0
    %609 = vmatpush1.msra.mxu0 0.0
    %610 = vmatprep.subr.mxu0 0.0
    %611 = vmatpush1.msra.mxu0 0.0
    %612 = vmatprep.subr.mxu0 0.0
    %613 = vmatpush1.msra.mxu0 0.0
    %614 = vmatprep.subr.mxu0 0.0
    %615 = vmatpush1.msra.mxu0 0.0
    %616 = vmatprep.subr.mxu0 0.0
    %617 = vmatpush1.msra.mxu0 0.0
    %618 = vmatprep.subr.mxu0 0.0
    %619 = vmatpush1.msra.mxu0 0.0
    %620 = vmatprep.mubr.f32.mxu0 0.0
    %621 = vmatmul.mubr.f32.gmra.mrb[0].mxu0 %v554
    %v622 = vpop.f32.mrb[0].mxu0
    %v623 = vadd.f32 %v550, %v622
    %v624 = vpop.f32.mrb[0].mxu0
    %625 = vdwg.mxu0
    %626 = vrot.lane.b32.xlu0 %v142, 112
    %v627 = vpop.permute.xlu0 %626
    %628 = vrot.lane.b32.xlu0 %v142, 80
    %v629 = vpop.permute.xlu0 %628
    %v630 = vsel %vm153, %v627, 0
    %v632 = vsel %vm153, %v629, 0
    %634 = vmatprep.subr.mxu0 0.0
    %635 = vmatpush1.xpose.msra.mxu0 %v632
    %636 = vmatprep.subr.mxu0 0.0
    %637 = vmatpush1.xpose.msra.mxu0 0.0
    %638 = vmatprep.subr.mxu0 0.0
    %639 = vmatpush1.xpose.msra.mxu0 0.0
    %640 = vmatprep.subr.mxu0 0.0
    %641 = vmatpush1.xpose.msra.mxu0 0.0
    %642 = vmatprep.subr.mxu0 0.0
    %643 = vmatpush1.xpose.msra.mxu0 0.0
    %644 = vmatprep.subr.mxu0 0.0
    %645 = vmatpush1.xpose.msra.mxu0 0.0
    %646 = vmatprep.subr.mxu0 0.0
    %647 = vmatpush1.xpose.msra.mxu0 0.0
    %648 = vmatprep.subr.mxu0 0.0
    %649 = vmatpush1.xpose.msra.mxu0 0.0
    %650 = vmatprep.subr.mxu0 0.0
    %651 = vmatpush1.xpose.msra.mxu0 0.0
    %652 = vmatprep.subr.mxu0 0.0
    %653 = vmatpush1.xpose.msra.mxu0 0.0
    %654 = vmatprep.subr.mxu0 0.0
    %655 = vmatpush1.xpose.msra.mxu0 0.0
    %656 = vmatprep.subr.mxu0 0.0
    %657 = vmatpush1.xpose.msra.mxu0 0.0
    %658 = vmatprep.subr.mxu0 0.0
    %659 = vmatpush1.xpose.msra.mxu0 0.0
    %660 = vmatprep.subr.mxu0 0.0
    %661 = vmatpush1.xpose.msra.mxu0 0.0
    %662 = vmatprep.subr.mxu0 0.0
    %663 = vmatpush1.xpose.msra.mxu0 0.0
    %664 = vmatprep.subr.mxu0 0.0
    %665 = vmatpush1.xpose.msra.mxu0 0.0
    %666 = vmatprep.subr.mxu0 0.0
    %667 = vmatpush1.xpose.msra.mxu0 0.0
    %668 = vmatprep.subr.mxu0 0.0
    %669 = vmatpush1.xpose.msra.mxu0 0.0
    %670 = vmatprep.subr.mxu0 0.0
    %671 = vmatpush1.xpose.msra.mxu0 0.0
    %672 = vmatprep.subr.mxu0 0.0
    %673 = vmatpush1.xpose.msra.mxu0 0.0
    %674 = vmatprep.subr.mxu0 0.0
    %675 = vmatpush1.xpose.msra.mxu0 0.0
    %676 = vmatprep.subr.mxu0 0.0
    %677 = vmatpush1.xpose.msra.mxu0 0.0
    %678 = vmatprep.subr.mxu0 0.0
    %679 = vmatpush1.xpose.msra.mxu0 0.0
    %680 = vmatprep.subr.mxu0 0.0
    %681 = vmatpush1.xpose.msra.mxu0 0.0
    %682 = vmatprep.subr.mxu0 0.0
    %683 = vmatpush1.xpose.msra.mxu0 0.0
    %684 = vmatprep.subr.mxu0 0.0
    %685 = vmatpush1.xpose.msra.mxu0 0.0
    %686 = vmatprep.subr.mxu0 0.0
    %687 = vmatpush1.xpose.msra.mxu0 0.0
    %688 = vmatprep.subr.mxu0 0.0
    %689 = vmatpush1.xpose.msra.mxu0 0.0
    %690 = vmatprep.subr.mxu0 0.0
    %691 = vmatpush1.xpose.msra.mxu0 0.0
    %692 = vmatprep.subr.mxu0 0.0
    %693 = vmatpush1.xpose.msra.mxu0 0.0
    %694 = vmatprep.subr.mxu0 0.0
    %695 = vmatpush1.xpose.msra.mxu0 0.0
    %696 = vmatprep.subr.mxu0 0.0
    %697 = vmatpush1.xpose.msra.mxu0 0.0
    %698 = vmatprep.mubr.f32.mxu0 0.0
    %699 = vmatmul.mubr.f32.gmra.mrb[0].mxu0 %v630
    %v700 = vpop.f32.mrb[0].mxu0
    %v701 = vadd.f32 %v18, %v700
    %v702 = vpop.f32.mrb[0].mxu0
    %703 = vdwg.mxu0
    %v704 = vsel %vm153, %v701, -inf
    %705 = vmax.xlane.f32.xlu0 %v704
    %v706 = vpop.xlane.xlu0 %705
    %v707 = vsub.f32 %v701, %v706
    %v708 = vmul.f32 %v707, 1.442695
    %v709 = vpow.pop %v708
    %v710 = vsel %vm153, %v709, 0.0
    %711 = vadd.xlane.f32.xlu0 %v710
    %v712 = vpop.xlane.xlu0 %711
    %v713 = vrcp.pop %v712
    %v714 = vmul.f32 %v709, %v713
    %715 = vrot.lane.b32.xlu0 %v142, 48
    %v716 = vpop.permute.xlu0 %715
    %v719 = vsel %vm153, %v714, 0
    %721 = vmatprep.subr.mxu0 0.0
    %722 = vmatpush1.msra.mxu0 %v716
    %723 = vmatprep.subr.mxu0 0.0
    %724 = vmatpush1.msra.mxu0 0.0
    %725 = vmatprep.subr.mxu0 0.0
    %726 = vmatpush1.msra.mxu0 0.0
    %727 = vmatprep.subr.mxu0 0.0
    %728 = vmatpush1.msra.mxu0 0.0
    %729 = vmatprep.subr.mxu0 0.0
    %730 = vmatpush1.msra.mxu0 0.0
    %731 = vmatprep.subr.mxu0 0.0
    %732 = vmatpush1.msra.mxu0 0.0
    %733 = vmatprep.subr.mxu0 0.0
    %734 = vmatpush1.msra.mxu0 0.0
    %735 = vmatprep.subr.mxu0 0.0
    %736 = vmatpush1.msra.mxu0 0.0
    %737 = vmatprep.subr.mxu0 0.0
    %738 = vmatpush1.msra.mxu0 0.0
    %739 = vmatprep.subr.mxu0 0.0
    %740 = vmatpush1.msra.mxu0 0.0
    %741 = vmatprep.subr.mxu0 0.0
    %742 = vmatpush1.msra.mxu0 0.0
    %743 = vmatprep.subr.mxu0 0.0
    %744 = vmatpush1.msra.mxu0 0.0
    %745 = vmatprep.subr.mxu0 0.0
    %746 = vmatpush1.msra.mxu0 0.0
    %747 = vmatprep.subr.mxu0 0.0
    %748 = vmatpush1.msra.mxu0 0.0
    %749 = vmatprep.subr.mxu0 0.0
    %750 = vmatpush1.msra.mxu0 0.0
    %751 = vmatprep.subr.mxu0 0.0
    %752 = vmatpush1.msra.mxu0 0.0
    %753 = vmatprep.subr.mxu0 0.0
    %754 = vmatpush1.msra.mxu0 0.0
    %755 = vmatprep.subr.mxu0 0.0
    %756 = vmatpush1.msra.mxu0 0.0
    %757 = vmatprep.subr.mxu0 0.0
    %758 = vmatpush1.msra.mxu0 0.0
    %759 = vmatprep.subr.mxu0 0.0
    %760 = vmatpush1.msra.mxu0 0.0
    %761 = vmatprep.subr.mxu0 0.0
    %762 = vmatpush1.msra.mxu0 0.0
    %763 = vmatprep.subr.mxu0 0.0
    %764 = vmatpush1.msra.mxu0 0.0
    %765 = vmatprep.subr.mxu0 0.0
    %766 = vmatpush1.msra.mxu0 0.0
    %767 = vmatprep.subr.mxu0 0.0
    %768 = vmatpush1.msra.mxu0 0.0
    %769 = vmatprep.subr.mxu0 0.0
    %770 = vmatpush1.msra.mxu0 0.0
    %771 = vmatprep.subr.mxu0 0.0
    %772 = vmatpush1.msra.mxu0 0.0
    %773 = vmatprep.subr.mxu0 0.0
    %774 = vmatpush1.msra.mxu0 0.0
    %775 = vmatprep.subr.mxu0 0.0
    %776 = vmatpush1.msra.mxu0 0.0
    %777 = vmatprep.subr.mxu0 0.0
    %778 = vmatpush1.msra.mxu0 0.0
    %779 = vmatprep.subr.mxu0 0.0
    %780 = vmatpush1.msra.mxu0 0.0
    %781 = vmatprep.subr.mxu0 0.0
    %782 = vmatpush1.msra.mxu0 0.0
    %783 = vmatprep.subr.mxu0 0.0
    %784 = vmatpush1.msra.mxu0 0.0
    %785 = vmatprep.mubr.f32.mxu0 0.0
    %786 = vmatmul.mubr.f32.gmra.mrb[0].mxu0 %v719
    %v787 = vpop.f32.mrb[0].mxu0
    %v788 = vadd.f32 0.0, %v787
    %v789 = vpop.f32.mrb[0].mxu0
    %790 = vdwg.mxu0
    %v792 = vsel %vm153, %v788, 0
    %794 = vmatprep.subr.mxu0 0.0
    %795 = vmatpush1.msra.mxu0 %v37
    %796 = vmatprep.subr.mxu0 0.0
    %797 = vmatpush1.msra.mxu0 0.0
    %798 = vmatprep.subr.mxu0 0.0
    %799 = vmatpush1.msra.mxu0 0.0
    %800 = vmatprep.subr.mxu0 0.0
    %801 = vmatpush1.msra.mxu0 0.0
    %802 = vmatprep.subr.mxu0 0.0
    %803 = vmatpush1.msra.mxu0 0.0
    %804 = vmatprep.subr.mxu0 0.0
    %805 = vmatpush1.msra.mxu0 0.0
    %806 = vmatprep.subr.mxu0 0.0
    %807 = vmatpush1.msra.mxu0 0.0
    %808 = vmatprep.subr.mxu0 0.0
    %809 = vmatpush1.msra.mxu0 0.0
    %810 = vmatprep.subr.mxu0 0.0
    %811 = vmatpush1.msra.mxu0 0.0
    %812 = vmatprep.subr.mxu0 0.0
    %813 = vmatpush1.msra.mxu0 0.0
    %814 = vmatprep.subr.mxu0 0.0
    %815 = vmatpush1.msra.mxu0 0.0
    %816 = vmatprep.subr.mxu0 0.0
    %817 = vmatpush1.msra.mxu0 0.0
    %818 = vmatprep.subr.mxu0 0.0
    %819 = vmatpush1.msra.mxu0 0.0
    %820 = vmatprep.subr.mxu0 0.0
    %821 = vmatpush1.msra.mxu0 0.0
    %822 = vmatprep.subr.mxu0 0.0
    %823 = vmatpush1.msra.mxu0 0.0
    %824 = vmatprep.subr.mxu0 0.0
    %825 = vmatpush1.msra.mxu0 0.0
    %826 = vmatprep.subr.mxu0 0.0
    %827 = vmatpush1.msra.mxu0 0.0
    %828 = vmatprep.subr.mxu0 0.0
    %829 = vmatpush1.msra.mxu0 0.0
    %830 = vmatprep.subr.mxu0 0.0
    %831 = vmatpush1.msra.mxu0 0.0
    %832 = vmatprep.subr.mxu0 0.0
    %833 = vmatpush1.msra.mxu0 0.0
    %834 = vmatprep.subr.mxu0 0.0
    %835 = vmatpush1.msra.mxu0 0.0
    %836 = vmatprep.subr.mxu0 0.0
    %837 = vmatpush1.msra.mxu0 0.0
    %838 = vmatprep.subr.mxu0 0.0
    %839 = vmatpush1.msra.mxu0 0.0
    %840 = vmatprep.subr.mxu0 0.0
    %841 = vmatpush1.msra.mxu0 0.0
    %842 = vmatprep.subr.mxu0 0.0
    %843 = vmatpush1.msra.mxu0 0.0
    %844 = vmatprep.subr.mxu0 0.0
    %845 = vmatpush1.msra.mxu0 0.0
    %846 = vmatprep.subr.mxu0 0.0
    %847 = vmatpush1.msra.mxu0 0.0
    %848 = vmatprep.subr.mxu0 0.0
    %849 = vmatpush1.msra.mxu0 0.0
    %850 = vmatprep.subr.mxu0 0.0
    %851 = vmatpush1.msra.mxu0 0.0
    %852 = vmatprep.subr.mxu0 0.0
    %853 = vmatpush1.msra.mxu0 0.0
    %854 = vmatprep.subr.mxu0 0.0
    %855 = vmatpush1.msra.mxu0 0.0
    %856 = vmatprep.subr.mxu0 0.0
    %857 = vmatpush1.msra.mxu0 0.0
    %858 = vmatprep.mubr.f32.mxu0 0.0
    %859 = vmatmul.mubr.f32.gmra.mrb[0].mxu0 %v792
    %v860 = vpop.f32.mrb[0].mxu0
    %v861 = vadd.f32 0.0, %v860
    %v862 = vpop.f32.mrb[0].mxu0
    %863 = vdwg.mxu0
    %v864 = vadd.f32 %v623, %v861
    %865 = vrot.lane.b32.xlu0 %v142, 104
    %v866 = vpop.permute.xlu0 %865
    %867 = vrot.lane.b32.xlu0 %v142, 72
    %v868 = vpop.permute.xlu0 %867
    %v869 = vsel %vm153, %v866, 0
    %v871 = vsel %vm153, %v868, 0
    %873 = vmatprep.subr.mxu0 0.0
    %874 = vmatpush1.xpose.msra.mxu0 %v871
    %875 = vmatprep.subr.mxu0 0.0
    %876 = vmatpush1.xpose.msra.mxu0 0.0
    %877 = vmatprep.subr.mxu0 0.0
    %878 = vmatpush1.xpose.msra.mxu0 0.0
    %879 = vmatprep.subr.mxu0 0.0
    %880 = vmatpush1.xpose.msra.mxu0 0.0
    %881 = vmatprep.subr.mxu0 0.0
    %882 = vmatpush1.xpose.msra.mxu0 0.0
    %883 = vmatprep.subr.mxu0 0.0
    %884 = vmatpush1.xpose.msra.mxu0 0.0
    %885 = vmatprep.subr.mxu0 0.0
    %886 = vmatpush1.xpose.msra.mxu0 0.0
    %887 = vmatprep.subr.mxu0 0.0
    %888 = vmatpush1.xpose.msra.mxu0 0.0
    %889 = vmatprep.subr.mxu0 0.0
    %890 = vmatpush1.xpose.msra.mxu0 0.0
    %891 = vmatprep.subr.mxu0 0.0
    %892 = vmatpush1.xpose.msra.mxu0 0.0
    %893 = vmatprep.subr.mxu0 0.0
    %894 = vmatpush1.xpose.msra.mxu0 0.0
    %895 = vmatprep.subr.mxu0 0.0
    %896 = vmatpush1.xpose.msra.mxu0 0.0
    %897 = vmatprep.subr.mxu0 0.0
    %898 = vmatpush1.xpose.msra.mxu0 0.0
    %899 = vmatprep.subr.mxu0 0.0
    %900 = vmatpush1.xpose.msra.mxu0 0.0
    %901 = vmatprep.subr.mxu0 0.0
    %902 = vmatpush1.xpose.msra.mxu0 0.0
    %903 = vmatprep.subr.mxu0 0.0
    %904 = vmatpush1.xpose.msra.mxu0 0.0
    %905 = vmatprep.subr.mxu0 0.0
    %906 = vmatpush1.xpose.msra.mxu0 0.0
    %907 = vmatprep.subr.mxu0 0.0
    %908 = vmatpush1.xpose.msra.mxu0 0.0
    %909 = vmatprep.subr.mxu0 0.0
    %910 = vmatpush1.xpose.msra.mxu0 0.0
    %911 = vmatprep.subr.mxu0 0.0
    %912 = vmatpush1.xpose.msra.mxu0 0.0
    %913 = vmatprep.subr.mxu0 0.0
    %914 = vmatpush1.xpose.msra.mxu0 0.0
    %915 = vmatprep.subr.mxu0 0.0
    %916 = vmatpush1.xpose.msra.mxu0 0.0
    %917 = vmatprep.subr.mxu0 0.0
    %918 = vmatpush1.xpose.msra.mxu0 0.0
    %919 = vmatprep.subr.mxu0 0.0
    %920 = vmatpush1.xpose.msra.mxu0 0.0
    %921 = vmatprep.subr.mxu0 0.0
    %922 = vmatpush1.xpose.msra.mxu0 0.0
    %923 = vmatprep.subr.mxu0 0.0
    %924 = vmatpush1.xpose.msra.mxu0 0.0
    %925 = vmatprep.subr.mxu0 0.0
    %926 = vmatpush1.xpose.msra.mxu0 0.0
    %927 = vmatprep.subr.mxu0 0.0
    %928 = vmatpush1.xpose.msra.mxu0 0.0
    %929 = vmatprep.subr.mxu0 0.0
    %930 = vmatpush1.xpose.msra.mxu0 0.0
    %931 = vmatprep.subr.mxu0 0.0
    %932 = vmatpush1.xpose.msra.mxu0 0.0
    %933 = vmatprep.subr.mxu0 0.0
    %934 = vmatpush1.xpose.msra.mxu0 0.0
    %935 = vmatprep.subr.mxu0 0.0
    %936 = vmatpush1.xpose.msra.mxu0 0.0
    %937 = vmatprep.mubr.f32.mxu0 0.0
    %938 = vmatmul.mubr.f32.gmra.mrb[0].mxu0 %v869
    %v939 = vpop.f32.mrb[0].mxu0
    %v940 = vadd.f32 %v18, %v939
    %v941 = vpop.f32.mrb[0].mxu0
    %942 = vdwg.mxu0
    %v943 = vsel %vm153, %v940, -inf
    %944 = vmax.xlane.f32.xlu0 %v943
    %v945 = vpop.xlane.xlu0 %944
    %v946 = vsub.f32 %v940, %v945
    %v947 = vmul.f32 %v946, 1.442695
    %v948 = vpow.pop %v947
    %v949 = vsel %vm153, %v948, 0.0
    %950 = vadd.xlane.f32.xlu0 %v949
    %v951 = vpop.xlane.xlu0 %950
    %v952 = vrcp.pop %v951
    %v953 = vmul.f32 %v948, %v952
    %954 = vrot.lane.b32.xlu0 %v142, 40
    %v955 = vpop.permute.xlu0 %954
    %v958 = vsel %vm153, %v953, 0
    %960 = vmatprep.subr.mxu0 0.0
    %961 = vmatpush1.msra.mxu0 %v955
    %962 = vmatprep.subr.mxu0 0.0
    %963 = vmatpush1.msra.mxu0 0.0
    %964 = vmatprep.subr.mxu0 0.0
    %965 = vmatpush1.msra.mxu0 0.0
    %966 = vmatprep.subr.mxu0 0.0
    %967 = vmatpush1.msra.mxu0 0.0
    %968 = vmatprep.subr.mxu0 0.0
    %969 = vmatpush1.msra.mxu0 0.0
    %970 = vmatprep.subr.mxu0 0.0
    %971 = vmatpush1.msra.mxu0 0.0
    %972 = vmatprep.subr.mxu0 0.0
    %973 = vmatpush1.msra.mxu0 0.0
    %974 = vmatprep.subr.mxu0 0.0
    %975 = vmatpush1.msra.mxu0 0.0
    %976 = vmatprep.subr.mxu0 0.0
    %977 = vmatpush1.msra.mxu0 0.0
    %978 = vmatprep.subr.mxu0 0.0
    %979 = vmatpush1.msra.mxu0 0.0
    %980 = vmatprep.subr.mxu0 0.0
    %981 = vmatpush1.msra.mxu0 0.0
    %982 = vmatprep.subr.mxu0 0.0
    %983 = vmatpush1.msra.mxu0 0.0
    %984 = vmatprep.subr.mxu0 0.0
    %985 = vmatpush1.msra.mxu0 0.0
    %986 = vmatprep.subr.mxu0 0.0
    %987 = vmatpush1.msra.mxu0 0.0
    %988 = vmatprep.subr.mxu0 0.0
    %989 = vmatpush1.msra.mxu0 0.0
    %990 = vmatprep.subr.mxu0 0.0
    %991 = vmatpush1.msra.mxu0 0.0
    %992 = vmatprep.subr.mxu0 0.0
    %993 = vmatpush1.msra.mxu0 0.0
    %994 = vmatprep.subr.mxu0 0.0
    %995 = vmatpush1.msra.mxu0 0.0
    %996 = vmatprep.subr.mxu0 0.0
    %997 = vmatpush1.msra.mxu0 0.0
    %998 = vmatprep.subr.mxu0 0.0
    %999 = vmatpush1.msra.mxu0 0.0
    %1000 = vmatprep.subr.mxu0 0.0
    %1001 = vmatpush1.msra.mxu0 0.0
    %1002 = vmatprep.subr.mxu0 0.0
    %1003 = vmatpush1.msra.mxu0 0.0
    %1004 = vmatprep.subr.mxu0 0.0
    %1005 = vmatpush1.msra.mxu0 0.0
    %1006 = vmatprep.subr.mxu0 0.0
    %1007 = vmatpush1.msra.mxu0 0.0
    %1008 = vmatprep.subr.mxu0 0.0
    %1009 = vmatpush1.msra.mxu0 0.0
    %1010 = vmatprep.subr.mxu0 0.0
    %1011 = vmatpush1.msra.mxu0 0.0
    %1012 = vmatprep.subr.mxu0 0.0
    %1013 = vmatpush1.msra.mxu0 0.0
    %1014 = vmatprep.subr.mxu0 0.0
    %1015 = vmatpush1.msra.mxu0 0.0
    %1016 = vmatprep.subr.mxu0 0.0
    %1017 = vmatpush1.msra.mxu0 0.0
    %1018 = vmatprep.subr.mxu0 0.0
    %1019 = vmatpush1.msra.mxu0 0.0
    %1020 = vmatprep.subr.mxu0 0.0
    %1021 = vmatpush1.msra.mxu0 0.0
    %1022 = vmatprep.subr.mxu0 0.0
    %1023 = vmatpush1.msra.mxu0 0.0
    %1024 = vmatprep.mubr.f32.mxu0 0.0
    %1025 = vmatmul.mubr.f32.gmra.mrb[0].mxu0 %v958
    %v1026 = vpop.f32.mrb[0].mxu0
    %v1027 = vadd.f32 0.0, %v1026
    %v1028 = vpop.f32.mrb[0].mxu0
    %1029 = vdwg.mxu0
    %v1031 = vsel %vm153, %v1027, 0
    %1033 = vmatprep.subr.mxu0 0.0
    %1034 = vmatpush1.msra.mxu0 %v44
    %1035 = vmatprep.subr.mxu0 0.0
    %1036 = vmatpush1.msra.mxu0 0.0
    %1037 = vmatprep.subr.mxu0 0.0
    %1038 = vmatpush1.msra.mxu0 0.0
    %1039 = vmatprep.subr.mxu0 0.0
    %1040 = vmatpush1.msra.mxu0 0.0
    %1041 = vmatprep.subr.mxu0 0.0
    %1042 = vmatpush1.msra.mxu0 0.0
    %1043 = vmatprep.subr.mxu0 0.0
    %1044 = vmatpush1.msra.mxu0 0.0
    %1045 = vmatprep.subr.mxu0 0.0
    %1046 = vmatpush1.msra.mxu0 0.0
    %1047 = vmatprep.subr.mxu0 0.0
    %1048 = vmatpush1.msra.mxu0 0.0
    %1049 = vmatprep.subr.mxu0 0.0
    %1050 = vmatpush1.msra.mxu0 0.0
    %1051 = vmatprep.subr.mxu0 0.0
    %1052 = vmatpush1.msra.mxu0 0.0
    %1053 = vmatprep.subr.mxu0 0.0
    %1054 = vmatpush1.msra.mxu0 0.0
    %1055 = vmatprep.subr.mxu0 0.0
    %1056 = vmatpush1.msra.mxu0 0.0
    %1057 = vmatprep.subr.mxu0 0.0
    %1058 = vmatpush1.msra.mxu0 0.0
    %1059 = vmatprep.subr.mxu0 0.0
    %1060 = vmatpush1.msra.mxu0 0.0
    %1061 = vmatprep.subr.mxu0 0.0
    %1062 = vmatpush1.msra.mxu0 0.0
    %1063 = vmatprep.subr.mxu0 0.0
    %1064 = vmatpush1.msra.mxu0 0.0
    %1065 = vmatprep.subr.mxu0 0.0
    %1066 = vmatpush1.msra.mxu0 0.0
    %1067 = vmatprep.subr.mxu0 0.0
    %1068 = vmatpush1.msra.mxu0 0.0
    %1069 = vmatprep.subr.mxu0 0.0
    %1070 = vmatpush1.msra.mxu0 0.0
    %1071 = vmatprep.subr.mxu0 0.0
    %1072 = vmatpush1.msra.mxu0 0.0
    %1073 = vmatprep.subr.mxu0 0.0
    %1074 = vmatpush1.msra.mxu0 0.0
    %1075 = vmatprep.subr.mxu0 0.0
    %1076 = vmatpush1.msra.mxu0 0.0
    %1077 = vmatprep.subr.mxu0 0.0
    %1078 = vmatpush1.msra.mxu0 0.0
    %1079 = vmatprep.subr.mxu0 0.0
    %1080 = vmatpush1.msra.mxu0 0.0
    %1081 = vmatprep.subr.mxu0 0.0
    %1082 = vmatpush1.msra.mxu0 0.0
    %1083 = vmatprep.subr.mxu0 0.0
    %1084 = vmatpush1.msra.mxu0 0.0
    %1085 = vmatprep.subr.mxu0 0.0
    %1086 = vmatpush1.msra.mxu0 0.0
    %1087 = vmatprep.subr.mxu0 0.0
    %1088 = vmatpush1.msra.mxu0 0.0
    %1089 = vmatprep.subr.mxu0 0.0
    %1090 = vmatpush1.msra.mxu0 0.0
    %1091 = vmatprep.subr.mxu0 0.0
    %1092 = vmatpush1.msra.mxu0 0.0
    %1093 = vmatprep.subr.mxu0 0.0
    %1094 = vmatpush1.msra.mxu0 0.0
    %1095 = vmatprep.subr.mxu0 0.0
    %1096 = vmatpush1.msra.mxu0 0.0
    %1097 = vmatprep.mubr.f32.mxu0 0.0
    %1098 = vmatmul.mubr.f32.gmra.mrb[0].mxu0 %v1031
    %v1099 = vpop.f32.mrb[0].mxu0
    %v1100 = vadd.f32 0.0, %v1099
    %v1101 = vpop.f32.mrb[0].mxu0
    %1102 = vdwg.mxu0
    %v1103 = vadd.f32 %v864, %v1100
    %1105 = vrot.lane.b32.xlu0 %v147, 96
    %v1106 = vpop.permute.xlu0 %1105
    %v1107 = vsel %vm153, %v147, 0
    %v1109 = vsel %vm153, %v1106, 0
    %1111 = vmatprep.subr.mxu0 0.0
    %1112 = vmatpush1.xpose.msra.mxu0 %v1109
    %1113 = vmatprep.subr.mxu0 0.0
    %1114 = vmatpush1.xpose.msra.mxu0 0.0
    %1115 = vmatprep.subr.mxu0 0.0
    %1116 = vmatpush1.xpose.msra.mxu0 0.0
    %1117 = vmatprep.subr.mxu0 0.0
    %1118 = vmatpush1.xpose.msra.mxu0 0.0
    %1119 = vmatprep.subr.mxu0 0.0
    %1120 = vmatpush1.xpose.msra.mxu0 0.0
    %1121 = vmatprep.subr.mxu0 0.0
    %1122 = vmatpush1.xpose.msra.mxu0 0.0
    %1123 = vmatprep.subr.mxu0 0.0
    %1124 = vmatpush1.xpose.msra.mxu0 0.0
    %1125 = vmatprep.subr.mxu0 0.0
    %1126 = vmatpush1.xpose.msra.mxu0 0.0
    %1127 = vmatprep.subr.mxu0 0.0
    %1128 = vmatpush1.xpose.msra.mxu0 0.0
    %1129 = vmatprep.subr.mxu0 0.0
    %1130 = vmatpush1.xpose.msra.mxu0 0.0
    %1131 = vmatprep.subr.mxu0 0.0
    %1132 = vmatpush1.xpose.msra.mxu0 0.0
    %1133 = vmatprep.subr.mxu0 0.0
    %1134 = vmatpush1.xpose.msra.mxu0 0.0
    %1135 = vmatprep.subr.mxu0 0.0
    %1136 = vmatpush1.xpose.msra.mxu0 0.0
    %1137 = vmatprep.subr.mxu0 0.0
    %1138 = vmatpush1.xpose.msra.mxu0 0.0
    %1139 = vmatprep.subr.mxu0 0.0
    %1140 = vmatpush1.xpose.msra.mxu0 0.0
    %1141 = vmatprep.subr.mxu0 0.0
    %1142 = vmatpush1.xpose.msra.mxu0 0.0
    %1143 = vmatprep.subr.mxu0 0.0
    %1144 = vmatpush1.xpose.msra.mxu0 0.0
    %1145 = vmatprep.subr.mxu0 0.0
    %1146 = vmatpush1.xpose.msra.mxu0 0.0
    %1147 = vmatprep.subr.mxu0 0.0
    %1148 = vmatpush1.xpose.msra.mxu0 0.0
    %1149 = vmatprep.subr.mxu0 0.0
    %1150 = vmatpush1.xpose.msra.mxu0 0.0
    %1151 = vmatprep.subr.mxu0 0.0
    %1152 = vmatpush1.xpose.msra.mxu0 0.0
    %1153 = vmatprep.subr.mxu0 0.0
    %1154 = vmatpush1.xpose.msra.mxu0 0.0
    %1155 = vmatprep.subr.mxu0 0.0
    %1156 = vmatpush1.xpose.msra.mxu0 0.0
    %1157 = vmatprep.subr.mxu0 0.0
    %1158 = vmatpush1.xpose.msra.mxu0 0.0
    %1159 = vmatprep.subr.mxu0 0.0
    %1160 = vmatpush1.xpose.msra.mxu0 0.0
    %1161 = vmatprep.subr.mxu0 0.0
    %1162 = vmatpush1.xpose.msra.mxu0 0.0
    %1163 = vmatprep.subr.mxu0 0.0
    %1164 = vmatpush1.xpose.msra.mxu0 0.0
    %1165 = vmatprep.subr.mxu0 0.0
    %1166 = vmatpush1.xpose.msra.mxu0 0.0
    %1167 = vmatprep.subr.mxu0 0.0
    %1168 = vmatpush1.xpose.msra.mxu0 0.0
    %1169 = vmatprep.subr.mxu0 0.0
    %1170 = vmatpush1.xpose.msra.mxu0 0.0
    %1171 = vmatprep.subr.mxu0 0.0
    %1172 = vmatpush1.xpose.msra.mxu0 0.0
    %1173 = vmatprep.subr.mxu0 0.0
    %1174 = vmatpush1.xpose.msra.mxu0 0.0
    %1175 = vmatprep.mubr.f32.mxu0 0.0
    %1176 = vmatmul.mubr.f32.gmra.mrb[0].mxu0 %v1107
    %v1177 = vpop.f32.mrb[0].mxu0
    %v1178 = vadd.f32 %v18, %v1177
    %v1179 = vpop.f32.mrb[0].mxu0
    %1180 = vdwg.mxu0
    %v1181 = vsel %vm153, %v1178, -inf
    %1182 = vmax.xlane.f32.xlu0 %v1181
    %v1183 = vpop.xlane.xlu0 %1182
    %v1184 = vsub.f32 %v1178, %v1183
    %v1185 = vmul.f32 %v1184, 1.442695
    %v1186 = vpow.pop %v1185
    %v1187 = vsel %vm153, %v1186, 0.0
    %1188 = vadd.xlane.f32.xlu0 %v1187
    %v1189 = vpop.xlane.xlu0 %1188
    %v1190 = vrcp.pop %v1189
    %v1191 = vmul.f32 %v1186, %v1190
    %1192 = vrot.lane.b32.xlu0 %v147, 64
    %v1193 = vpop.permute.xlu0 %1192
    %v1196 = vsel %vm153, %v1191, 0
    %1198 = vmatprep.subr.mxu0 0.0
    %1199 = vmatpush1.msra.mxu0 %v1193
    %1200 = vmatprep.subr.mxu0 0.0
    %1201 = vmatpush1.msra.mxu0 0.0
    %1202 = vmatprep.subr.mxu0 0.0
    %1203 = vmatpush1.msra.mxu0 0.0
    %1204 = vmatprep.subr.mxu0 0.0
    %1205 = vmatpush1.msra.mxu0 0.0
    %1206 = vmatprep.subr.mxu0 0.0
    %1207 = vmatpush1.msra.mxu0 0.0
    %1208 = vmatprep.subr.mxu0 0.0
    %1209 = vmatpush1.msra.mxu0 0.0
    %1210 = vmatprep.subr.mxu0 0.0
    %1211 = vmatpush1.msra.mxu0 0.0
    %1212 = vmatprep.subr.mxu0 0.0
    %1213 = vmatpush1.msra.mxu0 0.0
    %1214 = vmatprep.subr.mxu0 0.0
    %1215 = vmatpush1.msra.mxu0 0.0
    %1216 = vmatprep.subr.mxu0 0.0
    %1217 = vmatpush1.msra.mxu0 0.0
    %1218 = vmatprep.subr.mxu0 0.0
    %1219 = vmatpush1.msra.mxu0 0.0
    %1220 = vmatprep.subr.mxu0 0.0
    %1221 = vmatpush1.msra.mxu0 0.0
    %1222 = vmatprep.subr.mxu0 0.0
    %1223 = vmatpush1.msra.mxu0 0.0
    %1224 = vmatprep.subr.mxu0 0.0
    %1225 = vmatpush1.msra.mxu0 0.0
    %1226 = vmatprep.subr.mxu0 0.0
    %1227 = vmatpush1.msra.mxu0 0.0
    %1228 = vmatprep.subr.mxu0 0.0
    %1229 = vmatpush1.msra.mxu0 0.0
    %1230 = vmatprep.subr.mxu0 0.0
    %1231 = vmatpush1.msra.mxu0 0.0
    %1232 = vmatprep.subr.mxu0 0.0
    %1233 = vmatpush1.msra.mxu0 0.0
    %1234 = vmatprep.subr.mxu0 0.0
    %1235 = vmatpush1.msra.mxu0 0.0
    %1236 = vmatprep.subr.mxu0 0.0
    %1237 = vmatpush1.msra.mxu0 0.0
    %1238 = vmatprep.subr.mxu0 0.0
    %1239 = vmatpush1.msra.mxu0 0.0
    %1240 = vmatprep.subr.mxu0 0.0
    %1241 = vmatpush1.msra.mxu0 0.0
    %1242 = vmatprep.subr.mxu0 0.0
    %1243 = vmatpush1.msra.mxu0 0.0
    %1244 = vmatprep.subr.mxu0 0.0
    %1245 = vmatpush1.msra.mxu0 0.0
    %1246 = vmatprep.subr.mxu0 0.0
    %1247 = vmatpush1.msra.mxu0 0.0
    %1248 = vmatprep.subr.mxu0 0.0
    %1249 = vmatpush1.msra.mxu0 0.0
    %1250 = vmatprep.subr.mxu0 0.0
    %1251 = vmatpush1.msra.mxu0 0.0
    %1252 = vmatprep.subr.mxu0 0.0
    %1253 = vmatpush1.msra.mxu0 0.0
    %1254 = vmatprep.subr.mxu0 0.0
    %1255 = vmatpush1.msra.mxu0 0.0
    %1256 = vmatprep.subr.mxu0 0.0
    %1257 = vmatpush1.msra.mxu0 0.0
    %1258 = vmatprep.subr.mxu0 0.0
    %1259 = vmatpush1.msra.mxu0 0.0
    %1260 = vmatprep.subr.mxu0 0.0
    %1261 = vmatpush1.msra.mxu0 0.0
    %1262 = vmatprep.mubr.f32.mxu0 0.0
    %1263 = vmatmul.mubr.f32.gmra.mrb[0].mxu0 %v1196
    %v1264 = vpop.f32.mrb[0].mxu0
    %v1265 = vadd.f32 0.0, %v1264
    %v1266 = vpop.f32.mrb[0].mxu0
    %1267 = vdwg.mxu0
    %1268 = vrot.lane.b32.xlu0 %v147, 120
    %v1269 = vpop.permute.xlu0 %1268
    %1270 = vrot.lane.b32.xlu0 %v147, 88
    %v1271 = vpop.permute.xlu0 %1270
    %v1272 = vsel %vm153, %v1269, 0
    %v1274 = vsel %vm153, %v1271, 0
    %1276 = vmatprep.subr.mxu0 0.0
    %1277 = vmatpush1.xpose.msra.mxu0 %v1274
    %1278 = vmatprep.subr.mxu0 0.0
    %1279 = vmatpush1.xpose.msra.mxu0 0.0
    %1280 = vmatprep.subr.mxu0 0.0
    %1281 = vmatpush1.xpose.msra.mxu0 0.0
    %1282 = vmatprep.subr.mxu0 0.0
    %1283 = vmatpush1.xpose.msra.mxu0 0.0
    %1284 = vmatprep.subr.mxu0 0.0
    %1285 = vmatpush1.xpose.msra.mxu0 0.0
    %1286 = vmatprep.subr.mxu0 0.0
    %1287 = vmatpush1.xpose.msra.mxu0 0.0
    %1288 = vmatprep.subr.mxu0 0.0
    %1289 = vmatpush1.xpose.msra.mxu0 0.0
    %1290 = vmatprep.subr.mxu0 0.0
    %1291 = vmatpush1.xpose.msra.mxu0 0.0
    %1292 = vmatprep.subr.mxu0 0.0
    %1293 = vmatpush1.xpose.msra.mxu0 0.0
    %1294 = vmatprep.subr.mxu0 0.0
    %1295 = vmatpush1.xpose.msra.mxu0 0.0
    %1296 = vmatprep.subr.mxu0 0.0
    %1297 = vmatpush1.xpose.msra.mxu0 0.0
    %1298 = vmatprep.subr.mxu0 0.0
    %1299 = vmatpush1.xpose.msra.mxu0 0.0
    %1300 = vmatprep.subr.mxu0 0.0
    %1301 = vmatpush1.xpose.msra.mxu0 0.0
    %1302 = vmatprep.subr.mxu0 0.0
    %1303 = vmatpush1.xpose.msra.mxu0 0.0
    %1304 = vmatprep.subr.mxu0 0.0
    %1305 = vmatpush1.xpose.msra.mxu0 0.0
    %1306 = vmatprep.subr.mxu0 0.0
    %1307 = vmatpush1.xpose.msra.mxu0 0.0
    %1308 = vmatprep.subr.mxu0 0.0
    %1309 = vmatpush1.xpose.msra.mxu0 0.0
    %1310 = vmatprep.subr.mxu0 0.0
    %1311 = vmatpush1.xpose.msra.mxu0 0.0
    %1312 = vmatprep.subr.mxu0 0.0
    %1313 = vmatpush1.xpose.msra.mxu0 0.0
    %1314 = vmatprep.subr.mxu0 0.0
    %1315 = vmatpush1.xpose.msra.mxu0 0.0
    %1316 = vmatprep.subr.mxu0 0.0
    %1317 = vmatpush1.xpose.msra.mxu0 0.0
    %1318 = vmatprep.subr.mxu0 0.0
    %1319 = vmatpush1.xpose.msra.mxu0 0.0
    %1320 = vmatprep.subr.mxu0 0.0
    %1321 = vmatpush1.xpose.msra.mxu0 0.0
    %1322 = vmatprep.subr.mxu0 0.0
    %1323 = vmatpush1.xpose.msra.mxu0 0.0
    %1324 = vmatprep.subr.mxu0 0.0
    %1325 = vmatpush1.xpose.msra.mxu0 0.0
    %1326 = vmatprep.subr.mxu0 0.0
    %1327 = vmatpush1.xpose.msra.mxu0 0.0
    %1328 = vmatprep.subr.mxu0 0.0
    %1329 = vmatpush1.xpose.msra.mxu0 0.0
    %1330 = vmatprep.subr.mxu0 0.0
    %1331 = vmatpush1.xpose.msra.mxu0 0.0
    %1332 = vmatprep.subr.mxu0 0.0
    %1333 = vmatpush1.xpose.msra.mxu0 0.0
    %1334 = vmatprep.subr.mxu0 0.0
    %1335 = vmatpush1.xpose.msra.mxu0 0.0
    %1336 = vmatprep.subr.mxu0 0.0
    %1337 = vmatpush1.xpose.msra.mxu0 0.0
    %1338 = vmatprep.subr.mxu0 0.0
    %1339 = vmatpush1.xpose.msra.mxu0 0.0
    %1340 = vmatprep.mubr.f32.mxu0 0.0
    %1341 = vmatmul.mubr.f32.gmra.mrb[0].mxu0 %v1272
    %v1342 = vpop.f32.mrb[0].mxu0
    %v1343 = vadd.f32 %v18, %v1342
    %v1344 = vpop.f32.mrb[0].mxu0
    %1345 = vdwg.mxu0
    %v1346 = vsel %vm153, %v1343, -inf
    %1347 = vmax.xlane.f32.xlu0 %v1346
    %v1348 = vpop.xlane.xlu0 %1347
    %v1349 = vsub.f32 %v1343, %v1348
    %v1350 = vmul.f32 %v1349, 1.442695
    %v1351 = vpow.pop %v1350
    %v1352 = vsel %vm153, %v1351, 0.0
    %1353 = vadd.xlane.f32.xlu0 %v1352
    %v1354 = vpop.xlane.xlu0 %1353
    %v1355 = vrcp.pop %v1354
    %v1356 = vmul.f32 %v1351, %v1355
    %1357 = vrot.lane.b32.xlu0 %v147, 56
    %v1358 = vpop.permute.xlu0 %1357
    %v1361 = vsel %vm153, %v1356, 0
    %1363 = vmatprep.subr.mxu0 0.0
    %1364 = vmatpush1.msra.mxu0 %v1358
    %1365 = vmatprep.subr.mxu0 0.0
    %1366 = vmatpush1.msra.mxu0 0.0
    %1367 = vmatprep.subr.mxu0 0.0
    %1368 = vmatpush1.msra.mxu0 0.0
    %1369 = vmatprep.subr.mxu0 0.0
    %1370 = vmatpush1.msra.mxu0 0.0
    %1371 = vmatprep.subr.mxu0 0.0
    %1372 = vmatpush1.msra.mxu0 0.0
    %1373 = vmatprep.subr.mxu0 0.0
    %1374 = vmatpush1.msra.mxu0 0.0
    %1375 = vmatprep.subr.mxu0 0.0
    %1376 = vmatpush1.msra.mxu0 0.0
    %1377 = vmatprep.subr.mxu0 0.0
    %1378 = vmatpush1.msra.mxu0 0.0
    %1379 = vmatprep.subr.mxu0 0.0
    %1380 = vmatpush1.msra.mxu0 0.0
    %1381 = vmatprep.subr.mxu0 0.0
    %1382 = vmatpush1.msra.mxu0 0.0
    %1383 = vmatprep.subr.mxu0 0.0
    %1384 = vmatpush1.msra.mxu0 0.0
    %1385 = vmatprep.subr.mxu0 0.0
    %1386 = vmatpush1.msra.mxu0 0.0
    %1387 = vmatprep.subr.mxu0 0.0
    %1388 = vmatpush1.msra.mxu0 0.0
    %1389 = vmatprep.subr.mxu0 0.0
    %1390 = vmatpush1.msra.mxu0 0.0
    %1391 = vmatprep.subr.mxu0 0.0
    %1392 = vmatpush1.msra.mxu0 0.0
    %1393 = vmatprep.subr.mxu0 0.0
    %1394 = vmatpush1.msra.mxu0 0.0
    %1395 = vmatprep.subr.mxu0 0.0
    %1396 = vmatpush1.msra.mxu0 0.0
    %1397 = vmatprep.subr.mxu0 0.0
    %1398 = vmatpush1.msra.mxu0 0.0
    %1399 = vmatprep.subr.mxu0 0.0
    %1400 = vmatpush1.msra.mxu0 0.0
    %1401 = vmatprep.subr.mxu0 0.0
    %1402 = vmatpush1.msra.mxu0 0.0
    %1403 = vmatprep.subr.mxu0 0.0
    %1404 = vmatpush1.msra.mxu0 0.0
    %1405 = vmatprep.subr.mxu0 0.0
    %1406 = vmatpush1.msra.mxu0 0.0
    %1407 = vmatprep.subr.mxu0 0.0
    %1408 = vmatpush1.msra.mxu0 0.0
    %1409 = vmatprep.subr.mxu0 0.0
    %1410 = vmatpush1.msra.mxu0 0.0
    %1411 = vmatprep.subr.mxu0 0.0
    %1412 = vmatpush1.msra.mxu0 0.0
    %1413 = vmatprep.subr.mxu0 0.0
    %1414 = vmatpush1.msra.mxu0 0.0
    %1415 = vmatprep.subr.mxu0 0.0
    %1416 = vmatpush1.msra.mxu0 0.0
    %1417 = vmatprep.subr.mxu0 0.0
    %1418 = vmatpush1.msra.mxu0 0.0
    %1419 = vmatprep.subr.mxu0 0.0
    %1420 = vmatpush1.msra.mxu0 0.0
    %1421 = vmatprep.subr.mxu0 0.0
    %1422 = vmatpush1.msra.mxu0 0.0
    %1423 = vmatprep.subr.mxu0 0.0
    %1424 = vmatpush1.msra.mxu0 0.0
    %1425 = vmatprep.subr.mxu0 0.0
    %1426 = vmatpush1.msra.mxu0 0.0
    %1427 = vmatprep.mubr.f32.mxu0 0.0
    %1428 = vmatmul.mubr.f32.gmra.mrb[0].mxu0 %v1361
    %v1429 = vpop.f32.mrb[0].mxu0
    %v1430 = vadd.f32 0.0, %v1429
    %v1431 = vpop.f32.mrb[0].mxu0
    %1432 = vdwg.mxu0
    %v1434 = vsel %vm153, %v1430, 0
    %1436 = vmatprep.subr.mxu0 0.0
    %1437 = vmatpush1.msra.mxu0 %v30
    %1438 = vmatprep.subr.mxu0 0.0
    %1439 = vmatpush1.msra.mxu0 0.0
    %1440 = vmatprep.subr.mxu0 0.0
    %1441 = vmatpush1.msra.mxu0 0.0
    %1442 = vmatprep.subr.mxu0 0.0
    %1443 = vmatpush1.msra.mxu0 0.0
    %1444 = vmatprep.subr.mxu0 0.0
    %1445 = vmatpush1.msra.mxu0 0.0
    %1446 = vmatprep.subr.mxu0 0.0
    %1447 = vmatpush1.msra.mxu0 0.0
    %1448 = vmatprep.subr.mxu0 0.0
    %1449 = vmatpush1.msra.mxu0 0.0
    %1450 = vmatprep.subr.mxu0 0.0
    %1451 = vmatpush1.msra.mxu0 0.0
    %1452 = vmatprep.subr.mxu0 0.0
    %1453 = vmatpush1.msra.mxu0 0.0
    %1454 = vmatprep.subr.mxu0 0.0
    %1455 = vmatpush1.msra.mxu0 0.0
    %1456 = vmatprep.subr.mxu0 0.0
    %1457 = vmatpush1.msra.mxu0 0.0
    %1458 = vmatprep.subr.mxu0 0.0
    %1459 = vmatpush1.msra.mxu0 0.0
    %1460 = vmatprep.subr.mxu0 0.0
    %1461 = vmatpush1.msra.mxu0 0.0
    %1462 = vmatprep.subr.mxu0 0.0
    %1463 = vmatpush1.msra.mxu0 0.0
    %1464 = vmatprep.subr.mxu0 0.0
    %1465 = vmatpush1.msra.mxu0 0.0
    %1466 = vmatprep.subr.mxu0 0.0
    %1467 = vmatpush1.msra.mxu0 0.0
    %1468 = vmatprep.subr.mxu0 0.0
    %1469 = vmatpush1.msra.mxu0 0.0
    %1470 = vmatprep.subr.mxu0 0.0
    %1471 = vmatpush1.msra.mxu0 0.0
    %1472 = vmatprep.subr.mxu0 0.0
    %1473 = vmatpush1.msra.mxu0 0.0
    %1474 = vmatprep.subr.mxu0 0.0
    %1475 = vmatpush1.msra.mxu0 0.0
    %1476 = vmatprep.subr.mxu0 0.0
    %1477 = vmatpush1.msra.mxu0 0.0
    %1478 = vmatprep.subr.mxu0 0.0
    %1479 = vmatpush1.msra.mxu0 0.0
    %1480 = vmatprep.subr.mxu0 0.0
    %1481 = vmatpush1.msra.mxu0 0.0
    %1482 = vmatprep.subr.mxu0 0.0
    %1483 = vmatpush1.msra.mxu0 0.0
    %1484 = vmatprep.subr.mxu0 0.0
    %1485 = vmatpush1.msra.mxu0 0.0
    %1486 = vmatprep.subr.mxu0 0.0
    %1487 = vmatpush1.msra.mxu0 0.0
    %1488 = vmatprep.subr.mxu0 0.0
    %1489 = vmatpush1.msra.mxu0 0.0
    %1490 = vmatprep.subr.mxu0 0.0
    %1491 = vmatpush1.msra.mxu0 0.0
    %1492 = vmatprep.subr.mxu0 0.0
    %1493 = vmatpush1.msra.mxu0 0.0
    %1494 = vmatprep.subr.mxu0 0.0
    %1495 = vmatpush1.msra.mxu0 0.0
    %1496 = vmatprep.subr.mxu0 0.0
    %1497 = vmatpush1.msra.mxu0 0.0
    %1498 = vmatprep.subr.mxu0 0.0
    %1499 = vmatpush1.msra.mxu0 0.0
    %1500 = vmatprep.mubr.f32.mxu0 0.0
    %1501 = vmatmul.mubr.f32.gmra.mrb[0].mxu0 %v1434
    %v1502 = vpop.f32.mrb[0].mxu0
    %v1503 = vadd.f32 0.0, %v1502
    %v1504 = vpop.f32.mrb[0].mxu0
    %1505 = vdwg.mxu0
    %v1507 = vsel %vm153, %v1265, 0
    %1509 = vmatprep.subr.mxu0 0.0
    %1510 = vmatpush1.msra.mxu0 %v23
    %1511 = vmatprep.subr.mxu0 0.0
    %1512 = vmatpush1.msra.mxu0 0.0
    %1513 = vmatprep.subr.mxu0 0.0
    %1514 = vmatpush1.msra.mxu0 0.0
    %1515 = vmatprep.subr.mxu0 0.0
    %1516 = vmatpush1.msra.mxu0 0.0
    %1517 = vmatprep.subr.mxu0 0.0
    %1518 = vmatpush1.msra.mxu0 0.0
    %1519 = vmatprep.subr.mxu0 0.0
    %1520 = vmatpush1.msra.mxu0 0.0
    %1521 = vmatprep.subr.mxu0 0.0
    %1522 = vmatpush1.msra.mxu0 0.0
    %1523 = vmatprep.subr.mxu0 0.0
    %1524 = vmatpush1.msra.mxu0 0.0
    %1525 = vmatprep.subr.mxu0 0.0
    %1526 = vmatpush1.msra.mxu0 0.0
    %1527 = vmatprep.subr.mxu0 0.0
    %1528 = vmatpush1.msra.mxu0 0.0
    %1529 = vmatprep.subr.mxu0 0.0
    %1530 = vmatpush1.msra.mxu0 0.0
    %1531 = vmatprep.subr.mxu0 0.0
    %1532 = vmatpush1.msra.mxu0 0.0
    %1533 = vmatprep.subr.mxu0 0.0
    %1534 = vmatpush1.msra.mxu0 0.0
    %1535 = vmatprep.subr.mxu0 0.0
    %1536 = vmatpush1.msra.mxu0 0.0
    %1537 = vmatprep.subr.mxu0 0.0
    %1538 = vmatpush1.msra.mxu0 0.0
    %1539 = vmatprep.subr.mxu0 0.0
    %1540 = vmatpush1.msra.mxu0 0.0
    %1541 = vmatprep.subr.mxu0 0.0
    %1542 = vmatpush1.msra.mxu0 0.0
    %1543 = vmatprep.subr.mxu0 0.0
    %1544 = vmatpush1.msra.mxu0 0.0
    %1545 = vmatprep.subr.mxu0 0.0
    %1546 = vmatpush1.msra.mxu0 0.0
    %1547 = vmatprep.subr.mxu0 0.0
    %1548 = vmatpush1.msra.mxu0 0.0
    %1549 = vmatprep.subr.mxu0 0.0
    %1550 = vmatpush1.msra.mxu0 0.0
    %1551 = vmatprep.subr.mxu0 0.0
    %1552 = vmatpush1.msra.mxu0 0.0
    %1553 = vmatprep.subr.mxu0 0.0
    %1554 = vmatpush1.msra.mxu0 0.0
    %1555 = vmatprep.subr.mxu0 0.0
    %1556 = vmatpush1.msra.mxu0 0.0
    %1557 = vmatprep.subr.mxu0 0.0
    %1558 = vmatpush1.msra.mxu0 0.0
    %1559 = vmatprep.subr.mxu0 0.0
    %1560 = vmatpush1.msra.mxu0 0.0
    %1561 = vmatprep.subr.mxu0 0.0
    %1562 = vmatpush1.msra.mxu0 0.0
    %1563 = vmatprep.subr.mxu0 0.0
    %1564 = vmatpush1.msra.mxu0 0.0
    %1565 = vmatprep.subr.mxu0 0.0
    %1566 = vmatpush1.msra.mxu0 0.0
    %1567 = vmatprep.subr.mxu0 0.0
    %1568 = vmatpush1.msra.mxu0 0.0
    %1569 = vmatprep.subr.mxu0 0.0
    %1570 = vmatpush1.msra.mxu0 0.0
    %1571 = vmatprep.subr.mxu0 0.0
    %1572 = vmatpush1.msra.mxu0 0.0
    %1573 = vmatprep.mubr.f32.mxu0 0.0
    %1574 = vmatmul.mubr.f32.gmra.mrb[0].mxu0 %v1507
    %v1575 = vpop.f32.mrb[0].mxu0
    %v1576 = vadd.f32 %v1503, %v1575
    %v1577 = vpop.f32.mrb[0].mxu0
    %1578 = vdwg.mxu0
    %1579 = vrot.lane.b32.xlu0 %v147, 112
    %v1580 = vpop.permute.xlu0 %1579
    %1581 = vrot.lane.b32.xlu0 %v147, 80
    %v1582 = vpop.permute.xlu0 %1581
    %v1583 = vsel %vm153, %v1580, 0
    %v1585 = vsel %vm153, %v1582, 0
    %1587 = vmatprep.subr.mxu0 0.0
    %1588 = vmatpush1.xpose.msra.mxu0 %v1585
    %1589 = vmatprep.subr.mxu0 0.0
    %1590 = vmatpush1.xpose.msra.mxu0 0.0
    %1591 = vmatprep.subr.mxu0 0.0
    %1592 = vmatpush1.xpose.msra.mxu0 0.0
    %1593 = vmatprep.subr.mxu0 0.0
    %1594 = vmatpush1.xpose.msra.mxu0 0.0
    %1595 = vmatprep.subr.mxu0 0.0
    %1596 = vmatpush1.xpose.msra.mxu0 0.0
    %1597 = vmatprep.subr.mxu0 0.0
    %1598 = vmatpush1.xpose.msra.mxu0 0.0
    %1599 = vmatprep.subr.mxu0 0.0
    %1600 = vmatpush1.xpose.msra.mxu0 0.0
    %1601 = vmatprep.subr.mxu0 0.0
    %1602 = vmatpush1.xpose.msra.mxu0 0.0
    %1603 = vmatprep.subr.mxu0 0.0
    %1604 = vmatpush1.xpose.msra.mxu0 0.0
    %1605 = vmatprep.subr.mxu0 0.0
    %1606 = vmatpush1.xpose.msra.mxu0 0.0
    %1607 = vmatprep.subr.mxu0 0.0
    %1608 = vmatpush1.xpose.msra.mxu0 0.0
    %1609 = vmatprep.subr.mxu0 0.0
    %1610 = vmatpush1.xpose.msra.mxu0 0.0
    %1611 = vmatprep.subr.mxu0 0.0
    %1612 = vmatpush1.xpose.msra.mxu0 0.0
    %1613 = vmatprep.subr.mxu0 0.0
    %1614 = vmatpush1.xpose.msra.mxu0 0.0
    %1615 = vmatprep.subr.mxu0 0.0
    %1616 = vmatpush1.xpose.msra.mxu0 0.0
    %1617 = vmatprep.subr.mxu0 0.0
    %1618 = vmatpush1.xpose.msra.mxu0 0.0
    %1619 = vmatprep.subr.mxu0 0.0
    %1620 = vmatpush1.xpose.msra.mxu0 0.0
    %1621 = vmatprep.subr.mxu0 0.0
    %1622 = vmatpush1.xpose.msra.mxu0 0.0
    %1623 = vmatprep.subr.mxu0 0.0
    %1624 = vmatpush1.xpose.msra.mxu0 0.0
    %1625 = vmatprep.subr.mxu0 0.0
    %1626 = vmatpush1.xpose.msra.mxu0 0.0
    %1627 = vmatprep.subr.mxu0 0.0
    %1628 = vmatpush1.xpose.msra.mxu0 0.0
    %1629 = vmatprep.subr.mxu0 0.0
    %1630 = vmatpush1.xpose.msra.mxu0 0.0
    %1631 = vmatprep.subr.mxu0 0.0
    %1632 = vmatpush1.xpose.msra.mxu0 0.0
    %1633 = vmatprep.subr.mxu0 0.0
    %1634 = vmatpush1.xpose.msra.mxu0 0.0
    %1635 = vmatprep.subr.mxu0 0.0
    %1636 = vmatpush1.xpose.msra.mxu0 0.0
    %1637 = vmatprep.subr.mxu0 0.0
    %1638 = vmatpush1.xpose.msra.mxu0 0.0
    %1639 = vmatprep.subr.mxu0 0.0
    %1640 = vmatpush1.xpose.msra.mxu0 0.0
    %1641 = vmatprep.subr.mxu0 0.0
    %1642 = vmatpush1.xpose.msra.mxu0 0.0
    %1643 = vmatprep.subr.mxu0 0.0
    %1644 = vmatpush1.xpose.msra.mxu0 0.0
    %1645 = vmatprep.subr.mxu0 0.0
    %1646 = vmatpush1.xpose.msra.mxu0 0.0
    %1647 = vmatprep.subr.mxu0 0.0
    %1648 = vmatpush1.xpose.msra.mxu0 0.0
    %1649 = vmatprep.subr.mxu0 0.0
    %1650 = vmatpush1.xpose.msra.mxu0 0.0
    %1651 = vmatprep.mubr.f32.mxu0 0.0
    %1652 = vmatmul.mubr.f32.gmra.mrb[0].mxu0 %v1583
    %v1653 = vpop.f32.mrb[0].mxu0
    %v1654 = vadd.f32 %v18, %v1653
    %v1655 = vpop.f32.mrb[0].mxu0
    %1656 = vdwg.mxu0
    %v1657 = vsel %vm153, %v1654, -inf
    %1658 = vmax.xlane.f32.xlu0 %v1657
    %v1659 = vpop.xlane.xlu0 %1658
    %v1660 = vsub.f32 %v1654, %v1659
    %v1661 = vmul.f32 %v1660, 1.442695
    %v1662 = vpow.pop %v1661
    %v1663 = vsel %vm153, %v1662, 0.0
    %1664 = vadd.xlane.f32.xlu0 %v1663
    %v1665 = vpop.xlane.xlu0 %1664
    %v1666 = vrcp.pop %v1665
    %v1667 = vmul.f32 %v1662, %v1666
    %1668 = vrot.lane.b32.xlu0 %v147, 48
    %v1669 = vpop.permute.xlu0 %1668
    %v1672 = vsel %vm153, %v1667, 0
    %1674 = vmatprep.subr.mxu0 0.0
    %1675 = vmatpush1.msra.mxu0 %v1669
    %1676 = vmatprep.subr.mxu0 0.0
    %1677 = vmatpush1.msra.mxu0 0.0
    %1678 = vmatprep.subr.mxu0 0.0
    %1679 = vmatpush1.msra.mxu0 0.0
    %1680 = vmatprep.subr.mxu0 0.0
    %1681 = vmatpush1.msra.mxu0 0.0
    %1682 = vmatprep.subr.mxu0 0.0
    %1683 = vmatpush1.msra.mxu0 0.0
    %1684 = vmatprep.subr.mxu0 0.0
    %1685 = vmatpush1.msra.mxu0 0.0
    %1686 = vmatprep.subr.mxu0 0.0
    %1687 = vmatpush1.msra.mxu0 0.0
    %1688 = vmatprep.subr.mxu0 0.0
    %1689 = vmatpush1.msra.mxu0 0.0
    %1690 = vmatprep.subr.mxu0 0.0
    %1691 = vmatpush1.msra.mxu0 0.0
    %1692 = vmatprep.subr.mxu0 0.0
    %1693 = vmatpush1.msra.mxu0 0.0
    %1694 = vmatprep.subr.mxu0 0.0
    %1695 = vmatpush1.msra.mxu0 0.0
    %1696 = vmatprep.subr.mxu0 0.0
    %1697 = vmatpush1.msra.mxu0 0.0
    %1698 = vmatprep.subr.mxu0 0.0
    %1699 = vmatpush1.msra.mxu0 0.0
    %1700 = vmatprep.subr.mxu0 0.0
    %1701 = vmatpush1.msra.mxu0 0.0
    %1702 = vmatprep.subr.mxu0 0.0
    %1703 = vmatpush1.msra.mxu0 0.0
    %1704 = vmatprep.subr.mxu0 0.0
    %1705 = vmatpush1.msra.mxu0 0.0
    %1706 = vmatprep.subr.mxu0 0.0
    %1707 = vmatpush1.msra.mxu0 0.0
    %1708 = vmatprep.subr.mxu0 0.0
    %1709 = vmatpush1.msra.mxu0 0.0
    %1710 = vmatprep.subr.mxu0 0.0
    %1711 = vmatpush1.msra.mxu0 0.0
    %1712 = vmatprep.subr.mxu0 0.0
    %1713 = vmatpush1.msra.mxu0 0.0
    %1714 = vmatprep.subr.mxu0 0.0
    %1715 = vmatpush1.msra.mxu0 0.0
    %1716 = vmatprep.subr.mxu0 0.0
    %1717 = vmatpush1.msra.mxu0 0.0
    %1718 = vmatprep.subr.mxu0 0.0
    %1719 = vmatpush1.msra.mxu0 0.0
    %1720 = vmatprep.subr.mxu0 0.0
    %1721 = vmatpush1.msra.mxu0 0.0
    %1722 = vmatprep.subr.mxu0 0.0
    %1723 = vmatpush1.msra.mxu0 0.0
    %1724 = vmatprep.subr.mxu0 0.0
    %1725 = vmatpush1.msra.mxu0 0.0
    %1726 = vmatprep.subr.mxu0 0.0
    %1727 = vmatpush1.msra.mxu0 0.0
    %1728 = vmatprep.subr.mxu0 0.0
    %1729 = vmatpush1.msra.mxu0 0.0
    %1730 = vmatprep.subr.mxu0 0.0
    %1731 = vmatpush1.msra.mxu0 0.0
    %1732 = vmatprep.subr.mxu0 0.0
    %1733 = vmatpush1.msra.mxu0 0.0
    %1734 = vmatprep.subr.mxu0 0.0
    %1735 = vmatpush1.msra.mxu0 0.0
    %1736 = vmatprep.subr.mxu0 0.0
    %1737 = vmatpush1.msra.mxu0 0.0
    %1738 = vmatprep.mubr.f32.mxu0 0.0
    %1739 = vmatmul.mubr.f32.gmra.mrb[0].mxu0 %v1672
    %v1740 = vpop.f32.mrb[0].mxu0
    %v1741 = vadd.f32 0.0, %v1740
    %v1742 = vpop.f32.mrb[0].mxu0
    %1743 = vdwg.mxu0
    %v1745 = vsel %vm153, %v1741, 0
    %1747 = vmatprep.subr.mxu0 0.0
    %1748 = vmatpush1.msra.mxu0 %v37
    %1749 = vmatprep.subr.mxu0 0.0
    %1750 = vmatpush1.msra.mxu0 0.0
    %1751 = vmatprep.subr.mxu0 0.0
    %1752 = vmatpush1.msra.mxu0 0.0
    %1753 = vmatprep.subr.mxu0 0.0
    %1754 = vmatpush1.msra.mxu0 0.0
    %1755 = vmatprep.subr.mxu0 0.0
    %1756 = vmatpush1.msra.mxu0 0.0
    %1757 = vmatprep.subr.mxu0 0.0
    %1758 = vmatpush1.msra.mxu0 0.0
    %1759 = vmatprep.subr.mxu0 0.0
    %1760 = vmatpush1.msra.mxu0 0.0
    %1761 = vmatprep.subr.mxu0 0.0
    %1762 = vmatpush1.msra.mxu0 0.0
    %1763 = vmatprep.subr.mxu0 0.0
    %1764 = vmatpush1.msra.mxu0 0.0
    %1765 = vmatprep.subr.mxu0 0.0
    %1766 = vmatpush1.msra.mxu0 0.0
    %1767 = vmatprep.subr.mxu0 0.0
    %1768 = vmatpush1.msra.mxu0 0.0
    %1769 = vmatprep.subr.mxu0 0.0
    %1770 = vmatpush1.msra.mxu0 0.0
    %1771 = vmatprep.subr.mxu0 0.0
    %1772 = vmatpush1.msra.mxu0 0.0
    %1773 = vmatprep.subr.mxu0 0.0
    %1774 = vmatpush1.msra.mxu0 0.0
    %1775 = vmatprep.subr.mxu0 0.0
    %1776 = vmatpush1.msra.mxu0 0.0
    %1777 = vmatprep.subr.mxu0 0.0
    %1778 = vmatpush1.msra.mxu0 0.0
    %1779 = vmatprep.subr.mxu0 0.0
    %1780 = vmatpush1.msra.mxu0 0.0
    %1781 = vmatprep.subr.mxu0 0.0
    %1782 = vmatpush1.msra.mxu0 0.0
    %1783 = vmatprep.subr.mxu0 0.0
    %1784 = vmatpush1.msra.mxu0 0.0
    %1785 = vmatprep.subr.mxu0 0.0
    %1786 = vmatpush1.msra.mxu0 0.0
    %1787 = vmatprep.subr.mxu0 0.0
    %1788 = vmatpush1.msra.mxu0 0.0
    %1789 = vmatprep.subr.mxu0 0.0
    %1790 = vmatpush1.msra.mxu0 0.0
    %1791 = vmatprep.subr.mxu0 0.0
    %1792 = vmatpush1.msra.mxu0 0.0
    %1793 = vmatprep.subr.mxu0 0.0
    %1794 = vmatpush1.msra.mxu0 0.0
    %1795 = vmatprep.subr.mxu0 0.0
    %1796 = vmatpush1.msra.mxu0 0.0
    %1797 = vmatprep.subr.mxu0 0.0
    %1798 = vmatpush1.msra.mxu0 0.0
    %1799 = vmatprep.subr.mxu0 0.0
    %1800 = vmatpush1.msra.mxu0 0.0
    %1801 = vmatprep.subr.mxu0 0.0
    %1802 = vmatpush1.msra.mxu0 0.0
    %1803 = vmatprep.subr.mxu0 0.0
    %1804 = vmatpush1.msra.mxu0 0.0
    %1805 = vmatprep.subr.mxu0 0.0
    %1806 = vmatpush1.msra.mxu0 0.0
    %1807 = vmatprep.subr.mxu0 0.0
    %1808 = vmatpush1.msra.mxu0 0.0
    %1809 = vmatprep.subr.mxu0 0.0
    %1810 = vmatpush1.msra.mxu0 0.0
    %1811 = vmatprep.mubr.f32.mxu0 0.0
    %1812 = vmatmul.mubr.f32.gmra.mrb[0].mxu0 %v1745
    %v1813 = vpop.f32.mrb[0].mxu0
    %v1814 = vadd.f32 0.0, %v1813
    %v1815 = vpop.f32.mrb[0].mxu0
    %1816 = vdwg.mxu0
    %v1817 = vadd.f32 %v1576, %v1814
    %1818 = vrot.lane.b32.xlu0 %v147, 104
    %v1819 = vpop.permute.xlu0 %1818
    %1820 = vrot.lane.b32.xlu0 %v147, 72
    %v1821 = vpop.permute.xlu0 %1820
    %v1822 = vsel %vm153, %v1819, 0
    %v1824 = vsel %vm153, %v1821, 0
    %1826 = vmatprep.subr.mxu0 0.0
    %1827 = vmatpush1.xpose.msra.mxu0 %v1824
    %1828 = vmatprep.subr.mxu0 0.0
    %1829 = vmatpush1.xpose.msra.mxu0 0.0
    %1830 = vmatprep.subr.mxu0 0.0
    %1831 = vmatpush1.xpose.msra.mxu0 0.0
    %1832 = vmatprep.subr.mxu0 0.0
    %1833 = vmatpush1.xpose.msra.mxu0 0.0
    %1834 = vmatprep.subr.mxu0 0.0
    %1835 = vmatpush1.xpose.msra.mxu0 0.0
    %1836 = vmatprep.subr.mxu0 0.0
    %1837 = vmatpush1.xpose.msra.mxu0 0.0
    %1838 = vmatprep.subr.mxu0 0.0
    %1839 = vmatpush1.xpose.msra.mxu0 0.0
    %1840 = vmatprep.subr.mxu0 0.0
    %1841 = vmatpush1.xpose.msra.mxu0 0.0
    %1842 = vmatprep.subr.mxu0 0.0
    %1843 = vmatpush1.xpose.msra.mxu0 0.0
    %1844 = vmatprep.subr.mxu0 0.0
    %1845 = vmatpush1.xpose.msra.mxu0 0.0
    %1846 = vmatprep.subr.mxu0 0.0
    %1847 = vmatpush1.xpose.msra.mxu0 0.0
    %1848 = vmatprep.subr.mxu0 0.0
    %1849 = vmatpush1.xpose.msra.mxu0 0.0
    %1850 = vmatprep.subr.mxu0 0.0
    %1851 = vmatpush1.xpose.msra.mxu0 0.0
    %1852 = vmatprep.subr.mxu0 0.0
    %1853 = vmatpush1.xpose.msra.mxu0 0.0
    %1854 = vmatprep.subr.mxu0 0.0
    %1855 = vmatpush1.xpose.msra.mxu0 0.0
    %1856 = vmatprep.subr.mxu0 0.0
    %1857 = vmatpush1.xpose.msra.mxu0 0.0
    %1858 = vmatprep.subr.mxu0 0.0
    %1859 = vmatpush1.xpose.msra.mxu0 0.0
    %1860 = vmatprep.subr.mxu0 0.0
    %1861 = vmatpush1.xpose.msra.mxu0 0.0
    %1862 = vmatprep.subr.mxu0 0.0
    %1863 = vmatpush1.xpose.msra.mxu0 0.0
    %1864 = vmatprep.subr.mxu0 0.0
    %1865 = vmatpush1.xpose.msra.mxu0 0.0
    %1866 = vmatprep.subr.mxu0 0.0
    %1867 = vmatpush1.xpose.msra.mxu0 0.0
    %1868 = vmatprep.subr.mxu0 0.0
    %1869 = vmatpush1.xpose.msra.mxu0 0.0
    %1870 = vmatprep.subr.mxu0 0.0
    %1871 = vmatpush1.xpose.msra.mxu0 0.0
    %1872 = vmatprep.subr.mxu0 0.0
    %1873 = vmatpush1.xpose.msra.mxu0 0.0
    %1874 = vmatprep.subr.mxu0 0.0
    %1875 = vmatpush1.xpose.msra.mxu0 0.0
    %1876 = vmatprep.subr.mxu0 0.0
    %1877 = vmatpush1.xpose.msra.mxu0 0.0
    %1878 = vmatprep.subr.mxu0 0.0
    %1879 = vmatpush1.xpose.msra.mxu0 0.0
    %1880 = vmatprep.subr.mxu0 0.0
    %1881 = vmatpush1.xpose.msra.mxu0 0.0
    %1882 = vmatprep.subr.mxu0 0.0
    %1883 = vmatpush1.xpose.msra.mxu0 0.0
    %1884 = vmatprep.subr.mxu0 0.0
    %1885 = vmatpush1.xpose.msra.mxu0 0.0
    %1886 = vmatprep.subr.mxu0 0.0
    %1887 = vmatpush1.xpose.msra.mxu0 0.0
    %1888 = vmatprep.subr.mxu0 0.0
    %1889 = vmatpush1.xpose.msra.mxu0 0.0
    %1890 = vmatprep.mubr.f32.mxu0 0.0
    %1891 = vmatmul.mubr.f32.gmra.mrb[0].mxu0 %v1822
    %v1892 = vpop.f32.mrb[0].mxu0
    %v1893 = vadd.f32 %v18, %v1892
    %v1894 = vpop.f32.mrb[0].mxu0
    %1895 = vdwg.mxu0
    %v1896 = vsel %vm153, %v1893, -inf
    %1897 = vmax.xlane.f32.xlu0 %v1896
    %v1898 = vpop.xlane.xlu0 %1897
    %v1899 = vsub.f32 %v1893, %v1898
    %v1900 = vmul.f32 %v1899, 1.442695
    %v1901 = vpow.pop %v1900
    %v1902 = vsel %vm153, %v1901, 0.0
    %1903 = vadd.xlane.f32.xlu0 %v1902
    %v1904 = vpop.xlane.xlu0 %1903
    %v1905 = vrcp.pop %v1904
    %v1906 = vmul.f32 %v1901, %v1905
    %1907 = vrot.lane.b32.xlu0 %v147, 40
    %v1908 = vpop.permute.xlu0 %1907
    %v1911 = vsel %vm153, %v1906, 0
    %1913 = vmatprep.subr.mxu0 0.0
    %1914 = vmatpush1.msra.mxu0 %v1908
    %1915 = vmatprep.subr.mxu0 0.0
    %1916 = vmatpush1.msra.mxu0 0.0
    %1917 = vmatprep.subr.mxu0 0.0
    %1918 = vmatpush1.msra.mxu0 0.0
    %1919 = vmatprep.subr.mxu0 0.0
    %1920 = vmatpush1.msra.mxu0 0.0
    %1921 = vmatprep.subr.mxu0 0.0
    %1922 = vmatpush1.msra.mxu0 0.0
    %1923 = vmatprep.subr.mxu0 0.0
    %1924 = vmatpush1.msra.mxu0 0.0
    %1925 = vmatprep.subr.mxu0 0.0
    %1926 = vmatpush1.msra.mxu0 0.0
    %1927 = vmatprep.subr.mxu0 0.0
    %1928 = vmatpush1.msra.mxu0 0.0
    %1929 = vmatprep.subr.mxu0 0.0
    %1930 = vmatpush1.msra.mxu0 0.0
    %1931 = vmatprep.subr.mxu0 0.0
    %1932 = vmatpush1.msra.mxu0 0.0
    %1933 = vmatprep.subr.mxu0 0.0
    %1934 = vmatpush1.msra.mxu0 0.0
    %1935 = vmatprep.subr.mxu0 0.0
    %1936 = vmatpush1.msra.mxu0 0.0
    %1937 = vmatprep.subr.mxu0 0.0
    %1938 = vmatpush1.msra.mxu0 0.0
    %1939 = vmatprep.subr.mxu0 0.0
    %1940 = vmatpush1.msra.mxu0 0.0
    %1941 = vmatprep.subr.mxu0 0.0
    %1942 = vmatpush1.msra.mxu0 0.0
    %1943 = vmatprep.subr.mxu0 0.0
    %1944 = vmatpush1.msra.mxu0 0.0
    %1945 = vmatprep.subr.mxu0 0.0
    %1946 = vmatpush1.msra.mxu0 0.0
    %1947 = vmatprep.subr.mxu0 0.0
    %1948 = vmatpush1.msra.mxu0 0.0
    %1949 = vmatprep.subr.mxu0 0.0
    %1950 = vmatpush1.msra.mxu0 0.0
    %1951 = vmatprep.subr.mxu0 0.0
    %1952 = vmatpush1.msra.mxu0 0.0
    %1953 = vmatprep.subr.mxu0 0.0
    %1954 = vmatpush1.msra.mxu0 0.0
    %1955 = vmatprep.subr.mxu0 0.0
    %1956 = vmatpush1.msra.mxu0 0.0
    %1957 = vmatprep.subr.mxu0 0.0
    %1958 = vmatpush1.msra.mxu0 0.0
    %1959 = vmatprep.subr.mxu0 0.0
    %1960 = vmatpush1.msra.mxu0 0.0
    %1961 = vmatprep.subr.mxu0 0.0
    %1962 = vmatpush1.msra.mxu0 0.0
    %1963 = vmatprep.subr.mxu0 0.0
    %1964 = vmatpush1.msra.mxu0 0.0
    %1965 = vmatprep.subr.mxu0 0.0
    %1966 = vmatpush1.msra.mxu0 0.0
    %1967 = vmatprep.subr.mxu0 0.0
    %1968 = vmatpush1.msra.mxu0 0.0
    %1969 = vmatprep.subr.mxu0 0.0
    %1970 = vmatpush1.msra.mxu0 0.0
    %1971 = vmatprep.subr.mxu0 0.0
    %1972 = vmatpush1.msra.mxu0 0.0
    %1973 = vmatprep.subr.mxu0 0.0
    %1974 = vmatpush1.msra.mxu0 0.0
    %1975 = vmatprep.subr.mxu0 0.0
    %1976 = vmatpush1.msra.mxu0 0.0
    %1977 = vmatprep.mubr.f32.mxu0 0.0
    %1978 = vmatmul.mubr.f32.gmra.mrb[0].mxu0 %v1911
    %v1979 = vpop.f32.mrb[0].mxu0
    %v1980 = vadd.f32 0.0, %v1979
    %v1981 = vpop.f32.mrb[0].mxu0
    %1982 = vdwg.mxu0
    %v1984 = vsel %vm153, %v1980, 0
    %1986 = vmatprep.subr.mxu0 0.0
    %1987 = vmatpush1.msra.mxu0 %v44
    %1988 = vmatprep.subr.mxu0 0.0
    %1989 = vmatpush1.msra.mxu0 0.0
    %1990 = vmatprep.subr.mxu0 0.0
    %1991 = vmatpush1.msra.mxu0 0.0
    %1992 = vmatprep.subr.mxu0 0.0
    %1993 = vmatpush1.msra.mxu0 0.0
    %1994 = vmatprep.subr.mxu0 0.0
    %1995 = vmatpush1.msra.mxu0 0.0
    %1996 = vmatprep.subr.mxu0 0.0
    %1997 = vmatpush1.msra.mxu0 0.0
    %1998 = vmatprep.subr.mxu0 0.0
    %1999 = vmatpush1.msra.mxu0 0.0
    %2000 = vmatprep.subr.mxu0 0.0
    %2001 = vmatpush1.msra.mxu0 0.0
    %2002 = vmatprep.subr.mxu0 0.0
    %2003 = vmatpush1.msra.mxu0 0.0
    %2004 = vmatprep.subr.mxu0 0.0
    %2005 = vmatpush1.msra.mxu0 0.0
    %2006 = vmatprep.subr.mxu0 0.0
    %2007 = vmatpush1.msra.mxu0 0.0
    %2008 = vmatprep.subr.mxu0 0.0
    %2009 = vmatpush1.msra.mxu0 0.0
    %2010 = vmatprep.subr.mxu0 0.0
    %2011 = vmatpush1.msra.mxu0 0.0
    %2012 = vmatprep.subr.mxu0 0.0
    %2013 = vmatpush1.msra.mxu0 0.0
    %2014 = vmatprep.subr.mxu0 0.0
    %2015 = vmatpush1.msra.mxu0 0.0
    %2016 = vmatprep.subr.mxu0 0.0
    %2017 = vmatpush1.msra.mxu0 0.0
    %2018 = vmatprep.subr.mxu0 0.0
    %2019 = vmatpush1.msra.mxu0 0.0
    %2020 = vmatprep.subr.mxu0 0.0
    %2021 = vmatpush1.msra.mxu0 0.0
    %2022 = vmatprep.subr.mxu0 0.0
    %2023 = vmatpush1.msra.mxu0 0.0
    %2024 = vmatprep.subr.mxu0 0.0
    %2025 = vmatpush1.msra.mxu0 0.0
    %2026 = vmatprep.subr.mxu0 0.0
    %2027 = vmatpush1.msra.mxu0 0.0
    %2028 = vmatprep.subr.mxu0 0.0
    %2029 = vmatpush1.msra.mxu0 0.0
    %2030 = vmatprep.subr.mxu0 0.0
    %2031 = vmatpush1.msra.mxu0 0.0
    %2032 = vmatprep.subr.mxu0 0.0
    %2033 = vmatpush1.msra.mxu0 0.0
    %2034 = vmatprep.subr.mxu0 0.0
    %2035 = vmatpush1.msra.mxu0 0.0
    %2036 = vmatprep.subr.mxu0 0.0
    %2037 = vmatpush1.msra.mxu0 0.0
    %2038 = vmatprep.subr.mxu0 0.0
    %2039 = vmatpush1.msra.mxu0 0.0
    %2040 = vmatprep.subr.mxu0 0.0
    %2041 = vmatpush1.msra.mxu0 0.0
    %2042 = vmatprep.subr.mxu0 0.0
    %2043 = vmatpush1.msra.mxu0 0.0
    %2044 = vmatprep.subr.mxu0 0.0
    %2045 = vmatpush1.msra.mxu0 0.0
    %2046 = vmatprep.subr.mxu0 0.0
    %2047 = vmatpush1.msra.mxu0 0.0
    %2048 = vmatprep.subr.mxu0 0.0
    %2049 = vmatpush1.msra.mxu0 0.0
    %2050 = vmatprep.mubr.f32.mxu0 0.0
    %2051 = vmatmul.mubr.f32.gmra.mrb[0].mxu0 %v1984
    %v2052 = vpop.f32.mrb[0].mxu0
    %v2053 = vadd.f32 0.0, %v2052
    %v2054 = vpop.f32.mrb[0].mxu0
    %2055 = vdwg.mxu0
    %v2056 = vadd.f32 %v1817, %v2053
    %v2057 = vadd.f32 %v1103, %v51
    %v2058 = vadd.f32 %v2056, %v60
    %v2059 = vadd.f32 %v2057, %v15
    %v2060 = vadd.f32 %v2058, %v19
    %v2061 = vsel %vm68, %v2059, 0.0
    %2062 = vadd.xlane.f32.xlu0 %v2061
    %v2063 = vpop.xlane.xlu0 %2062
    %v2064 = vsel %vm68, %v2060, 0.0
    %2065 = vadd.xlane.f32.xlu0 %v2064
    %v2066 = vpop.xlane.xlu0 %2065
    %v2067 = vrcp.pop 32.0
    %v2068 = vmul.f32 %v2063, %v2067
    %v2069 = vmul.f32 %v2066, %v2067
    %v2070 = vsub.f32 %v2059, %v2068
    %v2071 = vsub.f32 %v2060, %v2069
    %v2072 = vmul.f32 %v2070, %v2070
    %v2073 = vmul.f32 %v2071, %v2071
    %v2074 = vsel %vm68, %v2072, 0.0
    %2075 = vadd.xlane.f32.xlu0 %v2074
    %v2076 = vpop.xlane.xlu0 %2075
    %v2077 = vsel %vm68, %v2073, 0.0
    %2078 = vadd.xlane.f32.xlu0 %v2077
    %v2079 = vpop.xlane.xlu0 %2078
    %v2080 = vmul.f32 %v2076, %v2067
    %v2081 = vmul.f32 %v2079, %v2067
    %v2082 = vadd.f32 %v2080, 1e-05
    %v2083 = vadd.f32 %v2081, 1e-05
    %v2084 = vrsqrt.pop %v2082
    %v2085 = vrsqrt.pop %v2083
    %v2086 = vmul.f32 %v2070, %v2084
    %v2087 = vmul.f32 %v2071, %v2085
    %v2088 = vmul.f32 %v2086, %v57
    %v2089 = vmul.f32 %v2087, %v66
    %v2090 = vadd.f32 %v2088, %v58
    %v2091 = vadd.f32 %v2089, %v67
    %v2093 = vsel %vm68, %v2090, 0
    %v2096 = vsel %vm68, %v2091, 0
    %2098 = vmatprep.subr.mxu0 0.0
    %2099 = vmatpush1.msra.mxu0 %v24
    %2100 = vmatprep.subr.mxu0 0.0
    %2101 = vmatpush1.msra.mxu0 %v31
    %2102 = vmatprep.subr.mxu0 0.0
    %2103 = vmatpush1.msra.mxu0 %v38
    %2104 = vmatprep.subr.mxu0 0.0
    %2105 = vmatpush1.msra.mxu0 %v45
    %2106 = vmatprep.subr.mxu0 0.0
    %2107 = vmatpush1.msra.mxu0 0.0
    %2108 = vmatprep.subr.mxu0 0.0
    %2109 = vmatpush1.msra.mxu0 0.0
    %2110 = vmatprep.subr.mxu0 0.0
    %2111 = vmatpush1.msra.mxu0 0.0
    %2112 = vmatprep.subr.mxu0 0.0
    %2113 = vmatpush1.msra.mxu0 0.0
    %2114 = vmatprep.subr.mxu0 0.0
    %2115 = vmatpush1.msra.mxu0 0.0
    %2116 = vmatprep.subr.mxu0 0.0
    %2117 = vmatpush1.msra.mxu0 0.0
    %2118 = vmatprep.subr.mxu0 0.0
    %2119 = vmatpush1.msra.mxu0 0.0
    %2120 = vmatprep.subr.mxu0 0.0
    %2121 = vmatpush1.msra.mxu0 0.0
    %2122 = vmatprep.subr.mxu0 0.0
    %2123 = vmatpush1.msra.mxu0 0.0
    %2124 = vmatprep.subr.mxu0 0.0
    %2125 = vmatpush1.msra.mxu0 0.0
    %2126 = vmatprep.subr.mxu0 0.0
    %2127 = vmatpush1.msra.mxu0 0.0
    %2128 = vmatprep.subr.mxu0 0.0
    %2129 = vmatpush1.msra.mxu0 0.0
    %2130 = vmatprep.subr.mxu0 0.0
    %2131 = vmatpush1.msra.mxu0 0.0
    %2132 = vmatprep.subr.mxu0 0.0
    %2133 = vmatpush1.msra.mxu0 0.0
    %2134 = vmatprep.subr.mxu0 0.0
    %2135 = vmatpush1.msra.mxu0 0.0
    %2136 = vmatprep.subr.mxu0 0.0
    %2137 = vmatpush1.msra.mxu0 0.0
    %2138 = vmatprep.subr.mxu0 0.0
    %2139 = vmatpush1.msra.mxu0 0.0
    %2140 = vmatprep.subr.mxu0 0.0
    %2141 = vmatpush1.msra.mxu0 0.0
    %2142 = vmatprep.subr.mxu0 0.0
    %2143 = vmatpush1.msra.mxu0 0.0
    %2144 = vmatprep.subr.mxu0 0.0
    %2145 = vmatpush1.msra.mxu0 0.0
    %2146 = vmatprep.subr.mxu0 0.0
    %2147 = vmatpush1.msra.mxu0 0.0
    %2148 = vmatprep.subr.mxu0 0.0
    %2149 = vmatpush1.msra.mxu0 0.0
    %2150 = vmatprep.subr.mxu0 0.0
    %2151 = vmatpush1.msra.mxu0 0.0
    %2152 = vmatprep.subr.mxu0 0.0
    %2153 = vmatpush1.msra.mxu0 0.0
    %2154 = vmatprep.subr.mxu0 0.0
    %2155 = vmatpush1.msra.mxu0 0.0
    %2156 = vmatprep.subr.mxu0 0.0
    %2157 = vmatpush1.msra.mxu0 0.0
    %2158 = vmatprep.subr.mxu0 0.0
    %2159 = vmatpush1.msra.mxu0 0.0
    %2160 = vmatprep.subr.mxu0 0.0
    %2161 = vmatpush1.msra.mxu0 0.0
    %2162 = vmatprep.mubr.f32.mxu0 0.0
    %2163 = vmatmul.mubr.f32.gmra.mrb[0].mxu0 %v2093
    %v2164 = vpop.f32.mrb[0].mxu0
    %v2165 = vadd.f32 %v52, %v2164
    %v2166 = vpop.f32.mrb[0].mxu0
    %2167 = vmatprep.mubr.f32.mxu0 0.0
    %2168 = vmatmul.mubr.f32.gmra.mrb[0].mxu0 %v2096
    %v2169 = vpop.f32.mrb[0].mxu0
    %v2170 = vadd.f32 %v61, %v2169
    %v2171 = vpop.f32.mrb[0].mxu0
    %2172 = vdwg.mxu0
    %v2174 = vsel %vm68, %v16, 0
    %v2177 = vsel %vm68, %v20, 0
    %2179 = vmatprep.subr.mxu0 0.0
    %2180 = vmatpush1.msra.mxu0 %v25
    %2181 = vmatprep.subr.mxu0 0.0
    %2182 = vmatpush1.msra.mxu0 %v32
    %2183 = vmatprep.subr.mxu0 0.0
    %2184 = vmatpush1.msra.mxu0 %v39
    %2185 = vmatprep.subr.mxu0 0.0
    %2186 = vmatpush1.msra.mxu0 %v46
    %2187 = vmatprep.subr.mxu0 0.0
    %2188 = vmatpush1.msra.mxu0 0.0
    %2189 = vmatprep.subr.mxu0 0.0
    %2190 = vmatpush1.msra.mxu0 0.0
    %2191 = vmatprep.subr.mxu0 0.0
    %2192 = vmatpush1.msra.mxu0 0.0
    %2193 = vmatprep.subr.mxu0 0.0
    %2194 = vmatpush1.msra.mxu0 0.0
    %2195 = vmatprep.subr.mxu0 0.0
    %2196 = vmatpush1.msra.mxu0 0.0
    %2197 = vmatprep.subr.mxu0 0.0
    %2198 = vmatpush1.msra.mxu0 0.0
    %2199 = vmatprep.subr.mxu0 0.0
    %2200 = vmatpush1.msra.mxu0 0.0
    %2201 = vmatprep.subr.mxu0 0.0
    %2202 = vmatpush1.msra.mxu0 0.0
    %2203 = vmatprep.subr.mxu0 0.0
    %2204 = vmatpush1.msra.mxu0 0.0
    %2205 = vmatprep.subr.mxu0 0.0
    %2206 = vmatpush1.msra.mxu0 0.0
    %2207 = vmatprep.subr.mxu0 0.0
    %2208 = vmatpush1.msra.mxu0 0.0
    %2209 = vmatprep.subr.mxu0 0.0
    %2210 = vmatpush1.msra.mxu0 0.0
    %2211 = vmatprep.subr.mxu0 0.0
    %2212 = vmatpush1.msra.mxu0 0.0
    %2213 = vmatprep.subr.mxu0 0.0
    %2214 = vmatpush1.msra.mxu0 0.0
    %2215 = vmatprep.subr.mxu0 0.0
    %2216 = vmatpush1.msra.mxu0 0.0
    %2217 = vmatprep.subr.mxu0 0.0
    %2218 = vmatpush1.msra.mxu0 0.0
    %2219 = vmatprep.subr.mxu0 0.0
    %2220 = vmatpush1.msra.mxu0 0.0
    %2221 = vmatprep.subr.mxu0 0.0
    %2222 = vmatpush1.msra.mxu0 0.0
    %2223 = vmatprep.subr.mxu0 0.0
    %2224 = vmatpush1.msra.mxu0 0.0
    %2225 = vmatprep.subr.mxu0 0.0
    %2226 = vmatpush1.msra.mxu0 0.0
    %2227 = vmatprep.subr.mxu0 0.0
    %2228 = vmatpush1.msra.mxu0 0.0
    %2229 = vmatprep.subr.mxu0 0.0
    %2230 = vmatpush1.msra.mxu0 0.0
    %2231 = vmatprep.subr.mxu0 0.0
    %2232 = vmatpush1.msra.mxu0 0.0
    %2233 = vmatprep.subr.mxu0 0.0
    %2234 = vmatpush1.msra.mxu0 0.0
    %2235 = vmatprep.subr.mxu0 0.0
    %2236 = vmatpush1.msra.mxu0 0.0
    %2237 = vmatprep.subr.mxu0 0.0
    %2238 = vmatpush1.msra.mxu0 0.0
    %2239 = vmatprep.subr.mxu0 0.0
    %2240 = vmatpush1.msra.mxu0 0.0
    %2241 = vmatprep.subr.mxu0 0.0
    %2242 = vmatpush1.msra.mxu0 0.0
    %2243 = vmatprep.mubr.f32.mxu0 0.0
    %2244 = vmatmul.mubr.f32.gmra.mrb[0].mxu0 %v2174
    %v2245 = vpop.f32.mrb[0].mxu0
    %v2246 = vadd.f32 %v53, %v2245
    %v2247 = vpop.f32.mrb[0].mxu0
    %2248 = vmatprep.mubr.f32.mxu0 0.0
    %2249 = vmatmul.mubr.f32.gmra.mrb[0].mxu0 %v2177
    %v2250 = vpop.f32.mrb[0].mxu0
    %v2251 = vadd.f32 %v62, %v2250
    %v2252 = vpop.f32.mrb[0].mxu0
    %2253 = vdwg.mxu0
    %v2255 = vsel %vm153, %v2165, 0
    %v2258 = vsel %vm153, %v2246, 0
    %2260 = vmatprep.subr.mxu0 0.0
    %2261 = vmatpush1.xpose.msra.mxu0 %v2258
    %2262 = vmatprep.subr.mxu0 0.0
    %2263 = vmatpush1.xpose.msra.mxu0 0.0
    %2264 = vmatprep.subr.mxu0 0.0
    %2265 = vmatpush1.xpose.msra.mxu0 0.0
    %2266 = vmatprep.subr.mxu0 0.0
    %2267 = vmatpush1.xpose.msra.mxu0 0.0
    %2268 = vmatprep.subr.mxu0 0.0
    %2269 = vmatpush1.xpose.msra.mxu0 0.0
    %2270 = vmatprep.subr.mxu0 0.0
    %2271 = vmatpush1.xpose.msra.mxu0 0.0
    %2272 = vmatprep.subr.mxu0 0.0
    %2273 = vmatpush1.xpose.msra.mxu0 0.0
    %2274 = vmatprep.subr.mxu0 0.0
    %2275 = vmatpush1.xpose.msra.mxu0 0.0
    %2276 = vmatprep.subr.mxu0 0.0
    %2277 = vmatpush1.xpose.msra.mxu0 0.0
    %2278 = vmatprep.subr.mxu0 0.0
    %2279 = vmatpush1.xpose.msra.mxu0 0.0
    %2280 = vmatprep.subr.mxu0 0.0
    %2281 = vmatpush1.xpose.msra.mxu0 0.0
    %2282 = vmatprep.subr.mxu0 0.0
    %2283 = vmatpush1.xpose.msra.mxu0 0.0
    %2284 = vmatprep.subr.mxu0 0.0
    %2285 = vmatpush1.xpose.msra.mxu0 0.0
    %2286 = vmatprep.subr.mxu0 0.0
    %2287 = vmatpush1.xpose.msra.mxu0 0.0
    %2288 = vmatprep.subr.mxu0 0.0
    %2289 = vmatpush1.xpose.msra.mxu0 0.0
    %2290 = vmatprep.subr.mxu0 0.0
    %2291 = vmatpush1.xpose.msra.mxu0 0.0
    %2292 = vmatprep.subr.mxu0 0.0
    %2293 = vmatpush1.xpose.msra.mxu0 0.0
    %2294 = vmatprep.subr.mxu0 0.0
    %2295 = vmatpush1.xpose.msra.mxu0 0.0
    %2296 = vmatprep.subr.mxu0 0.0
    %2297 = vmatpush1.xpose.msra.mxu0 0.0
    %2298 = vmatprep.subr.mxu0 0.0
    %2299 = vmatpush1.xpose.msra.mxu0 0.0
    %2300 = vmatprep.subr.mxu0 0.0
    %2301 = vmatpush1.xpose.msra.mxu0 0.0
    %2302 = vmatprep.subr.mxu0 0.0
    %2303 = vmatpush1.xpose.msra.mxu0 0.0
    %2304 = vmatprep.subr.mxu0 0.0
    %2305 = vmatpush1.xpose.msra.mxu0 0.0
    %2306 = vmatprep.subr.mxu0 0.0
    %2307 = vmatpush1.xpose.msra.mxu0 0.0
    %2308 = vmatprep.subr.mxu0 0.0
    %2309 = vmatpush1.xpose.msra.mxu0 0.0
    %2310 = vmatprep.subr.mxu0 0.0
    %2311 = vmatpush1.xpose.msra.mxu0 0.0
    %2312 = vmatprep.subr.mxu0 0.0
    %2313 = vmatpush1.xpose.msra.mxu0 0.0
    %2314 = vmatprep.subr.mxu0 0.0
    %2315 = vmatpush1.xpose.msra.mxu0 0.0
    %2316 = vmatprep.subr.mxu0 0.0
    %2317 = vmatpush1.xpose.msra.mxu0 0.0
    %2318 = vmatprep.subr.mxu0 0.0
    %2319 = vmatpush1.xpose.msra.mxu0 0.0
    %2320 = vmatprep.subr.mxu0 0.0
    %2321 = vmatpush1.xpose.msra.mxu0 0.0
    %2322 = vmatprep.subr.mxu0 0.0
    %2323 = vmatpush1.xpose.msra.mxu0 0.0
    %2324 = vmatprep.mubr.f32.mxu0 0.0
    %2325 = vmatmul.mubr.f32.gmra.mrb[0].mxu0 %v2255
    %v2326 = vpop.f32.mrb[0].mxu0
    %v2327 = vadd.f32 %v17, %v2326
    %v2328 = vpop.f32.mrb[0].mxu0
    %2329 = vdwg.mxu0
    %v2330 = vsel %vm153, %v2327, -inf
    %2331 = vmax.xlane.f32.xlu0 %v2330
    %v2332 = vpop.xlane.xlu0 %2331
    %v2333 = vsub.f32 %v2327, %v2332
    %v2334 = vmul.f32 %v2333, 1.442695
    %v2335 = vpow.pop %v2334
    %v2336 = vsel %vm153, %v2335, 0.0
    %2337 = vadd.xlane.f32.xlu0 %v2336
    %v2338 = vpop.xlane.xlu0 %2337
    %v2339 = vrcp.pop %v2338
    %v2340 = vmul.f32 %v2335, %v2339
    %2341 = vrot.lane.b32.xlu0 %v2246, 96
    %v2342 = vpop.permute.xlu0 %2341
    %v2345 = vsel %vm153, %v2340, 0
    %2347 = vmatprep.subr.mxu0 0.0
    %2348 = vmatpush1.msra.mxu0 %v2342
    %2349 = vmatprep.subr.mxu0 0.0
    %2350 = vmatpush1.msra.mxu0 0.0
    %2351 = vmatprep.subr.mxu0 0.0
    %2352 = vmatpush1.msra.mxu0 0.0
    %2353 = vmatprep.subr.mxu0 0.0
    %2354 = vmatpush1.msra.mxu0 0.0
    %2355 = vmatprep.subr.mxu0 0.0
    %2356 = vmatpush1.msra.mxu0 0.0
    %2357 = vmatprep.subr.mxu0 0.0
    %2358 = vmatpush1.msra.mxu0 0.0
    %2359 = vmatprep.subr.mxu0 0.0
    %2360 = vmatpush1.msra.mxu0 0.0
    %2361 = vmatprep.subr.mxu0 0.0
    %2362 = vmatpush1.msra.mxu0 0.0
    %2363 = vmatprep.subr.mxu0 0.0
    %2364 = vmatpush1.msra.mxu0 0.0
    %2365 = vmatprep.subr.mxu0 0.0
    %2366 = vmatpush1.msra.mxu0 0.0
    %2367 = vmatprep.subr.mxu0 0.0
    %2368 = vmatpush1.msra.mxu0 0.0
    %2369 = vmatprep.subr.mxu0 0.0
    %2370 = vmatpush1.msra.mxu0 0.0
    %2371 = vmatprep.subr.mxu0 0.0
    %2372 = vmatpush1.msra.mxu0 0.0
    %2373 = vmatprep.subr.mxu0 0.0
    %2374 = vmatpush1.msra.mxu0 0.0
    %2375 = vmatprep.subr.mxu0 0.0
    %2376 = vmatpush1.msra.mxu0 0.0
    %2377 = vmatprep.subr.mxu0 0.0
    %2378 = vmatpush1.msra.mxu0 0.0
    %2379 = vmatprep.subr.mxu0 0.0
    %2380 = vmatpush1.msra.mxu0 0.0
    %2381 = vmatprep.subr.mxu0 0.0
    %2382 = vmatpush1.msra.mxu0 0.0
    %2383 = vmatprep.subr.mxu0 0.0
    %2384 = vmatpush1.msra.mxu0 0.0
    %2385 = vmatprep.subr.mxu0 0.0
    %2386 = vmatpush1.msra.mxu0 0.0
    %2387 = vmatprep.subr.mxu0 0.0
    %2388 = vmatpush1.msra.mxu0 0.0
    %2389 = vmatprep.subr.mxu0 0.0
    %2390 = vmatpush1.msra.mxu0 0.0
    %2391 = vmatprep.subr.mxu0 0.0
    %2392 = vmatpush1.msra.mxu0 0.0
    %2393 = vmatprep.subr.mxu0 0.0
    %2394 = vmatpush1.msra.mxu0 0.0
    %2395 = vmatprep.subr.mxu0 0.0
    %2396 = vmatpush1.msra.mxu0 0.0
    %2397 = vmatprep.subr.mxu0 0.0
    %2398 = vmatpush1.msra.mxu0 0.0
    %2399 = vmatprep.subr.mxu0 0.0
    %2400 = vmatpush1.msra.mxu0 0.0
    %2401 = vmatprep.subr.mxu0 0.0
    %2402 = vmatpush1.msra.mxu0 0.0
    %2403 = vmatprep.subr.mxu0 0.0
    %2404 = vmatpush1.msra.mxu0 0.0
    %2405 = vmatprep.subr.mxu0 0.0
    %2406 = vmatpush1.msra.mxu0 0.0
    %2407 = vmatprep.subr.mxu0 0.0
    %2408 = vmatpush1.msra.mxu0 0.0
    %2409 = vmatprep.subr.mxu0 0.0
    %2410 = vmatpush1.msra.mxu0 0.0
    %2411 = vmatprep.mubr.f32.mxu0 0.0
    %2412 = vmatmul.mubr.f32.gmra.mrb[0].mxu0 %v2345
    %v2413 = vpop.f32.mrb[0].mxu0
    %v2414 = vadd.f32 0.0, %v2413
    %v2415 = vpop.f32.mrb[0].mxu0
    %2416 = vdwg.mxu0
    %2417 = vrot.lane.b32.xlu0 %v2165, 120
    %v2418 = vpop.permute.xlu0 %2417
    %2419 = vrot.lane.b32.xlu0 %v2246, 120
    %v2420 = vpop.permute.xlu0 %2419
    %v2421 = vsel %vm153, %v2418, 0
    %v2423 = vsel %vm153, %v2420, 0
    %2425 = vmatprep.subr.mxu0 0.0
    %2426 = vmatpush1.xpose.msra.mxu0 %v2423
    %2427 = vmatprep.subr.mxu0 0.0
    %2428 = vmatpush1.xpose.msra.mxu0 0.0
    %2429 = vmatprep.subr.mxu0 0.0
    %2430 = vmatpush1.xpose.msra.mxu0 0.0
    %2431 = vmatprep.subr.mxu0 0.0
    %2432 = vmatpush1.xpose.msra.mxu0 0.0
    %2433 = vmatprep.subr.mxu0 0.0
    %2434 = vmatpush1.xpose.msra.mxu0 0.0
    %2435 = vmatprep.subr.mxu0 0.0
    %2436 = vmatpush1.xpose.msra.mxu0 0.0
    %2437 = vmatprep.subr.mxu0 0.0
    %2438 = vmatpush1.xpose.msra.mxu0 0.0
    %2439 = vmatprep.subr.mxu0 0.0
    %2440 = vmatpush1.xpose.msra.mxu0 0.0
    %2441 = vmatprep.subr.mxu0 0.0
    %2442 = vmatpush1.xpose.msra.mxu0 0.0
    %2443 = vmatprep.subr.mxu0 0.0
    %2444 = vmatpush1.xpose.msra.mxu0 0.0
    %2445 = vmatprep.subr.mxu0 0.0
    %2446 = vmatpush1.xpose.msra.mxu0 0.0
    %2447 = vmatprep.subr.mxu0 0.0
    %2448 = vmatpush1.xpose.msra.mxu0 0.0
    %2449 = vmatprep.subr.mxu0 0.0
    %2450 = vmatpush1.xpose.msra.mxu0 0.0
    %2451 = vmatprep.subr.mxu0 0.0
    %2452 = vmatpush1.xpose.msra.mxu0 0.0
    %2453 = vmatprep.subr.mxu0 0.0
    %2454 = vmatpush1.xpose.msra.mxu0 0.0
    %2455 = vmatprep.subr.mxu0 0.0
    %2456 = vmatpush1.xpose.msra.mxu0 0.0
    %2457 = vmatprep.subr.mxu0 0.0
    %2458 = vmatpush1.xpose.msra.mxu0 0.0
    %2459 = vmatprep.subr.mxu0 0.0
    %2460 = vmatpush1.xpose.msra.mxu0 0.0
    %2461 = vmatprep.subr.mxu0 0.0
    %2462 = vmatpush1.xpose.msra.mxu0 0.0
    %2463 = vmatprep.subr.mxu0 0.0
    %2464 = vmatpush1.xpose.msra.mxu0 0.0
    %2465 = vmatprep.subr.mxu0 0.0
    %2466 = vmatpush1.xpose.msra.mxu0 0.0
    %2467 = vmatprep.subr.mxu0 0.0
    %2468 = vmatpush1.xpose.msra.mxu0 0.0
    %2469 = vmatprep.subr.mxu0 0.0
    %2470 = vmatpush1.xpose.msra.mxu0 0.0
    %2471 = vmatprep.subr.mxu0 0.0
    %2472 = vmatpush1.xpose.msra.mxu0 0.0
    %2473 = vmatprep.subr.mxu0 0.0
    %2474 = vmatpush1.xpose.msra.mxu0 0.0
    %2475 = vmatprep.subr.mxu0 0.0
    %2476 = vmatpush1.xpose.msra.mxu0 0.0
    %2477 = vmatprep.subr.mxu0 0.0
    %2478 = vmatpush1.xpose.msra.mxu0 0.0
    %2479 = vmatprep.subr.mxu0 0.0
    %2480 = vmatpush1.xpose.msra.mxu0 0.0
    %2481 = vmatprep.subr.mxu0 0.0
    %2482 = vmatpush1.xpose.msra.mxu0 0.0
    %2483 = vmatprep.subr.mxu0 0.0
    %2484 = vmatpush1.xpose.msra.mxu0 0.0
    %2485 = vmatprep.subr.mxu0 0.0
    %2486 = vmatpush1.xpose.msra.mxu0 0.0
    %2487 = vmatprep.subr.mxu0 0.0
    %2488 = vmatpush1.xpose.msra.mxu0 0.0
    %2489 = vmatprep.mubr.f32.mxu0 0.0
    %2490 = vmatmul.mubr.f32.gmra.mrb[0].mxu0 %v2421
    %v2491 = vpop.f32.mrb[0].mxu0
    %v2492 = vadd.f32 %v17, %v2491
    %v2493 = vpop.f32.mrb[0].mxu0
    %2494 = vdwg.mxu0
    %v2495 = vsel %vm153, %v2492, -inf
    %2496 = vmax.xlane.f32.xlu0 %v2495
    %v2497 = vpop.xlane.xlu0 %2496
    %v2498 = vsub.f32 %v2492, %v2497
    %v2499 = vmul.f32 %v2498, 1.442695
    %v2500 = vpow.pop %v2499
    %v2501 = vsel %vm153, %v2500, 0.0
    %2502 = vadd.xlane.f32.xlu0 %v2501
    %v2503 = vpop.xlane.xlu0 %2502
    %v2504 = vrcp.pop %v2503
    %v2505 = vmul.f32 %v2500, %v2504
    %2506 = vrot.lane.b32.xlu0 %v2246, 88
    %v2507 = vpop.permute.xlu0 %2506
    %v2510 = vsel %vm153, %v2505, 0
    %2512 = vmatprep.subr.mxu0 0.0
    %2513 = vmatpush1.msra.mxu0 %v2507
    %2514 = vmatprep.subr.mxu0 0.0
    %2515 = vmatpush1.msra.mxu0 0.0
    %2516 = vmatprep.subr.mxu0 0.0
    %2517 = vmatpush1.msra.mxu0 0.0
    %2518 = vmatprep.subr.mxu0 0.0
    %2519 = vmatpush1.msra.mxu0 0.0
    %2520 = vmatprep.subr.mxu0 0.0
    %2521 = vmatpush1.msra.mxu0 0.0
    %2522 = vmatprep.subr.mxu0 0.0
    %2523 = vmatpush1.msra.mxu0 0.0
    %2524 = vmatprep.subr.mxu0 0.0
    %2525 = vmatpush1.msra.mxu0 0.0
    %2526 = vmatprep.subr.mxu0 0.0
    %2527 = vmatpush1.msra.mxu0 0.0
    %2528 = vmatprep.subr.mxu0 0.0
    %2529 = vmatpush1.msra.mxu0 0.0
    %2530 = vmatprep.subr.mxu0 0.0
    %2531 = vmatpush1.msra.mxu0 0.0
    %2532 = vmatprep.subr.mxu0 0.0
    %2533 = vmatpush1.msra.mxu0 0.0
    %2534 = vmatprep.subr.mxu0 0.0
    %2535 = vmatpush1.msra.mxu0 0.0
    %2536 = vmatprep.subr.mxu0 0.0
    %2537 = vmatpush1.msra.mxu0 0.0
    %2538 = vmatprep.subr.mxu0 0.0
    %2539 = vmatpush1.msra.mxu0 0.0
    %2540 = vmatprep.subr.mxu0 0.0
    %2541 = vmatpush1.msra.mxu0 0.0
    %2542 = vmatprep.subr.mxu0 0.0
    %2543 = vmatpush1.msra.mxu0 0.0
    %2544 = vmatprep.subr.mxu0 0.0
    %2545 = vmatpush1.msra.mxu0 0.0
    %2546 = vmatprep.subr.mxu0 0.0
    %2547 = vmatpush1.msra.mxu0 0.0
    %2548 = vmatprep.subr.mxu0 0.0
    %2549 = vmatpush1.msra.mxu0 0.0
    %2550 = vmatprep.subr.mxu0 0.0
    %2551 = vmatpush1.msra.mxu0 0.0
    %2552 = vmatprep.subr.mxu0 0.0
    %2553 = vmatpush1.msra.mxu0 0.0
    %2554 = vmatprep.subr.mxu0 0.0
    %2555 = vmatpush1.msra.mxu0 0.0
    %2556 = vmatprep.subr.mxu0 0.0
    %2557 = vmatpush1.msra.mxu0 0.0
    %2558 = vmatprep.subr.mxu0 0.0
    %2559 = vmatpush1.msra.mxu0 0.0
    %2560 = vmatprep.subr.mxu0 0.0
    %2561 = vmatpush1.msra.mxu0 0.0
    %2562 = vmatprep.subr.mxu0 0.0
    %2563 = vmatpush1.msra.mxu0 0.0
    %2564 = vmatprep.subr.mxu0 0.0
    %2565 = vmatpush1.msra.mxu0 0.0
    %2566 = vmatprep.subr.mxu0 0.0
    %2567 = vmatpush1.msra.mxu0 0.0
    %2568 = vmatprep.subr.mxu0 0.0
    %2569 = vmatpush1.msra.mxu0 0.0
    %2570 = vmatprep.subr.mxu0 0.0
    %2571 = vmatpush1.msra.mxu0 0.0
    %2572 = vmatprep.subr.mxu0 0.0
    %2573 = vmatpush1.msra.mxu0 0.0
    %2574 = vmatprep.subr.mxu0 0.0
    %2575 = vmatpush1.msra.mxu0 0.0
    %2576 = vmatprep.mubr.f32.mxu0 0.0
    %2577 = vmatmul.mubr.f32.gmra.mrb[0].mxu0 %v2510
    %v2578 = vpop.f32.mrb[0].mxu0
    %v2579 = vadd.f32 0.0, %v2578
    %v2580 = vpop.f32.mrb[0].mxu0
    %2581 = vdwg.mxu0
    %v2583 = vsel %vm153, %v2579, 0
    %2585 = vmatprep.subr.mxu0 0.0
    %2586 = vmatpush1.msra.mxu0 %v33
    %2587 = vmatprep.subr.mxu0 0.0
    %2588 = vmatpush1.msra.mxu0 0.0
    %2589 = vmatprep.subr.mxu0 0.0
    %2590 = vmatpush1.msra.mxu0 0.0
    %2591 = vmatprep.subr.mxu0 0.0
    %2592 = vmatpush1.msra.mxu0 0.0
    %2593 = vmatprep.subr.mxu0 0.0
    %2594 = vmatpush1.msra.mxu0 0.0
    %2595 = vmatprep.subr.mxu0 0.0
    %2596 = vmatpush1.msra.mxu0 0.0
    %2597 = vmatprep.subr.mxu0 0.0
    %2598 = vmatpush1.msra.mxu0 0.0
    %2599 = vmatprep.subr.mxu0 0.0
    %2600 = vmatpush1.msra.mxu0 0.0
    %2601 = vmatprep.subr.mxu0 0.0
    %2602 = vmatpush1.msra.mxu0 0.0
    %2603 = vmatprep.subr.mxu0 0.0
    %2604 = vmatpush1.msra.mxu0 0.0
    %2605 = vmatprep.subr.mxu0 0.0
    %2606 = vmatpush1.msra.mxu0 0.0
    %2607 = vmatprep.subr.mxu0 0.0
    %2608 = vmatpush1.msra.mxu0 0.0
    %2609 = vmatprep.subr.mxu0 0.0
    %2610 = vmatpush1.msra.mxu0 0.0
    %2611 = vmatprep.subr.mxu0 0.0
    %2612 = vmatpush1.msra.mxu0 0.0
    %2613 = vmatprep.subr.mxu0 0.0
    %2614 = vmatpush1.msra.mxu0 0.0
    %2615 = vmatprep.subr.mxu0 0.0
    %2616 = vmatpush1.msra.mxu0 0.0
    %2617 = vmatprep.subr.mxu0 0.0
    %2618 = vmatpush1.msra.mxu0 0.0
    %2619 = vmatprep.subr.mxu0 0.0
    %2620 = vmatpush1.msra.mxu0 0.0
    %2621 = vmatprep.subr.mxu0 0.0
    %2622 = vmatpush1.msra.mxu0 0.0
    %2623 = vmatprep.subr.mxu0 0.0
    %2624 = vmatpush1.msra.mxu0 0.0
    %2625 = vmatprep.subr.mxu0 0.0
    %2626 = vmatpush1.msra.mxu0 0.0
    %2627 = vmatprep.subr.mxu0 0.0
    %2628 = vmatpush1.msra.mxu0 0.0
    %2629 = vmatprep.subr.mxu0 0.0
    %2630 = vmatpush1.msra.mxu0 0.0
    %2631 = vmatprep.subr.mxu0 0.0
    %2632 = vmatpush1.msra.mxu0 0.0
    %2633 = vmatprep.subr.mxu0 0.0
    %2634 = vmatpush1.msra.mxu0 0.0
    %2635 = vmatprep.subr.mxu0 0.0
    %2636 = vmatpush1.msra.mxu0 0.0
    %2637 = vmatprep.subr.mxu0 0.0
    %2638 = vmatpush1.msra.mxu0 0.0
    %2639 = vmatprep.subr.mxu0 0.0
    %2640 = vmatpush1.msra.mxu0 0.0
    %2641 = vmatprep.subr.mxu0 0.0
    %2642 = vmatpush1.msra.mxu0 0.0
    %2643 = vmatprep.subr.mxu0 0.0
    %2644 = vmatpush1.msra.mxu0 0.0
    %2645 = vmatprep.subr.mxu0 0.0
    %2646 = vmatpush1.msra.mxu0 0.0
    %2647 = vmatprep.subr.mxu0 0.0
    %2648 = vmatpush1.msra.mxu0 0.0
    %2649 = vmatprep.mubr.f32.mxu0 0.0
    %2650 = vmatmul.mubr.f32.gmra.mrb[0].mxu0 %v2583
    %v2651 = vpop.f32.mrb[0].mxu0
    %v2652 = vadd.f32 0.0, %v2651
    %v2653 = vpop.f32.mrb[0].mxu0
    %2654 = vdwg.mxu0
    %v2656 = vsel %vm153, %v2414, 0
    %2658 = vmatprep.subr.mxu0 0.0
    %2659 = vmatpush1.msra.mxu0 %v26
    %2660 = vmatprep.subr.mxu0 0.0
    %2661 = vmatpush1.msra.mxu0 0.0
    %2662 = vmatprep.subr.mxu0 0.0
    %2663 = vmatpush1.msra.mxu0 0.0
    %2664 = vmatprep.subr.mxu0 0.0
    %2665 = vmatpush1.msra.mxu0 0.0
    %2666 = vmatprep.subr.mxu0 0.0
    %2667 = vmatpush1.msra.mxu0 0.0
    %2668 = vmatprep.subr.mxu0 0.0
    %2669 = vmatpush1.msra.mxu0 0.0
    %2670 = vmatprep.subr.mxu0 0.0
    %2671 = vmatpush1.msra.mxu0 0.0
    %2672 = vmatprep.subr.mxu0 0.0
    %2673 = vmatpush1.msra.mxu0 0.0
    %2674 = vmatprep.subr.mxu0 0.0
    %2675 = vmatpush1.msra.mxu0 0.0
    %2676 = vmatprep.subr.mxu0 0.0
    %2677 = vmatpush1.msra.mxu0 0.0
    %2678 = vmatprep.subr.mxu0 0.0
    %2679 = vmatpush1.msra.mxu0 0.0
    %2680 = vmatprep.subr.mxu0 0.0
    %2681 = vmatpush1.msra.mxu0 0.0
    %2682 = vmatprep.subr.mxu0 0.0
    %2683 = vmatpush1.msra.mxu0 0.0
    %2684 = vmatprep.subr.mxu0 0.0
    %2685 = vmatpush1.msra.mxu0 0.0
    %2686 = vmatprep.subr.mxu0 0.0
    %2687 = vmatpush1.msra.mxu0 0.0
    %2688 = vmatprep.subr.mxu0 0.0
    %2689 = vmatpush1.msra.mxu0 0.0
    %2690 = vmatprep.subr.mxu0 0.0
    %2691 = vmatpush1.msra.mxu0 0.0
    %2692 = vmatprep.subr.mxu0 0.0
    %2693 = vmatpush1.msra.mxu0 0.0
    %2694 = vmatprep.subr.mxu0 0.0
    %2695 = vmatpush1.msra.mxu0 0.0
    %2696 = vmatprep.subr.mxu0 0.0
    %2697 = vmatpush1.msra.mxu0 0.0
    %2698 = vmatprep.subr.mxu0 0.0
    %2699 = vmatpush1.msra.mxu0 0.0
    %2700 = vmatprep.subr.mxu0 0.0
    %2701 = vmatpush1.msra.mxu0 0.0
    %2702 = vmatprep.subr.mxu0 0.0
    %2703 = vmatpush1.msra.mxu0 0.0
    %2704 = vmatprep.subr.mxu0 0.0
    %2705 = vmatpush1.msra.mxu0 0.0
    %2706 = vmatprep.subr.mxu0 0.0
    %2707 = vmatpush1.msra.mxu0 0.0
    %2708 = vmatprep.subr.mxu0 0.0
    %2709 = vmatpush1.msra.mxu0 0.0
    %2710 = vmatprep.subr.mxu0 0.0
    %2711 = vmatpush1.msra.mxu0 0.0
    %2712 = vmatprep.subr.mxu0 0.0
    %2713 = vmatpush1.msra.mxu0 0.0
    %2714 = vmatprep.subr.mxu0 0.0
    %2715 = vmatpush1.msra.mxu0 0.0
    %2716 = vmatprep.subr.mxu0 0.0
    %2717 = vmatpush1.msra.mxu0 0.0
    %2718 = vmatprep.subr.mxu0 0.0
    %2719 = vmatpush1.msra.mxu0 0.0
    %2720 = vmatprep.subr.mxu0 0.0
    %2721 = vmatpush1.msra.mxu0 0.0
    %2722 = vmatprep.mubr.f32.mxu0 0.0
    %2723 = vmatmul.mubr.f32.gmra.mrb[0].mxu0 %v2656
    %v2724 = vpop.f32.mrb[0].mxu0
    %v2725 = vadd.f32 %v2652, %v2724
    %v2726 = vpop.f32.mrb[0].mxu0
    %2727 = vdwg.mxu0
    %2728 = vrot.lane.b32.xlu0 %v2165, 112
    %v2729 = vpop.permute.xlu0 %2728
    %2730 = vrot.lane.b32.xlu0 %v2246, 112
    %v2731 = vpop.permute.xlu0 %2730
    %v2732 = vsel %vm153, %v2729, 0
    %v2734 = vsel %vm153, %v2731, 0
    %2736 = vmatprep.subr.mxu0 0.0
    %2737 = vmatpush1.xpose.msra.mxu0 %v2734
    %2738 = vmatprep.subr.mxu0 0.0
    %2739 = vmatpush1.xpose.msra.mxu0 0.0
    %2740 = vmatprep.subr.mxu0 0.0
    %2741 = vmatpush1.xpose.msra.mxu0 0.0
    %2742 = vmatprep.subr.mxu0 0.0
    %2743 = vmatpush1.xpose.msra.mxu0 0.0
    %2744 = vmatprep.subr.mxu0 0.0
    %2745 = vmatpush1.xpose.msra.mxu0 0.0
    %2746 = vmatprep.subr.mxu0 0.0
    %2747 = vmatpush1.xpose.msra.mxu0 0.0
    %2748 = vmatprep.subr.mxu0 0.0
    %2749 = vmatpush1.xpose.msra.mxu0 0.0
    %2750 = vmatprep.subr.mxu0 0.0
    %2751 = vmatpush1.xpose.msra.mxu0 0.0
    %2752 = vmatprep.subr.mxu0 0.0
    %2753 = vmatpush1.xpose.msra.mxu0 0.0
    %2754 = vmatprep.subr.mxu0 0.0
    %2755 = vmatpush1.xpose.msra.mxu0 0.0
    %2756 = vmatprep.subr.mxu0 0.0
    %2757 = vmatpush1.xpose.msra.mxu0 0.0
    %2758 = vmatprep.subr.mxu0 0.0
    %2759 = vmatpush1.xpose.msra.mxu0 0.0
    %2760 = vmatprep.subr.mxu0 0.0
    %2761 = vmatpush1.xpose.msra.mxu0 0.0
    %2762 = vmatprep.subr.mxu0 0.0
    %2763 = vmatpush1.xpose.msra.mxu0 0.0
    %2764 = vmatprep.subr.mxu0 0.0
    %2765 = vmatpush1.xpose.msra.mxu0 0.0
    %2766 = vmatprep.subr.mxu0 0.0
    %2767 = vmatpush1.xpose.msra.mxu0 0.0
    %2768 = vmatprep.subr.mxu0 0.0
    %2769 = vmatpush1.xpose.msra.mxu0 0.0
    %2770 = vmatprep.subr.mxu0 0.0
    %2771 = vmatpush1.xpose.msra.mxu0 0.0
    %2772 = vmatprep.subr.mxu0 0.0
    %2773 = vmatpush1.xpose.msra.mxu0 0.0
    %2774 = vmatprep.subr.mxu0 0.0
    %2775 = vmatpush1.xpose.msra.mxu0 0.0
    %2776 = vmatprep.subr.mxu0 0.0
    %2777 = vmatpush1.xpose.msra.mxu0 0.0
    %2778 = vmatprep.subr.mxu0 0.0
    %2779 = vmatpush1.xpose.msra.mxu0 0.0
    %2780 = vmatprep.subr.mxu0 0.0
    %2781 = vmatpush1.xpose.msra.mxu0 0.0
    %2782 = vmatprep.subr.mxu0 0.0
    %2783 = vmatpush1.xpose.msra.mxu0 0.0
    %2784 = vmatprep.subr.mxu0 0.0
    %2785 = vmatpush1.xpose.msra.mxu0 0.0
    %2786 = vmatprep.subr.mxu0 0.0
    %2787 = vmatpush1.xpose.msra.mxu0 0.0
    %2788 = vmatprep.subr.mxu0 0.0
    %2789 = vmatpush1.xpose.msra.mxu0 0.0
    %2790 = vmatprep.subr.mxu0 0.0
    %2791 = vmatpush1.xpose.msra.mxu0 0.0
    %2792 = vmatprep.subr.mxu0 0.0
    %2793 = vmatpush1.xpose.msra.mxu0 0.0
    %2794 = vmatprep.subr.mxu0 0.0
    %2795 = vmatpush1.xpose.msra.mxu0 0.0
    %2796 = vmatprep.subr.mxu0 0.0
    %2797 = vmatpush1.xpose.msra.mxu0 0.0
    %2798 = vmatprep.subr.mxu0 0.0
    %2799 = vmatpush1.xpose.msra.mxu0 0.0
    %2800 = vmatprep.mubr.f32.mxu0 0.0
    %2801 = vmatmul.mubr.f32.gmra.mrb[0].mxu0 %v2732
    %v2802 = vpop.f32.mrb[0].mxu0
    %v2803 = vadd.f32 %v17, %v2802
    %v2804 = vpop.f32.mrb[0].mxu0
    %2805 = vdwg.mxu0
    %v2806 = vsel %vm153, %v2803, -inf
    %2807 = vmax.xlane.f32.xlu0 %v2806
    %v2808 = vpop.xlane.xlu0 %2807
    %v2809 = vsub.f32 %v2803, %v2808
    %v2810 = vmul.f32 %v2809, 1.442695
    %v2811 = vpow.pop %v2810
    %v2812 = vsel %vm153, %v2811, 0.0
    %2813 = vadd.xlane.f32.xlu0 %v2812
    %v2814 = vpop.xlane.xlu0 %2813
    %v2815 = vrcp.pop %v2814
    %v2816 = vmul.f32 %v2811, %v2815
    %2817 = vrot.lane.b32.xlu0 %v2246, 80
    %v2818 = vpop.permute.xlu0 %2817
    %v2821 = vsel %vm153, %v2816, 0
    %2823 = vmatprep.subr.mxu0 0.0
    %2824 = vmatpush1.msra.mxu0 %v2818
    %2825 = vmatprep.subr.mxu0 0.0
    %2826 = vmatpush1.msra.mxu0 0.0
    %2827 = vmatprep.subr.mxu0 0.0
    %2828 = vmatpush1.msra.mxu0 0.0
    %2829 = vmatprep.subr.mxu0 0.0
    %2830 = vmatpush1.msra.mxu0 0.0
    %2831 = vmatprep.subr.mxu0 0.0
    %2832 = vmatpush1.msra.mxu0 0.0
    %2833 = vmatprep.subr.mxu0 0.0
    %2834 = vmatpush1.msra.mxu0 0.0
    %2835 = vmatprep.subr.mxu0 0.0
    %2836 = vmatpush1.msra.mxu0 0.0
    %2837 = vmatprep.subr.mxu0 0.0
    %2838 = vmatpush1.msra.mxu0 0.0
    %2839 = vmatprep.subr.mxu0 0.0
    %2840 = vmatpush1.msra.mxu0 0.0
    %2841 = vmatprep.subr.mxu0 0.0
    %2842 = vmatpush1.msra.mxu0 0.0
    %2843 = vmatprep.subr.mxu0 0.0
    %2844 = vmatpush1.msra.mxu0 0.0
    %2845 = vmatprep.subr.mxu0 0.0
    %2846 = vmatpush1.msra.mxu0 0.0
    %2847 = vmatprep.subr.mxu0 0.0
    %2848 = vmatpush1.msra.mxu0 0.0
    %2849 = vmatprep.subr.mxu0 0.0
    %2850 = vmatpush1.msra.mxu0 0.0
    %2851 = vmatprep.subr.mxu0 0.0
    %2852 = vmatpush1.msra.mxu0 0.0
    %2853 = vmatprep.subr.mxu0 0.0
    %2854 = vmatpush1.msra.mxu0 0.0
    %2855 = vmatprep.subr.mxu0 0.0
    %2856 = vmatpush1.msra.mxu0 0.0
    %2857 = vmatprep.subr.mxu0 0.0
    %2858 = vmatpush1.msra.mxu0 0.0
    %2859 = vmatprep.subr.mxu0 0.0
    %2860 = vmatpush1.msra.mxu0 0.0
    %2861 = vmatprep.subr.mxu0 0.0
    %2862 = vmatpush1.msra.mxu0 0.0
    %2863 = vmatprep.subr.mxu0 0.0
    %2864 = vmatpush1.msra.mxu0 0.0
    %2865 = vmatprep.subr.mxu0 0.0
    %2866 = vmatpush1.msra.mxu0 0.0
    %2867 = vmatprep.subr.mxu0 0.0
    %2868 = vmatpush1.msra.mxu0 0.0
    %2869 = vmatprep.subr.mxu0 0.0
    %2870 = vmatpush1.msra.mxu0 0.0
    %2871 = vmatprep.subr.mxu0 0.0
    %2872 = vmatpush1.msra.mxu0 0.0
    %2873 = vmatprep.subr.mxu0 0.0
    %2874 = vmatpush1.msra.mxu0 0.0
    %2875 = vmatprep.subr.mxu0 0.0
    %2876 = vmatpush1.msra.mxu0 0.0
    %2877 = vmatprep.subr.mxu0 0.0
    %2878 = vmatpush1.msra.mxu0 0.0
    %2879 = vmatprep.subr.mxu0 0.0
    %2880 = vmatpush1.msra.mxu0 0.0
    %2881 = vmatprep.subr.mxu0 0.0
    %2882 = vmatpush1.msra.mxu0 0.0
    %2883 = vmatprep.subr.mxu0 0.0
    %2884 = vmatpush1.msra.mxu0 0.0
    %2885 = vmatprep.subr.mxu0 0.0
    %2886 = vmatpush1.msra.mxu0 0.0
    %2887 = vmatprep.mubr.f32.mxu0 0.0
    %2888 = vmatmul.mubr.f32.gmra.mrb[0].mxu0 %v2821
    %v2889 = vpop.f32.mrb[0].mxu0
    %v2890 = vadd.f32 0.0, %v2889
    %v2891 = vpop.f32.mrb[0].mxu0
    %2892 = vdwg.mxu0
    %v2894 = vsel %vm153, %v2890, 0
    %2896 = vmatprep.subr.mxu0 0.0
    %2897 = vmatpush1.msra.mxu0 %v40
    %2898 = vmatprep.subr.mxu0 0.0
    %2899 = vmatpush1.msra.mxu0 0.0
    %2900 = vmatprep.subr.mxu0 0.0
    %2901 = vmatpush1.msra.mxu0 0.0
    %2902 = vmatprep.subr.mxu0 0.0
    %2903 = vmatpush1.msra.mxu0 0.0
    %2904 = vmatprep.subr.mxu0 0.0
    %2905 = vmatpush1.msra.mxu0 0.0
    %2906 = vmatprep.subr.mxu0 0.0
    %2907 = vmatpush1.msra.mxu0 0.0
    %2908 = vmatprep.subr.mxu0 0.0
    %2909 = vmatpush1.msra.mxu0 0.0
    %2910 = vmatprep.subr.mxu0 0.0
    %2911 = vmatpush1.msra.mxu0 0.0
    %2912 = vmatprep.subr.mxu0 0.0
    %2913 = vmatpush1.msra.mxu0 0.0
    %2914 = vmatprep.subr.mxu0 0.0
    %2915 = vmatpush1.msra.mxu0 0.0
    %2916 = vmatprep.subr.mxu0 0.0
    %2917 = vmatpush1.msra.mxu0 0.0
    %2918 = vmatprep.subr.mxu0 0.0
    %2919 = vmatpush1.msra.mxu0 0.0
    %2920 = vmatprep.subr.mxu0 0.0
    %2921 = vmatpush1.msra.mxu0 0.0
    %2922 = vmatprep.subr.mxu0 0.0
    %2923 = vmatpush1.msra.mxu0 0.0
    %2924 = vmatprep.subr.mxu0 0.0
    %2925 = vmatpush1.msra.mxu0 0.0
    %2926 = vmatprep.subr.mxu0 0.0
    %2927 = vmatpush1.msra.mxu0 0.0
    %2928 = vmatprep.subr.mxu0 0.0
    %2929 = vmatpush1.msra.mxu0 0.0
    %2930 = vmatprep.subr.mxu0 0.0
    %2931 = vmatpush1.msra.mxu0 0.0
    %2932 = vmatprep.subr.mxu0 0.0
    %2933 = vmatpush1.msra.mxu0 0.0
    %2934 = vmatprep.subr.mxu0 0.0
    %2935 = vmatpush1.msra.mxu0 0.0
    %2936 = vmatprep.subr.mxu0 0.0
    %2937 = vmatpush1.msra.mxu0 0.0
    %2938 = vmatprep.subr.mxu0 0.0
    %2939 = vmatpush1.msra.mxu0 0.0
    %2940 = vmatprep.subr.mxu0 0.0
    %2941 = vmatpush1.msra.mxu0 0.0
    %2942 = vmatprep.subr.mxu0 0.0
    %2943 = vmatpush1.msra.mxu0 0.0
    %2944 = vmatprep.subr.mxu0 0.0
    %2945 = vmatpush1.msra.mxu0 0.0
    %2946 = vmatprep.subr.mxu0 0.0
    %2947 = vmatpush1.msra.mxu0 0.0
    %2948 = vmatprep.subr.mxu0 0.0
    %2949 = vmatpush1.msra.mxu0 0.0
    %2950 = vmatprep.subr.mxu0 0.0
    %2951 = vmatpush1.msra.mxu0 0.0
    %2952 = vmatprep.subr.mxu0 0.0
    %2953 = vmatpush1.msra.mxu0 0.0
    %2954 = vmatprep.subr.mxu0 0.0
    %2955 = vmatpush1.msra.mxu0 0.0
    %2956 = vmatprep.subr.mxu0 0.0
    %2957 = vmatpush1.msra.mxu0 0.0
    %2958 = vmatprep.subr.mxu0 0.0
    %2959 = vmatpush1.msra.mxu0 0.0
    %2960 = vmatprep.mubr.f32.mxu0 0.0
    %2961 = vmatmul.mubr.f32.gmra.mrb[0].mxu0 %v2894
    %v2962 = vpop.f32.mrb[0].mxu0
    %v2963 = vadd.f32 0.0, %v2962
    %v2964 = vpop.f32.mrb[0].mxu0
    %2965 = vdwg.mxu0
    %v2966 = vadd.f32 %v2725, %v2963
    %2967 = vrot.lane.b32.xlu0 %v2165, 104
    %v2968 = vpop.permute.xlu0 %2967
    %2969 = vrot.lane.b32.xlu0 %v2246, 104
    %v2970 = vpop.permute.xlu0 %2969
    %v2971 = vsel %vm153, %v2968, 0
    %v2973 = vsel %vm153, %v2970, 0
    %2975 = vmatprep.subr.mxu0 0.0
    %2976 = vmatpush1.xpose.msra.mxu0 %v2973
    %2977 = vmatprep.subr.mxu0 0.0
    %2978 = vmatpush1.xpose.msra.mxu0 0.0
    %2979 = vmatprep.subr.mxu0 0.0
    %2980 = vmatpush1.xpose.msra.mxu0 0.0
    %2981 = vmatprep.subr.mxu0 0.0
    %2982 = vmatpush1.xpose.msra.mxu0 0.0
    %2983 = vmatprep.subr.mxu0 0.0
    %2984 = vmatpush1.xpose.msra.mxu0 0.0
    %2985 = vmatprep.subr.mxu0 0.0
    %2986 = vmatpush1.xpose.msra.mxu0 0.0
    %2987 = vmatprep.subr.mxu0 0.0
    %2988 = vmatpush1.xpose.msra.mxu0 0.0
    %2989 = vmatprep.subr.mxu0 0.0
    %2990 = vmatpush1.xpose.msra.mxu0 0.0
    %2991 = vmatprep.subr.mxu0 0.0
    %2992 = vmatpush1.xpose.msra.mxu0 0.0
    %2993 = vmatprep.subr.mxu0 0.0
    %2994 = vmatpush1.xpose.msra.mxu0 0.0
    %2995 = vmatprep.subr.mxu0 0.0
    %2996 = vmatpush1.xpose.msra.mxu0 0.0
    %2997 = vmatprep.subr.mxu0 0.0
    %2998 = vmatpush1.xpose.msra.mxu0 0.0
    %2999 = vmatprep.subr.mxu0 0.0
    %3000 = vmatpush1.xpose.msra.mxu0 0.0
    %3001 = vmatprep.subr.mxu0 0.0
    %3002 = vmatpush1.xpose.msra.mxu0 0.0
    %3003 = vmatprep.subr.mxu0 0.0
    %3004 = vmatpush1.xpose.msra.mxu0 0.0
    %3005 = vmatprep.subr.mxu0 0.0
    %3006 = vmatpush1.xpose.msra.mxu0 0.0
    %3007 = vmatprep.subr.mxu0 0.0
    %3008 = vmatpush1.xpose.msra.mxu0 0.0
    %3009 = vmatprep.subr.mxu0 0.0
    %3010 = vmatpush1.xpose.msra.mxu0 0.0
    %3011 = vmatprep.subr.mxu0 0.0
    %3012 = vmatpush1.xpose.msra.mxu0 0.0
    %3013 = vmatprep.subr.mxu0 0.0
    %3014 = vmatpush1.xpose.msra.mxu0 0.0
    %3015 = vmatprep.subr.mxu0 0.0
    %3016 = vmatpush1.xpose.msra.mxu0 0.0
    %3017 = vmatprep.subr.mxu0 0.0
    %3018 = vmatpush1.xpose.msra.mxu0 0.0
    %3019 = vmatprep.subr.mxu0 0.0
    %3020 = vmatpush1.xpose.msra.mxu0 0.0
    %3021 = vmatprep.subr.mxu0 0.0
    %3022 = vmatpush1.xpose.msra.mxu0 0.0
    %3023 = vmatprep.subr.mxu0 0.0
    %3024 = vmatpush1.xpose.msra.mxu0 0.0
    %3025 = vmatprep.subr.mxu0 0.0
    %3026 = vmatpush1.xpose.msra.mxu0 0.0
    %3027 = vmatprep.subr.mxu0 0.0
    %3028 = vmatpush1.xpose.msra.mxu0 0.0
    %3029 = vmatprep.subr.mxu0 0.0
    %3030 = vmatpush1.xpose.msra.mxu0 0.0
    %3031 = vmatprep.subr.mxu0 0.0
    %3032 = vmatpush1.xpose.msra.mxu0 0.0
    %3033 = vmatprep.subr.mxu0 0.0
    %3034 = vmatpush1.xpose.msra.mxu0 0.0
    %3035 = vmatprep.subr.mxu0 0.0
    %3036 = vmatpush1.xpose.msra.mxu0 0.0
    %3037 = vmatprep.subr.mxu0 0.0
    %3038 = vmatpush1.xpose.msra.mxu0 0.0
    %3039 = vmatprep.mubr.f32.mxu0 0.0
    %3040 = vmatmul.mubr.f32.gmra.mrb[0].mxu0 %v2971
    %v3041 = vpop.f32.mrb[0].mxu0
    %v3042 = vadd.f32 %v17, %v3041
    %v3043 = vpop.f32.mrb[0].mxu0
    %3044 = vdwg.mxu0
    %v3045 = vsel %vm153, %v3042, -inf
    %3046 = vmax.xlane.f32.xlu0 %v3045
    %v3047 = vpop.xlane.xlu0 %3046
    %v3048 = vsub.f32 %v3042, %v3047
    %v3049 = vmul.f32 %v3048, 1.442695
    %v3050 = vpow.pop %v3049
    %v3051 = vsel %vm153, %v3050, 0.0
    %3052 = vadd.xlane.f32.xlu0 %v3051
    %v3053 = vpop.xlane.xlu0 %3052
    %v3054 = vrcp.pop %v3053
    %v3055 = vmul.f32 %v3050, %v3054
    %3056 = vrot.lane.b32.xlu0 %v2246, 72
    %v3057 = vpop.permute.xlu0 %3056
    %v3060 = vsel %vm153, %v3055, 0
    %3062 = vmatprep.subr.mxu0 0.0
    %3063 = vmatpush1.msra.mxu0 %v3057
    %3064 = vmatprep.subr.mxu0 0.0
    %3065 = vmatpush1.msra.mxu0 0.0
    %3066 = vmatprep.subr.mxu0 0.0
    %3067 = vmatpush1.msra.mxu0 0.0
    %3068 = vmatprep.subr.mxu0 0.0
    %3069 = vmatpush1.msra.mxu0 0.0
    %3070 = vmatprep.subr.mxu0 0.0
    %3071 = vmatpush1.msra.mxu0 0.0
    %3072 = vmatprep.subr.mxu0 0.0
    %3073 = vmatpush1.msra.mxu0 0.0
    %3074 = vmatprep.subr.mxu0 0.0
    %3075 = vmatpush1.msra.mxu0 0.0
    %3076 = vmatprep.subr.mxu0 0.0
    %3077 = vmatpush1.msra.mxu0 0.0
    %3078 = vmatprep.subr.mxu0 0.0
    %3079 = vmatpush1.msra.mxu0 0.0
    %3080 = vmatprep.subr.mxu0 0.0
    %3081 = vmatpush1.msra.mxu0 0.0
    %3082 = vmatprep.subr.mxu0 0.0
    %3083 = vmatpush1.msra.mxu0 0.0
    %3084 = vmatprep.subr.mxu0 0.0
    %3085 = vmatpush1.msra.mxu0 0.0
    %3086 = vmatprep.subr.mxu0 0.0
    %3087 = vmatpush1.msra.mxu0 0.0
    %3088 = vmatprep.subr.mxu0 0.0
    %3089 = vmatpush1.msra.mxu0 0.0
    %3090 = vmatprep.subr.mxu0 0.0
    %3091 = vmatpush1.msra.mxu0 0.0
    %3092 = vmatprep.subr.mxu0 0.0
    %3093 = vmatpush1.msra.mxu0 0.0
    %3094 = vmatprep.subr.mxu0 0.0
    %3095 = vmatpush1.msra.mxu0 0.0
    %3096 = vmatprep.subr.mxu0 0.0
    %3097 = vmatpush1.msra.mxu0 0.0
    %3098 = vmatprep.subr.mxu0 0.0
    %3099 = vmatpush1.msra.mxu0 0.0
    %3100 = vmatprep.subr.mxu0 0.0
    %3101 = vmatpush1.msra.mxu0 0.0
    %3102 = vmatprep.subr.mxu0 0.0
    %3103 = vmatpush1.msra.mxu0 0.0
    %3104 = vmatprep.subr.mxu0 0.0
    %3105 = vmatpush1.msra.mxu0 0.0
    %3106 = vmatprep.subr.mxu0 0.0
    %3107 = vmatpush1.msra.mxu0 0.0
    %3108 = vmatprep.subr.mxu0 0.0
    %3109 = vmatpush1.msra.mxu0 0.0
    %3110 = vmatprep.subr.mxu0 0.0
    %3111 = vmatpush1.msra.mxu0 0.0
    %3112 = vmatprep.subr.mxu0 0.0
    %3113 = vmatpush1.msra.mxu0 0.0
    %3114 = vmatprep.subr.mxu0 0.0
    %3115 = vmatpush1.msra.mxu0 0.0
    %3116 = vmatprep.subr.mxu0 0.0
    %3117 = vmatpush1.msra.mxu0 0.0
    %3118 = vmatprep.subr.mxu0 0.0
    %3119 = vmatpush1.msra.mxu0 0.0
    %3120 = vmatprep.subr.mxu0 0.0
    %3121 = vmatpush1.msra.mxu0 0.0
    %3122 = vmatprep.subr.mxu0 0.0
    %3123 = vmatpush1.msra.mxu0 0.0
    %3124 = vmatprep.subr.mxu0 0.0
    %3125 = vmatpush1.msra.mxu0 0.0
    %3126 = vmatprep.mubr.f32.mxu0 0.0
    %3127 = vmatmul.mubr.f32.gmra.mrb[0].mxu0 %v3060
    %v3128 = vpop.f32.mrb[0].mxu0
    %v3129 = vadd.f32 0.0, %v3128
    %v3130 = vpop.f32.mrb[0].mxu0
    %3131 = vdwg.mxu0
    %v3133 = vsel %vm153, %v3129, 0
    %3135 = vmatprep.subr.mxu0 0.0
    %3136 = vmatpush1.msra.mxu0 %v47
    %3137 = vmatprep.subr.mxu0 0.0
    %3138 = vmatpush1.msra.mxu0 0.0
    %3139 = vmatprep.subr.mxu0 0.0
    %3140 = vmatpush1.msra.mxu0 0.0
    %3141 = vmatprep.subr.mxu0 0.0
    %3142 = vmatpush1.msra.mxu0 0.0
    %3143 = vmatprep.subr.mxu0 0.0
    %3144 = vmatpush1.msra.mxu0 0.0
    %3145 = vmatprep.subr.mxu0 0.0
    %3146 = vmatpush1.msra.mxu0 0.0
    %3147 = vmatprep.subr.mxu0 0.0
    %3148 = vmatpush1.msra.mxu0 0.0
    %3149 = vmatprep.subr.mxu0 0.0
    %3150 = vmatpush1.msra.mxu0 0.0
    %3151 = vmatprep.subr.mxu0 0.0
    %3152 = vmatpush1.msra.mxu0 0.0
    %3153 = vmatprep.subr.mxu0 0.0
    %3154 = vmatpush1.msra.mxu0 0.0
    %3155 = vmatprep.subr.mxu0 0.0
    %3156 = vmatpush1.msra.mxu0 0.0
    %3157 = vmatprep.subr.mxu0 0.0
    %3158 = vmatpush1.msra.mxu0 0.0
    %3159 = vmatprep.subr.mxu0 0.0
    %3160 = vmatpush1.msra.mxu0 0.0
    %3161 = vmatprep.subr.mxu0 0.0
    %3162 = vmatpush1.msra.mxu0 0.0
    %3163 = vmatprep.subr.mxu0 0.0
    %3164 = vmatpush1.msra.mxu0 0.0
    %3165 = vmatprep.subr.mxu0 0.0
    %3166 = vmatpush1.msra.mxu0 0.0
    %3167 = vmatprep.subr.mxu0 0.0
    %3168 = vmatpush1.msra.mxu0 0.0
    %3169 = vmatprep.subr.mxu0 0.0
    %3170 = vmatpush1.msra.mxu0 0.0
    %3171 = vmatprep.subr.mxu0 0.0
    %3172 = vmatpush1.msra.mxu0 0.0
    %3173 = vmatprep.subr.mxu0 0.0
    %3174 = vmatpush1.msra.mxu0 0.0
    %3175 = vmatprep.subr.mxu0 0.0
    %3176 = vmatpush1.msra.mxu0 0.0
    %3177 = vmatprep.subr.mxu0 0.0
    %3178 = vmatpush1.msra.mxu0 0.0
    %3179 = vmatprep.subr.mxu0 0.0
    %3180 = vmatpush1.msra.mxu0 0.0
    %3181 = vmatprep.subr.mxu0 0.0
    %3182 = vmatpush1.msra.mxu0 0.0
    %3183 = vmatprep.subr.mxu0 0.0
    %3184 = vmatpush1.msra.mxu0 0.0
    %3185 = vmatprep.subr.mxu0 0.0
    %3186 = vmatpush1.msra.mxu0 0.0
    %3187 = vmatprep.subr.mxu0 0.0
    %3188 = vmatpush1.msra.mxu0 0.0
    %3189 = vmatprep.subr.mxu0 0.0
    %3190 = vmatpush1.msra.mxu0 0.0
    %3191 = vmatprep.subr.mxu0 0.0
    %3192 = vmatpush1.msra.mxu0 0.0
    %3193 = vmatprep.subr.mxu0 0.0
    %3194 = vmatpush1.msra.mxu0 0.0
    %3195 = vmatprep.subr.mxu0 0.0
    %3196 = vmatpush1.msra.mxu0 0.0
    %3197 = vmatprep.subr.mxu0 0.0
    %3198 = vmatpush1.msra.mxu0 0.0
    %3199 = vmatprep.mubr.f32.mxu0 0.0
    %3200 = vmatmul.mubr.f32.gmra.mrb[0].mxu0 %v3133
    %v3201 = vpop.f32.mrb[0].mxu0
    %v3202 = vadd.f32 0.0, %v3201
    %v3203 = vpop.f32.mrb[0].mxu0
    %3204 = vdwg.mxu0
    %v3205 = vadd.f32 %v2966, %v3202
    %v3207 = vsel %vm153, %v2170, 0
    %v3210 = vsel %vm153, %v2251, 0
    %3212 = vmatprep.subr.mxu0 0.0
    %3213 = vmatpush1.xpose.msra.mxu0 %v3210
    %3214 = vmatprep.subr.mxu0 0.0
    %3215 = vmatpush1.xpose.msra.mxu0 0.0
    %3216 = vmatprep.subr.mxu0 0.0
    %3217 = vmatpush1.xpose.msra.mxu0 0.0
    %3218 = vmatprep.subr.mxu0 0.0
    %3219 = vmatpush1.xpose.msra.mxu0 0.0
    %3220 = vmatprep.subr.mxu0 0.0
    %3221 = vmatpush1.xpose.msra.mxu0 0.0
    %3222 = vmatprep.subr.mxu0 0.0
    %3223 = vmatpush1.xpose.msra.mxu0 0.0
    %3224 = vmatprep.subr.mxu0 0.0
    %3225 = vmatpush1.xpose.msra.mxu0 0.0
    %3226 = vmatprep.subr.mxu0 0.0
    %3227 = vmatpush1.xpose.msra.mxu0 0.0
    %3228 = vmatprep.subr.mxu0 0.0
    %3229 = vmatpush1.xpose.msra.mxu0 0.0
    %3230 = vmatprep.subr.mxu0 0.0
    %3231 = vmatpush1.xpose.msra.mxu0 0.0
    %3232 = vmatprep.subr.mxu0 0.0
    %3233 = vmatpush1.xpose.msra.mxu0 0.0
    %3234 = vmatprep.subr.mxu0 0.0
    %3235 = vmatpush1.xpose.msra.mxu0 0.0
    %3236 = vmatprep.subr.mxu0 0.0
    %3237 = vmatpush1.xpose.msra.mxu0 0.0
    %3238 = vmatprep.subr.mxu0 0.0
    %3239 = vmatpush1.xpose.msra.mxu0 0.0
    %3240 = vmatprep.subr.mxu0 0.0
    %3241 = vmatpush1.xpose.msra.mxu0 0.0
    %3242 = vmatprep.subr.mxu0 0.0
    %3243 = vmatpush1.xpose.msra.mxu0 0.0
    %3244 = vmatprep.subr.mxu0 0.0
    %3245 = vmatpush1.xpose.msra.mxu0 0.0
    %3246 = vmatprep.subr.mxu0 0.0
    %3247 = vmatpush1.xpose.msra.mxu0 0.0
    %3248 = vmatprep.subr.mxu0 0.0
    %3249 = vmatpush1.xpose.msra.mxu0 0.0
    %3250 = vmatprep.subr.mxu0 0.0
    %3251 = vmatpush1.xpose.msra.mxu0 0.0
    %3252 = vmatprep.subr.mxu0 0.0
    %3253 = vmatpush1.xpose.msra.mxu0 0.0
    %3254 = vmatprep.subr.mxu0 0.0
    %3255 = vmatpush1.xpose.msra.mxu0 0.0
    %3256 = vmatprep.subr.mxu0 0.0
    %3257 = vmatpush1.xpose.msra.mxu0 0.0
    %3258 = vmatprep.subr.mxu0 0.0
    %3259 = vmatpush1.xpose.msra.mxu0 0.0
    %3260 = vmatprep.subr.mxu0 0.0
    %3261 = vmatpush1.xpose.msra.mxu0 0.0
    %3262 = vmatprep.subr.mxu0 0.0
    %3263 = vmatpush1.xpose.msra.mxu0 0.0
    %3264 = vmatprep.subr.mxu0 0.0
    %3265 = vmatpush1.xpose.msra.mxu0 0.0
    %3266 = vmatprep.subr.mxu0 0.0
    %3267 = vmatpush1.xpose.msra.mxu0 0.0
    %3268 = vmatprep.subr.mxu0 0.0
    %3269 = vmatpush1.xpose.msra.mxu0 0.0
    %3270 = vmatprep.subr.mxu0 0.0
    %3271 = vmatpush1.xpose.msra.mxu0 0.0
    %3272 = vmatprep.subr.mxu0 0.0
    %3273 = vmatpush1.xpose.msra.mxu0 0.0
    %3274 = vmatprep.subr.mxu0 0.0
    %3275 = vmatpush1.xpose.msra.mxu0 0.0
    %3276 = vmatprep.mubr.f32.mxu0 0.0
    %3277 = vmatmul.mubr.f32.gmra.mrb[0].mxu0 %v3207
    %v3278 = vpop.f32.mrb[0].mxu0
    %v3279 = vadd.f32 %v21, %v3278
    %v3280 = vpop.f32.mrb[0].mxu0
    %3281 = vdwg.mxu0
    %v3282 = vsel %vm153, %v3279, -inf
    %3283 = vmax.xlane.f32.xlu0 %v3282
    %v3284 = vpop.xlane.xlu0 %3283
    %v3285 = vsub.f32 %v3279, %v3284
    %v3286 = vmul.f32 %v3285, 1.442695
    %v3287 = vpow.pop %v3286
    %v3288 = vsel %vm153, %v3287, 0.0
    %3289 = vadd.xlane.f32.xlu0 %v3288
    %v3290 = vpop.xlane.xlu0 %3289
    %v3291 = vrcp.pop %v3290
    %v3292 = vmul.f32 %v3287, %v3291
    %3293 = vrot.lane.b32.xlu0 %v2251, 96
    %v3294 = vpop.permute.xlu0 %3293
    %v3297 = vsel %vm153, %v3292, 0
    %3299 = vmatprep.subr.mxu0 0.0
    %3300 = vmatpush1.msra.mxu0 %v3294
    %3301 = vmatprep.subr.mxu0 0.0
    %3302 = vmatpush1.msra.mxu0 0.0
    %3303 = vmatprep.subr.mxu0 0.0
    %3304 = vmatpush1.msra.mxu0 0.0
    %3305 = vmatprep.subr.mxu0 0.0
    %3306 = vmatpush1.msra.mxu0 0.0
    %3307 = vmatprep.subr.mxu0 0.0
    %3308 = vmatpush1.msra.mxu0 0.0
    %3309 = vmatprep.subr.mxu0 0.0
    %3310 = vmatpush1.msra.mxu0 0.0
    %3311 = vmatprep.subr.mxu0 0.0
    %3312 = vmatpush1.msra.mxu0 0.0
    %3313 = vmatprep.subr.mxu0 0.0
    %3314 = vmatpush1.msra.mxu0 0.0
    %3315 = vmatprep.subr.mxu0 0.0
    %3316 = vmatpush1.msra.mxu0 0.0
    %3317 = vmatprep.subr.mxu0 0.0
    %3318 = vmatpush1.msra.mxu0 0.0
    %3319 = vmatprep.subr.mxu0 0.0
    %3320 = vmatpush1.msra.mxu0 0.0
    %3321 = vmatprep.subr.mxu0 0.0
    %3322 = vmatpush1.msra.mxu0 0.0
    %3323 = vmatprep.subr.mxu0 0.0
    %3324 = vmatpush1.msra.mxu0 0.0
    %3325 = vmatprep.subr.mxu0 0.0
    %3326 = vmatpush1.msra.mxu0 0.0
    %3327 = vmatprep.subr.mxu0 0.0
    %3328 = vmatpush1.msra.mxu0 0.0
    %3329 = vmatprep.subr.mxu0 0.0
    %3330 = vmatpush1.msra.mxu0 0.0
    %3331 = vmatprep.subr.mxu0 0.0
    %3332 = vmatpush1.msra.mxu0 0.0
    %3333 = vmatprep.subr.mxu0 0.0
    %3334 = vmatpush1.msra.mxu0 0.0
    %3335 = vmatprep.subr.mxu0 0.0
    %3336 = vmatpush1.msra.mxu0 0.0
    %3337 = vmatprep.subr.mxu0 0.0
    %3338 = vmatpush1.msra.mxu0 0.0
    %3339 = vmatprep.subr.mxu0 0.0
    %3340 = vmatpush1.msra.mxu0 0.0
    %3341 = vmatprep.subr.mxu0 0.0
    %3342 = vmatpush1.msra.mxu0 0.0
    %3343 = vmatprep.subr.mxu0 0.0
    %3344 = vmatpush1.msra.mxu0 0.0
    %3345 = vmatprep.subr.mxu0 0.0
    %3346 = vmatpush1.msra.mxu0 0.0
    %3347 = vmatprep.subr.mxu0 0.0
    %3348 = vmatpush1.msra.mxu0 0.0
    %3349 = vmatprep.subr.mxu0 0.0
    %3350 = vmatpush1.msra.mxu0 0.0
    %3351 = vmatprep.subr.mxu0 0.0
    %3352 = vmatpush1.msra.mxu0 0.0
    %3353 = vmatprep.subr.mxu0 0.0
    %3354 = vmatpush1.msra.mxu0 0.0
    %3355 = vmatprep.subr.mxu0 0.0
    %3356 = vmatpush1.msra.mxu0 0.0
    %3357 = vmatprep.subr.mxu0 0.0
    %3358 = vmatpush1.msra.mxu0 0.0
    %3359 = vmatprep.subr.mxu0 0.0
    %3360 = vmatpush1.msra.mxu0 0.0
    %3361 = vmatprep.subr.mxu0 0.0
    %3362 = vmatpush1.msra.mxu0 0.0
    %3363 = vmatprep.mubr.f32.mxu0 0.0
    %3364 = vmatmul.mubr.f32.gmra.mrb[0].mxu0 %v3297
    %v3365 = vpop.f32.mrb[0].mxu0
    %v3366 = vadd.f32 0.0, %v3365
    %v3367 = vpop.f32.mrb[0].mxu0
    %3368 = vdwg.mxu0
    %3369 = vrot.lane.b32.xlu0 %v2170, 120
    %v3370 = vpop.permute.xlu0 %3369
    %3371 = vrot.lane.b32.xlu0 %v2251, 120
    %v3372 = vpop.permute.xlu0 %3371
    %v3373 = vsel %vm153, %v3370, 0
    %v3375 = vsel %vm153, %v3372, 0
    %3377 = vmatprep.subr.mxu0 0.0
    %3378 = vmatpush1.xpose.msra.mxu0 %v3375
    %3379 = vmatprep.subr.mxu0 0.0
    %3380 = vmatpush1.xpose.msra.mxu0 0.0
    %3381 = vmatprep.subr.mxu0 0.0
    %3382 = vmatpush1.xpose.msra.mxu0 0.0
    %3383 = vmatprep.subr.mxu0 0.0
    %3384 = vmatpush1.xpose.msra.mxu0 0.0
    %3385 = vmatprep.subr.mxu0 0.0
    %3386 = vmatpush1.xpose.msra.mxu0 0.0
    %3387 = vmatprep.subr.mxu0 0.0
    %3388 = vmatpush1.xpose.msra.mxu0 0.0
    %3389 = vmatprep.subr.mxu0 0.0
    %3390 = vmatpush1.xpose.msra.mxu0 0.0
    %3391 = vmatprep.subr.mxu0 0.0
    %3392 = vmatpush1.xpose.msra.mxu0 0.0
    %3393 = vmatprep.subr.mxu0 0.0
    %3394 = vmatpush1.xpose.msra.mxu0 0.0
    %3395 = vmatprep.subr.mxu0 0.0
    %3396 = vmatpush1.xpose.msra.mxu0 0.0
    %3397 = vmatprep.subr.mxu0 0.0
    %3398 = vmatpush1.xpose.msra.mxu0 0.0
    %3399 = vmatprep.subr.mxu0 0.0
    %3400 = vmatpush1.xpose.msra.mxu0 0.0
    %3401 = vmatprep.subr.mxu0 0.0
    %3402 = vmatpush1.xpose.msra.mxu0 0.0
    %3403 = vmatprep.subr.mxu0 0.0
    %3404 = vmatpush1.xpose.msra.mxu0 0.0
    %3405 = vmatprep.subr.mxu0 0.0
    %3406 = vmatpush1.xpose.msra.mxu0 0.0
    %3407 = vmatprep.subr.mxu0 0.0
    %3408 = vmatpush1.xpose.msra.mxu0 0.0
    %3409 = vmatprep.subr.mxu0 0.0
    %3410 = vmatpush1.xpose.msra.mxu0 0.0
    %3411 = vmatprep.subr.mxu0 0.0
    %3412 = vmatpush1.xpose.msra.mxu0 0.0
    %3413 = vmatprep.subr.mxu0 0.0
    %3414 = vmatpush1.xpose.msra.mxu0 0.0
    %3415 = vmatprep.subr.mxu0 0.0
    %3416 = vmatpush1.xpose.msra.mxu0 0.0
    %3417 = vmatprep.subr.mxu0 0.0
    %3418 = vmatpush1.xpose.msra.mxu0 0.0
    %3419 = vmatprep.subr.mxu0 0.0
    %3420 = vmatpush1.xpose.msra.mxu0 0.0
    %3421 = vmatprep.subr.mxu0 0.0
    %3422 = vmatpush1.xpose.msra.mxu0 0.0
    %3423 = vmatprep.subr.mxu0 0.0
    %3424 = vmatpush1.xpose.msra.mxu0 0.0
    %3425 = vmatprep.subr.mxu0 0.0
    %3426 = vmatpush1.xpose.msra.mxu0 0.0
    %3427 = vmatprep.subr.mxu0 0.0
    %3428 = vmatpush1.xpose.msra.mxu0 0.0
    %3429 = vmatprep.subr.mxu0 0.0
    %3430 = vmatpush1.xpose.msra.mxu0 0.0
    %3431 = vmatprep.subr.mxu0 0.0
    %3432 = vmatpush1.xpose.msra.mxu0 0.0
    %3433 = vmatprep.subr.mxu0 0.0
    %3434 = vmatpush1.xpose.msra.mxu0 0.0
    %3435 = vmatprep.subr.mxu0 0.0
    %3436 = vmatpush1.xpose.msra.mxu0 0.0
    %3437 = vmatprep.subr.mxu0 0.0
    %3438 = vmatpush1.xpose.msra.mxu0 0.0
    %3439 = vmatprep.subr.mxu0 0.0
    %3440 = vmatpush1.xpose.msra.mxu0 0.0
    %3441 = vmatprep.mubr.f32.mxu0 0.0
    %3442 = vmatmul.mubr.f32.gmra.mrb[0].mxu0 %v3373
    %v3443 = vpop.f32.mrb[0].mxu0
    %v3444 = vadd.f32 %v21, %v3443
    %v3445 = vpop.f32.mrb[0].mxu0
    %3446 = vdwg.mxu0
    %v3447 = vsel %vm153, %v3444, -inf
    %3448 = vmax.xlane.f32.xlu0 %v3447
    %v3449 = vpop.xlane.xlu0 %3448
    %v3450 = vsub.f32 %v3444, %v3449
    %v3451 = vmul.f32 %v3450, 1.442695
    %v3452 = vpow.pop %v3451
    %v3453 = vsel %vm153, %v3452, 0.0
    %3454 = vadd.xlane.f32.xlu0 %v3453
    %v3455 = vpop.xlane.xlu0 %3454
    %v3456 = vrcp.pop %v3455
    %v3457 = vmul.f32 %v3452, %v3456
    %3458 = vrot.lane.b32.xlu0 %v2251, 88
    %v3459 = vpop.permute.xlu0 %3458
    %v3462 = vsel %vm153, %v3457, 0
    %3464 = vmatprep.subr.mxu0 0.0
    %3465 = vmatpush1.msra.mxu0 %v3459
    %3466 = vmatprep.subr.mxu0 0.0
    %3467 = vmatpush1.msra.mxu0 0.0
    %3468 = vmatprep.subr.mxu0 0.0
    %3469 = vmatpush1.msra.mxu0 0.0
    %3470 = vmatprep.subr.mxu0 0.0
    %3471 = vmatpush1.msra.mxu0 0.0
    %3472 = vmatprep.subr.mxu0 0.0
    %3473 = vmatpush1.msra.mxu0 0.0
    %3474 = vmatprep.subr.mxu0 0.0
    %3475 = vmatpush1.msra.mxu0 0.0
    %3476 = vmatprep.subr.mxu0 0.0
    %3477 = vmatpush1.msra.mxu0 0.0
    %3478 = vmatprep.subr.mxu0 0.0
    %3479 = vmatpush1.msra.mxu0 0.0
    %3480 = vmatprep.subr.mxu0 0.0
    %3481 = vmatpush1.msra.mxu0 0.0
    %3482 = vmatprep.subr.mxu0 0.0
    %3483 = vmatpush1.msra.mxu0 0.0
    %3484 = vmatprep.subr.mxu0 0.0
    %3485 = vmatpush1.msra.mxu0 0.0
    %3486 = vmatprep.subr.mxu0 0.0
    %3487 = vmatpush1.msra.mxu0 0.0
    %3488 = vmatprep.subr.mxu0 0.0
    %3489 = vmatpush1.msra.mxu0 0.0
    %3490 = vmatprep.subr.mxu0 0.0
    %3491 = vmatpush1.msra.mxu0 0.0
    %3492 = vmatprep.subr.mxu0 0.0
    %3493 = vmatpush1.msra.mxu0 0.0
    %3494 = vmatprep.subr.mxu0 0.0
    %3495 = vmatpush1.msra.mxu0 0.0
    %3496 = vmatprep.subr.mxu0 0.0
    %3497 = vmatpush1.msra.mxu0 0.0
    %3498 = vmatprep.subr.mxu0 0.0
    %3499 = vmatpush1.msra.mxu0 0.0
    %3500 = vmatprep.subr.mxu0 0.0
    %3501 = vmatpush1.msra.mxu0 0.0
    %3502 = vmatprep.subr.mxu0 0.0
    %3503 = vmatpush1.msra.mxu0 0.0
    %3504 = vmatprep.subr.mxu0 0.0
    %3505 = vmatpush1.msra.mxu0 0.0
    %3506 = vmatprep.subr.mxu0 0.0
    %3507 = vmatpush1.msra.mxu0 0.0
    %3508 = vmatprep.subr.mxu0 0.0
    %3509 = vmatpush1.msra.mxu0 0.0
    %3510 = vmatprep.subr.mxu0 0.0
    %3511 = vmatpush1.msra.mxu0 0.0
    %3512 = vmatprep.subr.mxu0 0.0
    %3513 = vmatpush1.msra.mxu0 0.0
    %3514 = vmatprep.subr.mxu0 0.0
    %3515 = vmatpush1.msra.mxu0 0.0
    %3516 = vmatprep.subr.mxu0 0.0
    %3517 = vmatpush1.msra.mxu0 0.0
    %3518 = vmatprep.subr.mxu0 0.0
    %3519 = vmatpush1.msra.mxu0 0.0
    %3520 = vmatprep.subr.mxu0 0.0
    %3521 = vmatpush1.msra.mxu0 0.0
    %3522 = vmatprep.subr.mxu0 0.0
    %3523 = vmatpush1.msra.mxu0 0.0
    %3524 = vmatprep.subr.mxu0 0.0
    %3525 = vmatpush1.msra.mxu0 0.0
    %3526 = vmatprep.subr.mxu0 0.0
    %3527 = vmatpush1.msra.mxu0 0.0
    %3528 = vmatprep.mubr.f32.mxu0 0.0
    %3529 = vmatmul.mubr.f32.gmra.mrb[0].mxu0 %v3462
    %v3530 = vpop.f32.mrb[0].mxu0
    %v3531 = vadd.f32 0.0, %v3530
    %v3532 = vpop.f32.mrb[0].mxu0
    %3533 = vdwg.mxu0
    %v3535 = vsel %vm153, %v3531, 0
    %3537 = vmatprep.subr.mxu0 0.0
    %3538 = vmatpush1.msra.mxu0 %v33
    %3539 = vmatprep.subr.mxu0 0.0
    %3540 = vmatpush1.msra.mxu0 0.0
    %3541 = vmatprep.subr.mxu0 0.0
    %3542 = vmatpush1.msra.mxu0 0.0
    %3543 = vmatprep.subr.mxu0 0.0
    %3544 = vmatpush1.msra.mxu0 0.0
    %3545 = vmatprep.subr.mxu0 0.0
    %3546 = vmatpush1.msra.mxu0 0.0
    %3547 = vmatprep.subr.mxu0 0.0
    %3548 = vmatpush1.msra.mxu0 0.0
    %3549 = vmatprep.subr.mxu0 0.0
    %3550 = vmatpush1.msra.mxu0 0.0
    %3551 = vmatprep.subr.mxu0 0.0
    %3552 = vmatpush1.msra.mxu0 0.0
    %3553 = vmatprep.subr.mxu0 0.0
    %3554 = vmatpush1.msra.mxu0 0.0
    %3555 = vmatprep.subr.mxu0 0.0
    %3556 = vmatpush1.msra.mxu0 0.0
    %3557 = vmatprep.subr.mxu0 0.0
    %3558 = vmatpush1.msra.mxu0 0.0
    %3559 = vmatprep.subr.mxu0 0.0
    %3560 = vmatpush1.msra.mxu0 0.0
    %3561 = vmatprep.subr.mxu0 0.0
    %3562 = vmatpush1.msra.mxu0 0.0
    %3563 = vmatprep.subr.mxu0 0.0
    %3564 = vmatpush1.msra.mxu0 0.0
    %3565 = vmatprep.subr.mxu0 0.0
    %3566 = vmatpush1.msra.mxu0 0.0
    %3567 = vmatprep.subr.mxu0 0.0
    %3568 = vmatpush1.msra.mxu0 0.0
    %3569 = vmatprep.subr.mxu0 0.0
    %3570 = vmatpush1.msra.mxu0 0.0
    %3571 = vmatprep.subr.mxu0 0.0
    %3572 = vmatpush1.msra.mxu0 0.0
    %3573 = vmatprep.subr.mxu0 0.0
    %3574 = vmatpush1.msra.mxu0 0.0
    %3575 = vmatprep.subr.mxu0 0.0
    %3576 = vmatpush1.msra.mxu0 0.0
    %3577 = vmatprep.subr.mxu0 0.0
    %3578 = vmatpush1.msra.mxu0 0.0
    %3579 = vmatprep.subr.mxu0 0.0
    %3580 = vmatpush1.msra.mxu0 0.0
    %3581 = vmatprep.subr.mxu0 0.0
    %3582 = vmatpush1.msra.mxu0 0.0
    %3583 = vmatprep.subr.mxu0 0.0
    %3584 = vmatpush1.msra.mxu0 0.0
    %3585 = vmatprep.subr.mxu0 0.0
    %3586 = vmatpush1.msra.mxu0 0.0
    %3587 = vmatprep.subr.mxu0 0.0
    %3588 = vmatpush1.msra.mxu0 0.0
    %3589 = vmatprep.subr.mxu0 0.0
    %3590 = vmatpush1.msra.mxu0 0.0
    %3591 = vmatprep.subr.mxu0 0.0
    %3592 = vmatpush1.msra.mxu0 0.0
    %3593 = vmatprep.subr.mxu0 0.0
    %3594 = vmatpush1.msra.mxu0 0.0
    %3595 = vmatprep.subr.mxu0 0.0
    %3596 = vmatpush1.msra.mxu0 0.0
    %3597 = vmatprep.subr.mxu0 0.0
    %3598 = vmatpush1.msra.mxu0 0.0
    %3599 = vmatprep.subr.mxu0 0.0
    %3600 = vmatpush1.msra.mxu0 0.0
    %3601 = vmatprep.mubr.f32.mxu0 0.0
    %3602 = vmatmul.mubr.f32.gmra.mrb[0].mxu0 %v3535
    %v3603 = vpop.f32.mrb[0].mxu0
    %v3604 = vadd.f32 0.0, %v3603
    %v3605 = vpop.f32.mrb[0].mxu0
    %3606 = vdwg.mxu0
    %v3608 = vsel %vm153, %v3366, 0
    %3610 = vmatprep.subr.mxu0 0.0
    %3611 = vmatpush1.msra.mxu0 %v26
    %3612 = vmatprep.subr.mxu0 0.0
    %3613 = vmatpush1.msra.mxu0 0.0
    %3614 = vmatprep.subr.mxu0 0.0
    %3615 = vmatpush1.msra.mxu0 0.0
    %3616 = vmatprep.subr.mxu0 0.0
    %3617 = vmatpush1.msra.mxu0 0.0
    %3618 = vmatprep.subr.mxu0 0.0
    %3619 = vmatpush1.msra.mxu0 0.0
    %3620 = vmatprep.subr.mxu0 0.0
    %3621 = vmatpush1.msra.mxu0 0.0
    %3622 = vmatprep.subr.mxu0 0.0
    %3623 = vmatpush1.msra.mxu0 0.0
    %3624 = vmatprep.subr.mxu0 0.0
    %3625 = vmatpush1.msra.mxu0 0.0
    %3626 = vmatprep.subr.mxu0 0.0
    %3627 = vmatpush1.msra.mxu0 0.0
    %3628 = vmatprep.subr.mxu0 0.0
    %3629 = vmatpush1.msra.mxu0 0.0
    %3630 = vmatprep.subr.mxu0 0.0
    %3631 = vmatpush1.msra.mxu0 0.0
    %3632 = vmatprep.subr.mxu0 0.0
    %3633 = vmatpush1.msra.mxu0 0.0
    %3634 = vmatprep.subr.mxu0 0.0
    %3635 = vmatpush1.msra.mxu0 0.0
    %3636 = vmatprep.subr.mxu0 0.0
    %3637 = vmatpush1.msra.mxu0 0.0
    %3638 = vmatprep.subr.mxu0 0.0
    %3639 = vmatpush1.msra.mxu0 0.0
    %3640 = vmatprep.subr.mxu0 0.0
    %3641 = vmatpush1.msra.mxu0 0.0
    %3642 = vmatprep.subr.mxu0 0.0
    %3643 = vmatpush1.msra.mxu0 0.0
    %3644 = vmatprep.subr.mxu0 0.0
    %3645 = vmatpush1.msra.mxu0 0.0
    %3646 = vmatprep.subr.mxu0 0.0
    %3647 = vmatpush1.msra.mxu0 0.0
    %3648 = vmatprep.subr.mxu0 0.0
    %3649 = vmatpush1.msra.mxu0 0.0
    %3650 = vmatprep.subr.mxu0 0.0
    %3651 = vmatpush1.msra.mxu0 0.0
    %3652 = vmatprep.subr.mxu0 0.0
    %3653 = vmatpush1.msra.mxu0 0.0
    %3654 = vmatprep.subr.mxu0 0.0
    %3655 = vmatpush1.msra.mxu0 0.0
    %3656 = vmatprep.subr.mxu0 0.0
    %3657 = vmatpush1.msra.mxu0 0.0
    %3658 = vmatprep.subr.mxu0 0.0
    %3659 = vmatpush1.msra.mxu0 0.0
    %3660 = vmatprep.subr.mxu0 0.0
    %3661 = vmatpush1.msra.mxu0 0.0
    %3662 = vmatprep.subr.mxu0 0.0
    %3663 = vmatpush1.msra.mxu0 0.0
    %3664 = vmatprep.subr.mxu0 0.0
    %3665 = vmatpush1.msra.mxu0 0.0
    %3666 = vmatprep.subr.mxu0 0.0
    %3667 = vmatpush1.msra.mxu0 0.0
    %3668 = vmatprep.subr.mxu0 0.0
    %3669 = vmatpush1.msra.mxu0 0.0
    %3670 = vmatprep.subr.mxu0 0.0
    %3671 = vmatpush1.msra.mxu0 0.0
    %3672 = vmatprep.subr.mxu0 0.0
    %3673 = vmatpush1.msra.mxu0 0.0
    %3674 = vmatprep.mubr.f32.mxu0 0.0
    %3675 = vmatmul.mubr.f32.gmra.mrb[0].mxu0 %v3608
    %v3676 = vpop.f32.mrb[0].mxu0
    %v3677 = vadd.f32 %v3604, %v3676
    %v3678 = vpop.f32.mrb[0].mxu0
    %3679 = vdwg.mxu0
    %3680 = vrot.lane.b32.xlu0 %v2170, 112
    %v3681 = vpop.permute.xlu0 %3680
    %3682 = vrot.lane.b32.xlu0 %v2251, 112
    %v3683 = vpop.permute.xlu0 %3682
    %v3684 = vsel %vm153, %v3681, 0
    %v3686 = vsel %vm153, %v3683, 0
    %3688 = vmatprep.subr.mxu0 0.0
    %3689 = vmatpush1.xpose.msra.mxu0 %v3686
    %3690 = vmatprep.subr.mxu0 0.0
    %3691 = vmatpush1.xpose.msra.mxu0 0.0
    %3692 = vmatprep.subr.mxu0 0.0
    %3693 = vmatpush1.xpose.msra.mxu0 0.0
    %3694 = vmatprep.subr.mxu0 0.0
    %3695 = vmatpush1.xpose.msra.mxu0 0.0
    %3696 = vmatprep.subr.mxu0 0.0
    %3697 = vmatpush1.xpose.msra.mxu0 0.0
    %3698 = vmatprep.subr.mxu0 0.0
    %3699 = vmatpush1.xpose.msra.mxu0 0.0
    %3700 = vmatprep.subr.mxu0 0.0
    %3701 = vmatpush1.xpose.msra.mxu0 0.0
    %3702 = vmatprep.subr.mxu0 0.0
    %3703 = vmatpush1.xpose.msra.mxu0 0.0
    %3704 = vmatprep.subr.mxu0 0.0
    %3705 = vmatpush1.xpose.msra.mxu0 0.0
    %3706 = vmatprep.subr.mxu0 0.0
    %3707 = vmatpush1.xpose.msra.mxu0 0.0
    %3708 = vmatprep.subr.mxu0 0.0
    %3709 = vmatpush1.xpose.msra.mxu0 0.0
    %3710 = vmatprep.subr.mxu0 0.0
    %3711 = vmatpush1.xpose.msra.mxu0 0.0
    %3712 = vmatprep.subr.mxu0 0.0
    %3713 = vmatpush1.xpose.msra.mxu0 0.0
    %3714 = vmatprep.subr.mxu0 0.0
    %3715 = vmatpush1.xpose.msra.mxu0 0.0
    %3716 = vmatprep.subr.mxu0 0.0
    %3717 = vmatpush1.xpose.msra.mxu0 0.0
    %3718 = vmatprep.subr.mxu0 0.0
    %3719 = vmatpush1.xpose.msra.mxu0 0.0
    %3720 = vmatprep.subr.mxu0 0.0
    %3721 = vmatpush1.xpose.msra.mxu0 0.0
    %3722 = vmatprep.subr.mxu0 0.0
    %3723 = vmatpush1.xpose.msra.mxu0 0.0
    %3724 = vmatprep.subr.mxu0 0.0
    %3725 = vmatpush1.xpose.msra.mxu0 0.0
    %3726 = vmatprep.subr.mxu0 0.0
    %3727 = vmatpush1.xpose.msra.mxu0 0.0
    %3728 = vmatprep.subr.mxu0 0.0
    %3729 = vmatpush1.xpose.msra.mxu0 0.0
    %3730 = vmatprep.subr.mxu0 0.0
    %3731 = vmatpush1.xpose.msra.mxu0 0.0
    %3732 = vmatprep.subr.mxu0 0.0
    %3733 = vmatpush1.xpose.msra.mxu0 0.0
    %3734 = vmatprep.subr.mxu0 0.0
    %3735 = vmatpush1.xpose.msra.mxu0 0.0
    %3736 = vmatprep.subr.mxu0 0.0
    %3737 = vmatpush1.xpose.msra.mxu0 0.0
    %3738 = vmatprep.subr.mxu0 0.0
    %3739 = vmatpush1.xpose.msra.mxu0 0.0
    %3740 = vmatprep.subr.mxu0 0.0
    %3741 = vmatpush1.xpose.msra.mxu0 0.0
    %3742 = vmatprep.subr.mxu0 0.0
    %3743 = vmatpush1.xpose.msra.mxu0 0.0
    %3744 = vmatprep.subr.mxu0 0.0
    %3745 = vmatpush1.xpose.msra.mxu0 0.0
    %3746 = vmatprep.subr.mxu0 0.0
    %3747 = vmatpush1.xpose.msra.mxu0 0.0
    %3748 = vmatprep.subr.mxu0 0.0
    %3749 = vmatpush1.xpose.msra.mxu0 0.0
    %3750 = vmatprep.subr.mxu0 0.0
    %3751 = vmatpush1.xpose.msra.mxu0 0.0
    %3752 = vmatprep.mubr.f32.mxu0 0.0
    %3753 = vmatmul.mubr.f32.gmra.mrb[0].mxu0 %v3684
    %v3754 = vpop.f32.mrb[0].mxu0
    %v3755 = vadd.f32 %v21, %v3754
    %v3756 = vpop.f32.mrb[0].mxu0
    %3757 = vdwg.mxu0
    %v3758 = vsel %vm153, %v3755, -inf
    %3759 = vmax.xlane.f32.xlu0 %v3758
    %v3760 = vpop.xlane.xlu0 %3759
    %v3761 = vsub.f32 %v3755, %v3760
    %v3762 = vmul.f32 %v3761, 1.442695
    %v3763 = vpow.pop %v3762
    %v3764 = vsel %vm153, %v3763, 0.0
    %3765 = vadd.xlane.f32.xlu0 %v3764
    %v3766 = vpop.xlane.xlu0 %3765
    %v3767 = vrcp.pop %v3766
    %v3768 = vmul.f32 %v3763, %v3767
    %3769 = vrot.lane.b32.xlu0 %v2251, 80
    %v3770 = vpop.permute.xlu0 %3769
    %v3773 = vsel %vm153, %v3768, 0
    %3775 = vmatprep.subr.mxu0 0.0
    %3776 = vmatpush1.msra.mxu0 %v3770
    %3777 = vmatprep.subr.mxu0 0.0
    %3778 = vmatpush1.msra.mxu0 0.0
    %3779 = vmatprep.subr.mxu0 0.0
    %3780 = vmatpush1.msra.mxu0 0.0
    %3781 = vmatprep.subr.mxu0 0.0
    %3782 = vmatpush1.msra.mxu0 0.0
    %3783 = vmatprep.subr.mxu0 0.0
    %3784 = vmatpush1.msra.mxu0 0.0
    %3785 = vmatprep.subr.mxu0 0.0
    %3786 = vmatpush1.msra.mxu0 0.0
    %3787 = vmatprep.subr.mxu0 0.0
    %3788 = vmatpush1.msra.mxu0 0.0
    %3789 = vmatprep.subr.mxu0 0.0
    %3790 = vmatpush1.msra.mxu0 0.0
    %3791 = vmatprep.subr.mxu0 0.0
    %3792 = vmatpush1.msra.mxu0 0.0
    %3793 = vmatprep.subr.mxu0 0.0
    %3794 = vmatpush1.msra.mxu0 0.0
    %3795 = vmatprep.subr.mxu0 0.0
    %3796 = vmatpush1.msra.mxu0 0.0
    %3797 = vmatprep.subr.mxu0 0.0
    %3798 = vmatpush1.msra.mxu0 0.0
    %3799 = vmatprep.subr.mxu0 0.0
    %3800 = vmatpush1.msra.mxu0 0.0
    %3801 = vmatprep.subr.mxu0 0.0
    %3802 = vmatpush1.msra.mxu0 0.0
    %3803 = vmatprep.subr.mxu0 0.0
    %3804 = vmatpush1.msra.mxu0 0.0
    %3805 = vmatprep.subr.mxu0 0.0
    %3806 = vmatpush1.msra.mxu0 0.0
    %3807 = vmatprep.subr.mxu0 0.0
    %3808 = vmatpush1.msra.mxu0 0.0
    %3809 = vmatprep.subr.mxu0 0.0
    %3810 = vmatpush1.msra.mxu0 0.0
    %3811 = vmatprep.subr.mxu0 0.0
    %3812 = vmatpush1.msra.mxu0 0.0
    %3813 = vmatprep.subr.mxu0 0.0
    %3814 = vmatpush1.msra.mxu0 0.0
    %3815 = vmatprep.subr.mxu0 0.0
    %3816 = vmatpush1.msra.mxu0 0.0
    %3817 = vmatprep.subr.mxu0 0.0
    %3818 = vmatpush1.msra.mxu0 0.0
    %3819 = vmatprep.subr.mxu0 0.0
    %3820 = vmatpush1.msra.mxu0 0.0
    %3821 = vmatprep.subr.mxu0 0.0
    %3822 = vmatpush1.msra.mxu0 0.0
    %3823 = vmatprep.subr.mxu0 0.0
    %3824 = vmatpush1.msra.mxu0 0.0
    %3825 = vmatprep.subr.mxu0 0.0
    %3826 = vmatpush1.msra.mxu0 0.0
    %3827 = vmatprep.subr.mxu0 0.0
    %3828 = vmatpush1.msra.mxu0 0.0
    %3829 = vmatprep.subr.mxu0 0.0
    %3830 = vmatpush1.msra.mxu0 0.0
    %3831 = vmatprep.subr.mxu0 0.0
    %3832 = vmatpush1.msra.mxu0 0.0
    %3833 = vmatprep.subr.mxu0 0.0
    %3834 = vmatpush1.msra.mxu0 0.0
    %3835 = vmatprep.subr.mxu0 0.0
    %3836 = vmatpush1.msra.mxu0 0.0
    %3837 = vmatprep.subr.mxu0 0.0
    %3838 = vmatpush1.msra.mxu0 0.0
    %3839 = vmatprep.mubr.f32.mxu0 0.0
    %3840 = vmatmul.mubr.f32.gmra.mrb[0].mxu0 %v3773
    %v3841 = vpop.f32.mrb[0].mxu0
    %v3842 = vadd.f32 0.0, %v3841
    %v3843 = vpop.f32.mrb[0].mxu0
    %3844 = vdwg.mxu0
    %v3846 = vsel %vm153, %v3842, 0
    %3848 = vmatprep.subr.mxu0 0.0
    %3849 = vmatpush1.msra.mxu0 %v40
    %3850 = vmatprep.subr.mxu0 0.0
    %3851 = vmatpush1.msra.mxu0 0.0
    %3852 = vmatprep.subr.mxu0 0.0
    %3853 = vmatpush1.msra.mxu0 0.0
    %3854 = vmatprep.subr.mxu0 0.0
    %3855 = vmatpush1.msra.mxu0 0.0
    %3856 = vmatprep.subr.mxu0 0.0
    %3857 = vmatpush1.msra.mxu0 0.0
    %3858 = vmatprep.subr.mxu0 0.0
    %3859 = vmatpush1.msra.mxu0 0.0
    %3860 = vmatprep.subr.mxu0 0.0
    %3861 = vmatpush1.msra.mxu0 0.0
    %3862 = vmatprep.subr.mxu0 0.0
    %3863 = vmatpush1.msra.mxu0 0.0
    %3864 = vmatprep.subr.mxu0 0.0
    %3865 = vmatpush1.msra.mxu0 0.0
    %3866 = vmatprep.subr.mxu0 0.0
    %3867 = vmatpush1.msra.mxu0 0.0
    %3868 = vmatprep.subr.mxu0 0.0
    %3869 = vmatpush1.msra.mxu0 0.0
    %3870 = vmatprep.subr.mxu0 0.0
    %3871 = vmatpush1.msra.mxu0 0.0
    %3872 = vmatprep.subr.mxu0 0.0
    %3873 = vmatpush1.msra.mxu0 0.0
    %3874 = vmatprep.subr.mxu0 0.0
    %3875 = vmatpush1.msra.mxu0 0.0
    %3876 = vmatprep.subr.mxu0 0.0
    %3877 = vmatpush1.msra.mxu0 0.0
    %3878 = vmatprep.subr.mxu0 0.0
    %3879 = vmatpush1.msra.mxu0 0.0
    %3880 = vmatprep.subr.mxu0 0.0
    %3881 = vmatpush1.msra.mxu0 0.0
    %3882 = vmatprep.subr.mxu0 0.0
    %3883 = vmatpush1.msra.mxu0 0.0
    %3884 = vmatprep.subr.mxu0 0.0
    %3885 = vmatpush1.msra.mxu0 0.0
    %3886 = vmatprep.subr.mxu0 0.0
    %3887 = vmatpush1.msra.mxu0 0.0
    %3888 = vmatprep.subr.mxu0 0.0
    %3889 = vmatpush1.msra.mxu0 0.0
    %3890 = vmatprep.subr.mxu0 0.0
    %3891 = vmatpush1.msra.mxu0 0.0
    %3892 = vmatprep.subr.mxu0 0.0
    %3893 = vmatpush1.msra.mxu0 0.0
    %3894 = vmatprep.subr.mxu0 0.0
    %3895 = vmatpush1.msra.mxu0 0.0
    %3896 = vmatprep.subr.mxu0 0.0
    %3897 = vmatpush1.msra.mxu0 0.0
    %3898 = vmatprep.subr.mxu0 0.0
    %3899 = vmatpush1.msra.mxu0 0.0
    %3900 = vmatprep.subr.mxu0 0.0
    %3901 = vmatpush1.msra.mxu0 0.0
    %3902 = vmatprep.subr.mxu0 0.0
    %3903 = vmatpush1.msra.mxu0 0.0
    %3904 = vmatprep.subr.mxu0 0.0
    %3905 = vmatpush1.msra.mxu0 0.0
    %3906 = vmatprep.subr.mxu0 0.0
    %3907 = vmatpush1.msra.mxu0 0.0
    %3908 = vmatprep.subr.mxu0 0.0
    %3909 = vmatpush1.msra.mxu0 0.0
    %3910 = vmatprep.subr.mxu0 0.0
    %3911 = vmatpush1.msra.mxu0 0.0
    %3912 = vmatprep.mubr.f32.mxu0 0.0
    %3913 = vmatmul.mubr.f32.gmra.mrb[0].mxu0 %v3846
    %v3914 = vpop.f32.mrb[0].mxu0
    %v3915 = vadd.f32 0.0, %v3914
    %v3916 = vpop.f32.mrb[0].mxu0
    %3917 = vdwg.mxu0
    %v3918 = vadd.f32 %v3677, %v3915
    %3919 = vrot.lane.b32.xlu0 %v2170, 104
    %v3920 = vpop.permute.xlu0 %3919
    %3921 = vrot.lane.b32.xlu0 %v2251, 104
    %v3922 = vpop.permute.xlu0 %3921
    %v3923 = vsel %vm153, %v3920, 0
    %v3925 = vsel %vm153, %v3922, 0
    %3927 = vmatprep.subr.mxu0 0.0
    %3928 = vmatpush1.xpose.msra.mxu0 %v3925
    %3929 = vmatprep.subr.mxu0 0.0
    %3930 = vmatpush1.xpose.msra.mxu0 0.0
    %3931 = vmatprep.subr.mxu0 0.0
    %3932 = vmatpush1.xpose.msra.mxu0 0.0
    %3933 = vmatprep.subr.mxu0 0.0
    %3934 = vmatpush1.xpose.msra.mxu0 0.0
    %3935 = vmatprep.subr.mxu0 0.0
    %3936 = vmatpush1.xpose.msra.mxu0 0.0
    %3937 = vmatprep.subr.mxu0 0.0
    %3938 = vmatpush1.xpose.msra.mxu0 0.0
    %3939 = vmatprep.subr.mxu0 0.0
    %3940 = vmatpush1.xpose.msra.mxu0 0.0
    %3941 = vmatprep.subr.mxu0 0.0
    %3942 = vmatpush1.xpose.msra.mxu0 0.0
    %3943 = vmatprep.subr.mxu0 0.0
    %3944 = vmatpush1.xpose.msra.mxu0 0.0
    %3945 = vmatprep.subr.mxu0 0.0
    %3946 = vmatpush1.xpose.msra.mxu0 0.0
    %3947 = vmatprep.subr.mxu0 0.0
    %3948 = vmatpush1.xpose.msra.mxu0 0.0
    %3949 = vmatprep.subr.mxu0 0.0
    %3950 = vmatpush1.xpose.msra.mxu0 0.0
    %3951 = vmatprep.subr.mxu0 0.0
    %3952 = vmatpush1.xpose.msra.mxu0 0.0
    %3953 = vmatprep.subr.mxu0 0.0
    %3954 = vmatpush1.xpose.msra.mxu0 0.0
    %3955 = vmatprep.subr.mxu0 0.0
    %3956 = vmatpush1.xpose.msra.mxu0 0.0
    %3957 = vmatprep.subr.mxu0 0.0
    %3958 = vmatpush1.xpose.msra.mxu0 0.0
    %3959 = vmatprep.subr.mxu0 0.0
    %3960 = vmatpush1.xpose.msra.mxu0 0.0
    %3961 = vmatprep.subr.mxu0 0.0
    %3962 = vmatpush1.xpose.msra.mxu0 0.0
    %3963 = vmatprep.subr.mxu0 0.0
    %3964 = vmatpush1.xpose.msra.mxu0 0.0
    %3965 = vmatprep.subr.mxu0 0.0
    %3966 = vmatpush1.xpose.msra.mxu0 0.0
    %3967 = vmatprep.subr.mxu0 0.0
    %3968 = vmatpush1.xpose.msra.mxu0 0.0
    %3969 = vmatprep.subr.mxu0 0.0
    %3970 = vmatpush1.xpose.msra.mxu0 0.0
    %3971 = vmatprep.subr.mxu0 0.0
    %3972 = vmatpush1.xpose.msra.mxu0 0.0
    %3973 = vmatprep.subr.mxu0 0.0
    %3974 = vmatpush1.xpose.msra.mxu0 0.0
    %3975 = vmatprep.subr.mxu0 0.0
    %3976 = vmatpush1.xpose.msra.mxu0 0.0
    %3977 = vmatprep.subr.mxu0 0.0
    %3978 = vmatpush1.xpose.msra.mxu0 0.0
    %3979 = vmatprep.subr.mxu0 0.0
    %3980 = vmatpush1.xpose.msra.mxu0 0.0
    %3981 = vmatprep.subr.mxu0 0.0
    %3982 = vmatpush1.xpose.msra.mxu0 0.0
    %3983 = vmatprep.subr.mxu0 0.0
    %3984 = vmatpush1.xpose.msra.mxu0 0.0
    %3985 = vmatprep.subr.mxu0 0.0
    %3986 = vmatpush1.xpose.msra.mxu0 0.0
    %3987 = vmatprep.subr.mxu0 0.0
    %3988 = vmatpush1.xpose.msra.mxu0 0.0
    %3989 = vmatprep.subr.mxu0 0.0
    %3990 = vmatpush1.xpose.msra.mxu0 0.0
    %3991 = vmatprep.mubr.f32.mxu0 0.0
    %3992 = vmatmul.mubr.f32.gmra.mrb[0].mxu0 %v3923
    %v3993 = vpop.f32.mrb[0].mxu0
    %v3994 = vadd.f32 %v21, %v3993
    %v3995 = vpop.f32.mrb[0].mxu0
    %3996 = vdwg.mxu0
    %v3997 = vsel %vm153, %v3994, -inf
    %3998 = vmax.xlane.f32.xlu0 %v3997
    %v3999 = vpop.xlane.xlu0 %3998
    %v4000 = vsub.f32 %v3994, %v3999
    %v4001 = vmul.f32 %v4000, 1.442695
    %v4002 = vpow.pop %v4001
    %v4003 = vsel %vm153, %v4002, 0.0
    %4004 = vadd.xlane.f32.xlu0 %v4003
    %v4005 = vpop.xlane.xlu0 %4004
    %v4006 = vrcp.pop %v4005
    %v4007 = vmul.f32 %v4002, %v4006
    %4008 = vrot.lane.b32.xlu0 %v2251, 72
    %v4009 = vpop.permute.xlu0 %4008
    %v4012 = vsel %vm153, %v4007, 0
    %4014 = vmatprep.subr.mxu0 0.0
    %4015 = vmatpush1.msra.mxu0 %v4009
    %4016 = vmatprep.subr.mxu0 0.0
    %4017 = vmatpush1.msra.mxu0 0.0
    %4018 = vmatprep.subr.mxu0 0.0
    %4019 = vmatpush1.msra.mxu0 0.0
    %4020 = vmatprep.subr.mxu0 0.0
    %4021 = vmatpush1.msra.mxu0 0.0
    %4022 = vmatprep.subr.mxu0 0.0
    %4023 = vmatpush1.msra.mxu0 0.0
    %4024 = vmatprep.subr.mxu0 0.0
    %4025 = vmatpush1.msra.mxu0 0.0
    %4026 = vmatprep.subr.mxu0 0.0
    %4027 = vmatpush1.msra.mxu0 0.0
    %4028 = vmatprep.subr.mxu0 0.0
    %4029 = vmatpush1.msra.mxu0 0.0
    %4030 = vmatprep.subr.mxu0 0.0
    %4031 = vmatpush1.msra.mxu0 0.0
    %4032 = vmatprep.subr.mxu0 0.0
    %4033 = vmatpush1.msra.mxu0 0.0
    %4034 = vmatprep.subr.mxu0 0.0
    %4035 = vmatpush1.msra.mxu0 0.0
    %4036 = vmatprep.subr.mxu0 0.0
    %4037 = vmatpush1.msra.mxu0 0.0
    %4038 = vmatprep.subr.mxu0 0.0
    %4039 = vmatpush1.msra.mxu0 0.0
    %4040 = vmatprep.subr.mxu0 0.0
    %4041 = vmatpush1.msra.mxu0 0.0
    %4042 = vmatprep.subr.mxu0 0.0
    %4043 = vmatpush1.msra.mxu0 0.0
    %4044 = vmatprep.subr.mxu0 0.0
    %4045 = vmatpush1.msra.mxu0 0.0
    %4046 = vmatprep.subr.mxu0 0.0
    %4047 = vmatpush1.msra.mxu0 0.0
    %4048 = vmatprep.subr.mxu0 0.0
    %4049 = vmatpush1.msra.mxu0 0.0
    %4050 = vmatprep.subr.mxu0 0.0
    %4051 = vmatpush1.msra.mxu0 0.0
    %4052 = vmatprep.subr.mxu0 0.0
    %4053 = vmatpush1.msra.mxu0 0.0
    %4054 = vmatprep.subr.mxu0 0.0
    %4055 = vmatpush1.msra.mxu0 0.0
    %4056 = vmatprep.subr.mxu0 0.0
    %4057 = vmatpush1.msra.mxu0 0.0
    %4058 = vmatprep.subr.mxu0 0.0
    %4059 = vmatpush1.msra.mxu0 0.0
    %4060 = vmatprep.subr.mxu0 0.0
    %4061 = vmatpush1.msra.mxu0 0.0
    %4062 = vmatprep.subr.mxu0 0.0
    %4063 = vmatpush1.msra.mxu0 0.0
    %4064 = vmatprep.subr.mxu0 0.0
    %4065 = vmatpush1.msra.mxu0 0.0
    %4066 = vmatprep.subr.mxu0 0.0
    %4067 = vmatpush1.msra.mxu0 0.0
    %4068 = vmatprep.subr.mxu0 0.0
    %4069 = vmatpush1.msra.mxu0 0.0
    %4070 = vmatprep.subr.mxu0 0.0
    %4071 = vmatpush1.msra.mxu0 0.0
    %4072 = vmatprep.subr.mxu0 0.0
    %4073 = vmatpush1.msra.mxu0 0.0
    %4074 = vmatprep.subr.mxu0 0.0
    %4075 = vmatpush1.msra.mxu0 0.0
    %4076 = vmatprep.subr.mxu0 0.0
    %4077 = vmatpush1.msra.mxu0 0.0
    %4078 = vmatprep.mubr.f32.mxu0 0.0
    %4079 = vmatmul.mubr.f32.gmra.mrb[0].mxu0 %v4012
    %v4080 = vpop.f32.mrb[0].mxu0
    %v4081 = vadd.f32 0.0, %v4080
    %v4082 = vpop.f32.mrb[0].mxu0
    %4083 = vdwg.mxu0
    %v4085 = vsel %vm153, %v4081, 0
    %4087 = vmatprep.subr.mxu0 0.0
    %4088 = vmatpush1.msra.mxu0 %v47
    %4089 = vmatprep.subr.mxu0 0.0
    %4090 = vmatpush1.msra.mxu0 0.0
    %4091 = vmatprep.subr.mxu0 0.0
    %4092 = vmatpush1.msra.mxu0 0.0
    %4093 = vmatprep.subr.mxu0 0.0
    %4094 = vmatpush1.msra.mxu0 0.0
    %4095 = vmatprep.subr.mxu0 0.0
    %4096 = vmatpush1.msra.mxu0 0.0
    %4097 = vmatprep.subr.mxu0 0.0
    %4098 = vmatpush1.msra.mxu0 0.0
    %4099 = vmatprep.subr.mxu0 0.0
    %4100 = vmatpush1.msra.mxu0 0.0
    %4101 = vmatprep.subr.mxu0 0.0
    %4102 = vmatpush1.msra.mxu0 0.0
    %4103 = vmatprep.subr.mxu0 0.0
    %4104 = vmatpush1.msra.mxu0 0.0
    %4105 = vmatprep.subr.mxu0 0.0
    %4106 = vmatpush1.msra.mxu0 0.0
    %4107 = vmatprep.subr.mxu0 0.0
    %4108 = vmatpush1.msra.mxu0 0.0
    %4109 = vmatprep.subr.mxu0 0.0
    %4110 = vmatpush1.msra.mxu0 0.0
    %4111 = vmatprep.subr.mxu0 0.0
    %4112 = vmatpush1.msra.mxu0 0.0
    %4113 = vmatprep.subr.mxu0 0.0
    %4114 = vmatpush1.msra.mxu0 0.0
    %4115 = vmatprep.subr.mxu0 0.0
    %4116 = vmatpush1.msra.mxu0 0.0
    %4117 = vmatprep.subr.mxu0 0.0
    %4118 = vmatpush1.msra.mxu0 0.0
    %4119 = vmatprep.subr.mxu0 0.0
    %4120 = vmatpush1.msra.mxu0 0.0
    %4121 = vmatprep.subr.mxu0 0.0
    %4122 = vmatpush1.msra.mxu0 0.0
    %4123 = vmatprep.subr.mxu0 0.0
    %4124 = vmatpush1.msra.mxu0 0.0
    %4125 = vmatprep.subr.mxu0 0.0
    %4126 = vmatpush1.msra.mxu0 0.0
    %4127 = vmatprep.subr.mxu0 0.0
    %4128 = vmatpush1.msra.mxu0 0.0
    %4129 = vmatprep.subr.mxu0 0.0
    %4130 = vmatpush1.msra.mxu0 0.0
    %4131 = vmatprep.subr.mxu0 0.0
    %4132 = vmatpush1.msra.mxu0 0.0
    %4133 = vmatprep.subr.mxu0 0.0
    %4134 = vmatpush1.msra.mxu0 0.0
    %4135 = vmatprep.subr.mxu0 0.0
    %4136 = vmatpush1.msra.mxu0 0.0
    %4137 = vmatprep.subr.mxu0 0.0
    %4138 = vmatpush1.msra.mxu0 0.0
    %4139 = vmatprep.subr.mxu0 0.0
    %4140 = vmatpush1.msra.mxu0 0.0
    %4141 = vmatprep.subr.mxu0 0.0
    %4142 = vmatpush1.msra.mxu0 0.0
    %4143 = vmatprep.subr.mxu0 0.0
    %4144 = vmatpush1.msra.mxu0 0.0
    %4145 = vmatprep.subr.mxu0 0.0
    %4146 = vmatpush1.msra.mxu0 0.0
    %4147 = vmatprep.subr.mxu0 0.0
    %4148 = vmatpush1.msra.mxu0 0.0
    %4149 = vmatprep.subr.mxu0 0.0
    %4150 = vmatpush1.msra.mxu0 0.0
    %4151 = vmatprep.mubr.f32.mxu0 0.0
    %4152 = vmatmul.mubr.f32.gmra.mrb[0].mxu0 %v4085
    %v4153 = vpop.f32.mrb[0].mxu0
    %v4154 = vadd.f32 0.0, %v4153
    %v4155 = vpop.f32.mrb[0].mxu0
    %4156 = vdwg.mxu0
    %v4157 = vadd.f32 %v3918, %v4154
    %v4158 = vadd.f32 %v3205, %v54
    %v4159 = vadd.f32 %v4157, %v63
    %v4160 = vadd.f32 %v4158, %v2090
    %v4161 = vadd.f32 %v4159, %v2091
    %v4162 = vsel %vm68, %v4160, 0.0
    %4163 = vadd.xlane.f32.xlu0 %v4162
    %v4164 = vpop.xlane.xlu0 %4163
    %v4165 = vsel %vm68, %v4161, 0.0
    %4166 = vadd.xlane.f32.xlu0 %v4165
    %v4167 = vpop.xlane.xlu0 %4166
    %v4168 = vmul.f32 %v4164, %v2067
    %v4169 = vmul.f32 %v4167, %v2067
    %v4170 = vsub.f32 %v4160, %v4168
    %v4171 = vsub.f32 %v4161, %v4169
    %v4172 = vmul.f32 %v4170, %v4170
    %v4173 = vmul.f32 %v4171, %v4171
    %v4174 = vsel %vm68, %v4172, 0.0
    %4175 = vadd.xlane.f32.xlu0 %v4174
    %v4176 = vpop.xlane.xlu0 %4175
    %v4177 = vsel %vm68, %v4173, 0.0
    %4178 = vadd.xlane.f32.xlu0 %v4177
    %v4179 = vpop.xlane.xlu0 %4178
    %v4180 = vmul.f32 %v4176, %v2067
    %v4181 = vmul.f32 %v4179, %v2067
    %v4182 = vadd.f32 %v4180, 1e-05
    %v4183 = vadd.f32 %v4181, 1e-05
    %v4184 = vrsqrt.pop %v4182
    %v4185 = vrsqrt.pop %v4183
    %v4186 = vmul.f32 %v4170, %v4184
    %v4187 = vmul.f32 %v4171, %v4185
    %v4188 = vmul.f32 %v4186, %v57
    %v4189 = vmul.f32 %v4187, %v66
    %v4190 = vadd.f32 %v4188, %v58
    %v4191 = vadd.f32 %v4189, %v67
    %v4193 = vsel %vm68, %v4190, 0
    %v4196 = vsel %vm68, %v4191, 0
    %4198 = vmatprep.subr.mxu0 0.0
    %4199 = vmatpush1.msra.mxu0 %v27
    %4200 = vmatprep.subr.mxu0 0.0
    %4201 = vmatpush1.msra.mxu0 %v34
    %4202 = vmatprep.subr.mxu0 0.0
    %4203 = vmatpush1.msra.mxu0 %v41
    %4204 = vmatprep.subr.mxu0 0.0
    %4205 = vmatpush1.msra.mxu0 %v48
    %4206 = vmatprep.subr.mxu0 0.0
    %4207 = vmatpush1.msra.mxu0 0.0
    %4208 = vmatprep.subr.mxu0 0.0
    %4209 = vmatpush1.msra.mxu0 0.0
    %4210 = vmatprep.subr.mxu0 0.0
    %4211 = vmatpush1.msra.mxu0 0.0
    %4212 = vmatprep.subr.mxu0 0.0
    %4213 = vmatpush1.msra.mxu0 0.0
    %4214 = vmatprep.subr.mxu0 0.0
    %4215 = vmatpush1.msra.mxu0 0.0
    %4216 = vmatprep.subr.mxu0 0.0
    %4217 = vmatpush1.msra.mxu0 0.0
    %4218 = vmatprep.subr.mxu0 0.0
    %4219 = vmatpush1.msra.mxu0 0.0
    %4220 = vmatprep.subr.mxu0 0.0
    %4221 = vmatpush1.msra.mxu0 0.0
    %4222 = vmatprep.subr.mxu0 0.0
    %4223 = vmatpush1.msra.mxu0 0.0
    %4224 = vmatprep.subr.mxu0 0.0
    %4225 = vmatpush1.msra.mxu0 0.0
    %4226 = vmatprep.subr.mxu0 0.0
    %4227 = vmatpush1.msra.mxu0 0.0
    %4228 = vmatprep.subr.mxu0 0.0
    %4229 = vmatpush1.msra.mxu0 0.0
    %4230 = vmatprep.subr.mxu0 0.0
    %4231 = vmatpush1.msra.mxu0 0.0
    %4232 = vmatprep.subr.mxu0 0.0
    %4233 = vmatpush1.msra.mxu0 0.0
    %4234 = vmatprep.subr.mxu0 0.0
    %4235 = vmatpush1.msra.mxu0 0.0
    %4236 = vmatprep.subr.mxu0 0.0
    %4237 = vmatpush1.msra.mxu0 0.0
    %4238 = vmatprep.subr.mxu0 0.0
    %4239 = vmatpush1.msra.mxu0 0.0
    %4240 = vmatprep.subr.mxu0 0.0
    %4241 = vmatpush1.msra.mxu0 0.0
    %4242 = vmatprep.subr.mxu0 0.0
    %4243 = vmatpush1.msra.mxu0 0.0
    %4244 = vmatprep.subr.mxu0 0.0
    %4245 = vmatpush1.msra.mxu0 0.0
    %4246 = vmatprep.subr.mxu0 0.0
    %4247 = vmatpush1.msra.mxu0 0.0
    %4248 = vmatprep.subr.mxu0 0.0
    %4249 = vmatpush1.msra.mxu0 0.0
    %4250 = vmatprep.subr.mxu0 0.0
    %4251 = vmatpush1.msra.mxu0 0.0
    %4252 = vmatprep.subr.mxu0 0.0
    %4253 = vmatpush1.msra.mxu0 0.0
    %4254 = vmatprep.subr.mxu0 0.0
    %4255 = vmatpush1.msra.mxu0 0.0
    %4256 = vmatprep.subr.mxu0 0.0
    %4257 = vmatpush1.msra.mxu0 0.0
    %4258 = vmatprep.subr.mxu0 0.0
    %4259 = vmatpush1.msra.mxu0 0.0
    %4260 = vmatprep.subr.mxu0 0.0
    %4261 = vmatpush1.msra.mxu0 0.0
    %4262 = vmatprep.mubr.f32.mxu0 0.0
    %4263 = vmatmul.mubr.f32.gmra.mrb[0].mxu0 %v4193
    %v4264 = vpop.f32.mrb[0].mxu0
    %v4265 = vadd.f32 %v55, %v4264
    %v4266 = vpop.f32.mrb[0].mxu0
    %4267 = vmatprep.mubr.f32.mxu0 0.0
    %4268 = vmatmul.mubr.f32.gmra.mrb[0].mxu0 %v4196
    %v4269 = vpop.f32.mrb[0].mxu0
    %v4270 = vadd.f32 %v64, %v4269
    %v4271 = vpop.f32.mrb[0].mxu0
    %4272 = vdwg.mxu0
    %v4273 = vmax.f32 %v4265, 0.0
    %v4274 = vmax.f32 %v4270, 0.0
    %vm4275 = vcmask 523264
    %v4277 = vsel %vm4275, %v4273, 0
    %v4280 = vsel %vm4275, %v4274, 0
    %v4283 = vsel %vm4275, %v28, 0
    %v4286 = vsel %vm4275, %v35, 0
    %v4289 = vsel %vm4275, %v42, 0
    %v4292 = vsel %vm4275, %v49, 0
    %4294 = vmatprep.subr.mxu0 0.0
    %4295 = vmatpush1.xpose.msra.mxu0 %v4283
    %4296 = vmatprep.subr.mxu0 0.0
    %4297 = vmatpush1.xpose.msra.mxu0 %v4286
    %4298 = vmatprep.subr.mxu0 0.0
    %4299 = vmatpush1.xpose.msra.mxu0 %v4289
    %4300 = vmatprep.subr.mxu0 0.0
    %4301 = vmatpush1.xpose.msra.mxu0 %v4292
    %4302 = vmatprep.subr.mxu0 0.0
    %4303 = vmatpush1.xpose.msra.mxu0 0.0
    %4304 = vmatprep.subr.mxu0 0.0
    %4305 = vmatpush1.xpose.msra.mxu0 0.0
    %4306 = vmatprep.subr.mxu0 0.0
    %4307 = vmatpush1.xpose.msra.mxu0 0.0
    %4308 = vmatprep.subr.mxu0 0.0
    %4309 = vmatpush1.xpose.msra.mxu0 0.0
    %4310 = vmatprep.subr.mxu0 0.0
    %4311 = vmatpush1.xpose.msra.mxu0 0.0
    %4312 = vmatprep.subr.mxu0 0.0
    %4313 = vmatpush1.xpose.msra.mxu0 0.0
    %4314 = vmatprep.subr.mxu0 0.0
    %4315 = vmatpush1.xpose.msra.mxu0 0.0
    %4316 = vmatprep.subr.mxu0 0.0
    %4317 = vmatpush1.xpose.msra.mxu0 0.0
    %4318 = vmatprep.subr.mxu0 0.0
    %4319 = vmatpush1.xpose.msra.mxu0 0.0
    %4320 = vmatprep.subr.mxu0 0.0
    %4321 = vmatpush1.xpose.msra.mxu0 0.0
    %4322 = vmatprep.subr.mxu0 0.0
    %4323 = vmatpush1.xpose.msra.mxu0 0.0
    %4324 = vmatprep.subr.mxu0 0.0
    %4325 = vmatpush1.xpose.msra.mxu0 0.0
    %4326 = vmatprep.subr.mxu0 0.0
    %4327 = vmatpush1.xpose.msra.mxu0 0.0
    %4328 = vmatprep.subr.mxu0 0.0
    %4329 = vmatpush1.xpose.msra.mxu0 0.0
    %4330 = vmatprep.subr.mxu0 0.0
    %4331 = vmatpush1.xpose.msra.mxu0 0.0
    %4332 = vmatprep.subr.mxu0 0.0
    %4333 = vmatpush1.xpose.msra.mxu0 0.0
    %4334 = vmatprep.subr.mxu0 0.0
    %4335 = vmatpush1.xpose.msra.mxu0 0.0
    %4336 = vmatprep.subr.mxu0 0.0
    %4337 = vmatpush1.xpose.msra.mxu0 0.0
    %4338 = vmatprep.subr.mxu0 0.0
    %4339 = vmatpush1.xpose.msra.mxu0 0.0
    %4340 = vmatprep.subr.mxu0 0.0
    %4341 = vmatpush1.xpose.msra.mxu0 0.0
    %4342 = vmatprep.subr.mxu0 0.0
    %4343 = vmatpush1.xpose.msra.mxu0 0.0
    %4344 = vmatprep.subr.mxu0 0.0
    %4345 = vmatpush1.xpose.msra.mxu0 0.0
    %4346 = vmatprep.subr.mxu0 0.0
    %4347 = vmatpush1.xpose.msra.mxu0 0.0
    %4348 = vmatprep.subr.mxu0 0.0
    %4349 = vmatpush1.xpose.msra.mxu0 0.0
    %4350 = vmatprep.subr.mxu0 0.0
    %4351 = vmatpush1.xpose.msra.mxu0 0.0
    %4352 = vmatprep.subr.mxu0 0.0
    %4353 = vmatpush1.xpose.msra.mxu0 0.0
    %4354 = vmatprep.subr.mxu0 0.0
    %4355 = vmatpush1.xpose.msra.mxu0 0.0
    %4356 = vmatprep.subr.mxu0 0.0
    %4357 = vmatpush1.xpose.msra.mxu0 0.0
    %4358 = vmatprep.mubr.f32.mxu0 0.0
    %4359 = vmatmul.mubr.f32.gmra.mrb[0].mxu0 %v4277
    %v4360 = vpop.f32.mrb[0].mxu0
    %v4361 = vadd.f32 %v56, %v4360
    %v4362 = vpop.f32.mrb[0].mxu0
    %4363 = vmatprep.mubr.f32.mxu0 0.0
    %4364 = vmatmul.mubr.f32.gmra.mrb[0].mxu0 %v4280
    %v4365 = vpop.f32.mrb[0].mxu0
    %v4366 = vadd.f32 %v65, %v4365
    %v4367 = vpop.f32.mrb[0].mxu0
    %4368 = vdwg.mxu0
    %v4369 = vadd.f32 %v4361, %v4190
    %v4370 = vadd.f32 %v4366, %v4191
    %v4371 = vsel %vm68, %v4369, 0.0
    %4372 = vadd.xlane.f32.xlu0 %v4371
    %v4373 = vpop.xlane.xlu0 %4372
    %v4374 = vsel %vm68, %v4370, 0.0
    %4375 = vadd.xlane.f32.xlu0 %v4374
    %v4376 = vpop.xlane.xlu0 %4375
    %v4377 = vmul.f32 %v4373, %v2067
    %v4378 = vmul.f32 %v4376, %v2067
    %v4379 = vsub.f32 %v4369, %v4377
    %v4380 = vsub.f32 %v4370, %v4378
    %v4381 = vmul.f32 %v4379, %v4379
    %v4382 = vmul.f32 %v4380, %v4380
    %v4383 = vsel %vm68, %v4381, 0.0
    %4384 = vadd.xlane.f32.xlu0 %v4383
    %v4385 = vpop.xlane.xlu0 %4384
    %v4386 = vsel %vm68, %v4382, 0.0
    %4387 = vadd.xlane.f32.xlu0 %v4386
    %v4388 = vpop.xlane.xlu0 %4387
    %v4389 = vmul.f32 %v4385, %v2067
    %v4390 = vmul.f32 %v4388, %v2067
    %v4391 = vadd.f32 %v4389, 1e-05
    %v4392 = vadd.f32 %v4390, 1e-05
    %v4393 = vrsqrt.pop %v4391
    %v4394 = vrsqrt.pop %v4392
    %v4395 = vmul.f32 %v4379, %v4393
    %v4396 = vmul.f32 %v4380, %v4394
    %v4397 = vmul.f32 %v4395, %v57
    %v4398 = vmul.f32 %v4396, %v66
    %v4399 = vadd.f32 %v4397, %v58
    %v4400 = vadd.f32 %v4398, %v67
    %4401 = vst.msk [vmem:[#allocation2] sm:$0xff] %vm68, %v4399
    %4402 = vst.msk [vmem:[#allocation2 + $0x8] sm:$0xff] %vm68, %v4400
    // Predicated region
    $region14: #{decoder_block.1} parent=1 // pred_check
      _
    $region15: #{decoder_block.1} parent=1 // pred_check_branch
      %4404 = sbr.rel (0) target = $region17
    $region16: #{decoder_block.1} parent=1 // pred_region
      %s4406 = ssub.s32 256, 256
      %4407 = vsyncadd [#allocation3], %s4406
      %s4408 = sshll.u32 [#allocation2], 4
      %s4409 = int_to_ptr.vmem [resolvable:$true] %s4408
      %4414 = dma.vmem_to_hbm [thread:$0]  %s4409, 256, %s3, [#allocation3], 128, 128, 8
    $region17: #{decoder_block.1} parent=1 // pred_fallthru
      _
    // Predicated region
    $region18: #{decoder_block.1} parent=1 // pred_check
      _
    $region19: #{decoder_block.1} parent=1 // pred_check_branch
      %4416 = sbr.rel (0) target = $region21
    $region20: #{decoder_block.1} parent=1 // pred_region
      %4417 = dma.done [#allocation3], 256
    $region21: #{decoder_block.1} parent=1 // pred_fallthru
      _
    %4418 = vsyncpa [#allocation3], 1

</llo_original>
